<compile_context>
chip_gen: v7x
topology: tpu7x:2x2x1
jax: 0.10.0
libtpu: 0.0.40
codegen_flags: <defaults>
</compile_context>

<pallas_src>
import jax
import jax.numpy as jnp
import numpy as np
from jax.experimental import pallas as pl
from jax.experimental.pallas import tpu as pltpu


# ---------------------------------------------------------------------------
# Fused kernel: conv1 -> pool -> conv2 -> pool -> fc1 -> ReLU -> fc2
# ---------------------------------------------------------------------------
def _digit_cnn_kernel(x_ref, w1_ref, b1_ref, s1e_ref, s1o_ref,
                      w2_ref, b2_ref, s2e_ref, s2o_ref,
                      wf1_ref, bf1_ref, wf2_ref, bf2_ref, o_ref):
    TB = x_ref.shape[0]
    f32, bf16 = jnp.float32, jnp.bfloat16

    # ---- conv1: 3x3 pad=1, Cin=1 -> Cout=16, one row-Toeplitz MXU matmul ----
    x = x_ref[...]                                          # (TB, 28, 28) bf16
    zr1 = jnp.zeros((TB, 1, 28), bf16)
    xv = jnp.concatenate([zr1, x, zr1], axis=1)             # vertical pad (TB, 30, 28)
    x1 = jnp.concatenate([xv[:, dy:dy + 28, :] for dy in range(3)],
                         axis=-1)                           # (TB, 28, 84)
    x1 = x1.reshape(TB * 28, 84)
    y1 = jnp.dot(x1, w1_ref[...], preferred_element_type=f32)   # (TB*28, 448), lane=w*16+c
    y1 = jnp.maximum(y1 + b1_ref[...], 0.0)                 # bias + ReLU (PyTorch order)

    # ---- maxpool1 2x2: row pairs by max, column pairs by 0/1-select matmuls -
    y1 = y1.reshape(TB, 14, 2, 448)
    zh1 = jnp.maximum(y1[:, :, 0, :], y1[:, :, 1, :])       # (TB, 14, 448)
    zh1 = zh1.astype(bf16).reshape(TB * 14, 448)
    p1 = jnp.maximum(
        jnp.dot(zh1, s1e_ref[...], preferred_element_type=f32),
        jnp.dot(zh1, s1o_ref[...], preferred_element_type=f32))
    p1 = p1.astype(bf16).reshape(TB, 14, 224)               # lane = w*16 + c

    # ---- conv2: 3x3 pad=1, Cin=16 -> Cout=32, one row-Toeplitz MXU matmul ---
    zr2 = jnp.zeros((TB, 1, 224), bf16)
    vp = jnp.concatenate([zr2, p1, zr2], axis=1)            # (TB, 16, 224)
    x2 = jnp.concatenate([vp[:, dy:dy + 14, :] for dy in range(3)],
                         axis=-1)                           # (TB, 14, 672)
    x2 = x2.reshape(TB * 14, 672)
    y2 = jnp.dot(x2, w2_ref[...], preferred_element_type=f32)   # (TB*14, 448), lane=w*32+c
    y2 = jnp.maximum(y2 + b2_ref[...], 0.0)

    # ---- maxpool2 2x2 -------------------------------------------------------
    y2 = y2.reshape(TB, 7, 2, 448)
    zh2 = jnp.maximum(y2[:, :, 0, :], y2[:, :, 1, :])       # (TB, 7, 448)
    zh2 = zh2.astype(bf16).reshape(TB * 7, 448)
    p2 = jnp.maximum(
        jnp.dot(zh2, s2e_ref[...], preferred_element_type=f32),
        jnp.dot(zh2, s2o_ref[...], preferred_element_type=f32))
    p2 = p2.astype(bf16).reshape(TB, 7, 224)                # lane = w*32 + c

    # ---- fc1 + ReLU + dropout(eval: identity) + fc2 -------------------------
    xf = jnp.concatenate([p2[:, h, :] for h in range(7)], axis=-1)   # (TB, 1568)
    hid = jnp.dot(xf, wf1_ref[...], preferred_element_type=f32) + bf1_ref[...]
    hid = jnp.maximum(hid, 0.0)
    # nn.Dropout(0.25) is the identity in eval/inference mode.
    logits = jnp.dot(hid.astype(bf16), wf2_ref[...],
                     preferred_element_type=f32) + bf2_ref[...]      # (TB, 10)
    o_ref[...] = logits.reshape(TB, 1, 10)


# ---------------------------------------------------------------------------
# pallas_call wrapper
# ---------------------------------------------------------------------------
def _batch_tile(batch, max_tile=32):
    """Largest tile <= max_tile dividing `batch` that keeps grid >= 2
    (so both v7x TensorCores get work).  batch == 1 -> single step."""
    if batch <= 1:
        return 1
    best = 1
    for t in range(1, min(batch, max_tile) + 1):
        if batch % t == 0 and batch // t >= 2:
            best = t
    return best


def digit_cnn_forward(prepared, x_nchw):
    B = x_nchw.shape[0]
    x = x_nchw.reshape(B, 28, 28).astype(jnp.bfloat16)   # NCHW, Cin=1 -> (B, 28, 28)
    TB = _batch_tile(B)
    const2 = lambda i: (0, 0)
    out = pl.pallas_call(
        _digit_cnn_kernel,
        out_shape=jax.ShapeDtypeStruct((B, 1, 10), jnp.float32),
        grid=(B // TB,),
        in_specs=[
            pl.BlockSpec((TB, 28, 28), lambda i: (i, 0, 0)),   # images
            pl.BlockSpec((84, 448), const2),                   # conv1 row-Toeplitz
            pl.BlockSpec((1, 448), const2),                    # conv1 bias (tiled per col)
            pl.BlockSpec((448, 224), const2),                  # pool1 even-col select
            pl.BlockSpec((448, 224), const2),                  # pool1 odd-col select
            pl.BlockSpec((672, 448), const2),                  # conv2 row-Toeplitz
            pl.BlockSpec((1, 448), const2),                    # conv2 bias (tiled per col)
            pl.BlockSpec((448, 224), const2),                  # pool2 even-col select
            pl.BlockSpec((448, 224), const2),                  # pool2 odd-col select
            pl.BlockSpec((1568, 64), const2),                  # fc1 (flatten order folded in)
            pl.BlockSpec((1, 64), const2),                     # fc1 bias
            pl.BlockSpec((64, 10), const2),                    # fc2
            pl.BlockSpec((1, 10), const2),                     # fc2 bias
        ],
        out_specs=pl.BlockSpec((TB, 1, 10), lambda i: (i, 0, 0)),
        compiler_params=pltpu.CompilerParams(
            dimension_semantics=("parallel",)),
    )(x, prepared["w1"], prepared["b1"], prepared["s1e"], prepared["s1o"],
      prepared["w2"], prepared["b2"], prepared["s2e"], prepared["s2o"],
      prepared["wf1"], prepared["bf1"], prepared["wf2"], prepared["bf2"])
    return out.reshape(B, 10)


# ---------------------------------------------------------------------------
# One-time weight repacking
# ---------------------------------------------------------------------------
def _conv_row_toeplitz(w_oihw, width):
    """(Cout,Cin,3,3) torch conv weight (padding=1) -> (3*width*Cin, width*Cout)
    with rows (dy, in_col j, cin) and cols (out_col w, cout); horizontal shift
    and horizontal zero-padding are encoded in the matrix."""
    w = np.asarray(w_oihw, np.float32)
    cout, cin, kh, kw = w.shape
    mat = np.zeros((kh * width * cin, width * cout), np.float32)
    for dy in range(kh):
        for dx in range(kw):
            tap = w[:, :, dy, dx].T                         # (cin, cout)
            for ww in range(width):
                j = ww + dx - 1                             # input column (pad=1)
                if 0 <= j < width:
                    r0 = (dy * width + j) * cin
                    mat[r0:r0 + cin, ww * cout:(ww + 1) * cout] = tap
    return mat


def _pool_pair_select(width, ch):
    """Exact 0/1 matrices selecting even / odd column groups of `ch` lanes."""
    half = width // 2
    se = np.zeros((width * ch, half * ch), np.float32)
    so = np.zeros_like(se)
    for wo in range(half):
        for c in range(ch):
            se[(2 * wo) * ch + c, wo * ch + c] = 1.0
            so[(2 * wo + 1) * ch + c, wo * ch + c] = 1.0
    return se, so


def prepare_params(params):
    w1 = _conv_row_toeplitz(params["conv1_w"], width=28)      # (84, 448)
    w2 = _conv_row_toeplitz(params["conv2_w"], width=14)      # (672, 448)
    s1e, s1o = _pool_pair_select(width=28, ch=16)             # (448, 224)
    s2e, s2o = _pool_pair_select(width=14, ch=32)             # (448, 224)
    # fc1: torch flatten index is c*49 + h*7 + w; our activation lane order is
    # h*224 + w*32 + c -> permute the weight once.
    wf1 = np.asarray(params["fc1_w"], np.float32).reshape(64, 32, 7, 7)
    wf1 = wf1.transpose(2, 3, 1, 0).reshape(7 * 7 * 32, 64)   # (1568, 64)
    wf2 = np.asarray(params["fc2_w"], np.float32).T           # (64, 10)
    b1 = np.tile(np.asarray(params["conv1_b"], np.float32), 28).reshape(1, 448)
    b2 = np.tile(np.asarray(params["conv2_b"], np.float32), 14).reshape(1, 448)
    bf1 = np.asarray(params["fc1_b"], np.float32).reshape(1, 64)
    bf2 = np.asarray(params["fc2_b"], np.float32).reshape(1, 10)
    bfloat = lambda a: jnp.asarray(a, jnp.bfloat16)
    f32 = lambda a: jnp.asarray(a, jnp.float32)
    return {
        "w1": bfloat(w1), "b1": f32(b1), "s1e": bfloat(s1e), "s1o": bfloat(s1o),
        "w2": bfloat(w2), "b2": f32(b2), "s2e": bfloat(s2e), "s2o": bfloat(s2o),
        "wf1": bfloat(wf1), "bf1": f32(bf1), "wf2": bfloat(wf2), "bf2": f32(bf2),
    }


def init_params(key):
    ks = jax.random.split(key, 8)
    s = 0.05
    return {
        "conv1_w": s * jax.random.normal(ks[0], (16, 1, 3, 3), jnp.float32),
        "conv1_b": s * jax.random.normal(ks[1], (16,), jnp.float32),
        "conv2_w": s * jax.random.normal(ks[2], (32, 16, 3, 3), jnp.float32),
        "conv2_b": s * jax.random.normal(ks[3], (32,), jnp.float32),
        "fc1_w": s * jax.random.normal(ks[4], (64, 32 * 7 * 7), jnp.float32),
        "fc1_b": s * jax.random.normal(ks[5], (64,), jnp.float32),
        "fc2_w": s * jax.random.normal(ks[6], (10, 64), jnp.float32),
        "fc2_b": s * jax.random.normal(ks[7], (10,), jnp.float32),
    }


# ---------------------------------------------------------------------------
# Pure-JAX f32 reference (matches the PyTorch module in eval mode)
# ---------------------------------------------------------------------------
def _reference_forward(params, x_nchw):
    x = x_nchw.astype(jnp.float32)

    def conv(z, w, b):
        y = jax.lax.conv_general_dilated(
            z, w, window_strides=(1, 1), padding=((1, 1), (1, 1)),
            dimension_numbers=("NCHW", "OIHW", "NCHW"))
        return y + b.reshape(1, -1, 1, 1)

    def pool(z):
        return jax.lax.reduce_window(z, -jnp.inf, jax.lax.max,
                                     (1, 1, 2, 2), (1, 1, 2, 2), "VALID")

    h = pool(jax.nn.relu(conv(x, params["conv1_w"], params["conv1_b"])))
    h = pool(jax.nn.relu(conv(h, params["conv2_w"], params["conv2_b"])))
    h = h.reshape(h.shape[0], -1)                           # torch (C,H,W) flatten
    h = jax.nn.relu(h @ params["fc1_w"].T + params["fc1_b"])
    return h @ params["fc2_w"].T + params["fc2_b"]


if __name__ == "__main__":
    key = jax.random.PRNGKey(0)
    k_params, k_x = jax.random.split(key)
    params = init_params(k_params)
    prepared = prepare_params(params)
    # Input shape implied by fc1 (32*7*7): 28x28 single-channel images, NCHW.
    x = jax.random.normal(k_x, (2, 1, 28, 28), jnp.float32)

    fwd = jax.jit(digit_cnn_forward)
    out = jax.block_until_ready(fwd(prepared, x))

    ref = _reference_forward(params, x)
    assert out.shape == (2, 10)
    assert bool(jnp.all(jnp.isfinite(out)))
    max_err = float(jnp.max(jnp.abs(out - ref)))
    assert max_err < 0.05, f"mismatch vs f32 reference: {max_err}"
    print("KERNEL_OK")
</pallas_src>

<mosaic_0001>
module attributes {stable_mosaic.version = 11 : i64} {
  func.func @_digit_cnn_kernel(%arg0: i32, %arg1: memref<1x28x28xbf16, #tpu.memory_space<vmem>>, %arg2: memref<84x448xbf16, #tpu.memory_space<vmem>>, %arg3: memref<1x448xf32, #tpu.memory_space<vmem>>, %arg4: memref<448x224xbf16, #tpu.memory_space<vmem>>, %arg5: memref<448x224xbf16, #tpu.memory_space<vmem>>, %arg6: memref<672x448xbf16, #tpu.memory_space<vmem>>, %arg7: memref<1x448xf32, #tpu.memory_space<vmem>>, %arg8: memref<448x224xbf16, #tpu.memory_space<vmem>>, %arg9: memref<448x224xbf16, #tpu.memory_space<vmem>>, %arg10: memref<1568x64xbf16, #tpu.memory_space<vmem>>, %arg11: memref<1x64xf32, #tpu.memory_space<vmem>>, %arg12: memref<64x10xbf16, #tpu.memory_space<vmem>>, %arg13: memref<1x10xf32, #tpu.memory_space<vmem>>, %arg14: memref<1x1x10xf32, #tpu.memory_space<vmem>>) attributes {dimension_semantics = [#tpu.dimension_semantics<parallel>], iteration_bounds = array<i64: 2>, scalar_prefetch = 0 : i64, scratch_operands = 0 : i64, tpu.core_type = #tpu.core_type<tc>, window_params = [{transform_indices = @transform_0, window_bounds = array<i64: 1, 28, 28>}, {pipeline_mode = #tpu.pipeline_mode<synchronous>, transform_indices = @transform_1, window_bounds = array<i64: 84, 448>}, {pipeline_mode = #tpu.pipeline_mode<synchronous>, transform_indices = @transform_2, window_bounds = array<i64: 1, 448>}, {pipeline_mode = #tpu.pipeline_mode<synchronous>, transform_indices = @transform_3, window_bounds = array<i64: 448, 224>}, {pipeline_mode = #tpu.pipeline_mode<synchronous>, transform_indices = @transform_4, window_bounds = array<i64: 448, 224>}, {pipeline_mode = #tpu.pipeline_mode<synchronous>, transform_indices = @transform_5, window_bounds = array<i64: 672, 448>}, {pipeline_mode = #tpu.pipeline_mode<synchronous>, transform_indices = @transform_6, window_bounds = array<i64: 1, 448>}, {pipeline_mode = #tpu.pipeline_mode<synchronous>, transform_indices = @transform_7, window_bounds = array<i64: 448, 224>}, {pipeline_mode = #tpu.pipeline_mode<synchronous>, transform_indices = @transform_8, window_bounds = array<i64: 448, 224>}, {pipeline_mode = #tpu.pipeline_mode<synchronous>, transform_indices = @transform_9, window_bounds = array<i64: 1568, 64>}, {pipeline_mode = #tpu.pipeline_mode<synchronous>, transform_indices = @transform_10, window_bounds = array<i64: 1, 64>}, {pipeline_mode = #tpu.pipeline_mode<synchronous>, transform_indices = @transform_11, window_bounds = array<i64: 64, 10>}, {pipeline_mode = #tpu.pipeline_mode<synchronous>, transform_indices = @transform_12, window_bounds = array<i64: 1, 10>}, {transform_indices = @transform_13, window_bounds = array<i64: 1, 1, 10>}]} {
    %c0 = arith.constant 0 : index
    %c0_0 = arith.constant 0 : index
    %c0_1 = arith.constant 0 : index
    %0 = vector.load %arg1[%c0, %c0_0, %c0_1] : memref<1x28x28xbf16, #tpu.memory_space<vmem>>, vector<1x28x28xbf16>
    %cst = arith.constant 0.000000e+00 : bf16
    %1 = vector.broadcast %cst : bf16 to vector<1x1x28xbf16>
    %2 = tpu.concatenate %1, %0, %1 in 1 : vector<1x1x28xbf16>, vector<1x28x28xbf16>, vector<1x1x28xbf16> -> vector<1x30x28xbf16>
    %3 = vector.extract_strided_slice %2 {offsets = [0, 0, 0], sizes = [1, 28, 28], strides = [1, 1, 1]} : vector<1x30x28xbf16> to vector<1x28x28xbf16>
    %4 = vector.extract_strided_slice %2 {offsets = [0, 1, 0], sizes = [1, 28, 28], strides = [1, 1, 1]} : vector<1x30x28xbf16> to vector<1x28x28xbf16>
    %5 = vector.extract_strided_slice %2 {offsets = [0, 2, 0], sizes = [1, 28, 28], strides = [1, 1, 1]} : vector<1x30x28xbf16> to vector<1x28x28xbf16>
    %6 = tpu.concatenate %3, %4, %5 in 2 : vector<1x28x28xbf16>, vector<1x28x28xbf16>, vector<1x28x28xbf16> -> vector<1x28x84xbf16>
    %7 = vector.shape_cast %6 : vector<1x28x84xbf16> to vector<28x84xbf16>
    %c0_2 = arith.constant 0 : index
    %c0_3 = arith.constant 0 : index
    %8 = vector.load %arg2[%c0_2, %c0_3] : memref<84x448xbf16, #tpu.memory_space<vmem>>, vector<84x448xbf16>
    %cst_4 = arith.constant dense<0.000000e+00> : vector<28x448xf32>
    %9 = tpu.matmul %7, %8, %cst_4 {dimension_numbers = #tpu.dot_dimension_numbers<[1], [0], [0], [1], [0, 0, 1, 1], [], []>} : vector<28x84xbf16>, vector<84x448xbf16>, vector<28x448xf32> -> vector<28x448xf32>
    %c0_5 = arith.constant 0 : index
    %c0_6 = arith.constant 0 : index
    %10 = vector.load %arg3[%c0_5, %c0_6] : memref<1x448xf32, #tpu.memory_space<vmem>>, vector<1x448xf32>
    %11 = vector.broadcast %10 : vector<1x448xf32> to vector<28x448xf32>
    %12 = arith.addf %9, %11 : vector<28x448xf32>
    %cst_7 = arith.constant 0.000000e+00 : f32
    %13 = vector.broadcast %cst_7 : f32 to vector<28x448xf32>
    %14 = arith.maximumf %12, %13 : vector<28x448xf32>
    %15 = vector.shape_cast %14 : vector<28x448xf32> to vector<1x14x2x448xf32>
    %16 = vector.extract_strided_slice %15 {offsets = [0, 0, 0, 0], sizes = [1, 14, 1, 448], strides = [1, 1, 1, 1]} : vector<1x14x2x448xf32> to vector<1x14x1x448xf32>
    %17 = vector.shape_cast %16 : vector<1x14x1x448xf32> to vector<1x14x448xf32>
    %18 = vector.extract_strided_slice %15 {offsets = [0, 0, 1, 0], sizes = [1, 14, 1, 448], strides = [1, 1, 1, 1]} : vector<1x14x2x448xf32> to vector<1x14x1x448xf32>
    %19 = vector.shape_cast %18 : vector<1x14x1x448xf32> to vector<1x14x448xf32>
    %20 = arith.maximumf %17, %19 : vector<1x14x448xf32>
    %21 = arith.truncf %20 : vector<1x14x448xf32> to vector<1x14x448xbf16>
    %22 = vector.shape_cast %21 : vector<1x14x448xbf16> to vector<14x448xbf16>
    %c0_8 = arith.constant 0 : index
    %c0_9 = arith.constant 0 : index
    %23 = vector.load %arg4[%c0_8, %c0_9] : memref<448x224xbf16, #tpu.memory_space<vmem>>, vector<448x224xbf16>
    %cst_10 = arith.constant dense<0.000000e+00> : vector<14x224xf32>
    %24 = tpu.matmul %22, %23, %cst_10 {dimension_numbers = #tpu.dot_dimension_numbers<[1], [0], [0], [1], [0, 0, 1, 1], [], []>} : vector<14x448xbf16>, vector<448x224xbf16>, vector<14x224xf32> -> vector<14x224xf32>
    %c0_11 = arith.constant 0 : index
    %c0_12 = arith.constant 0 : index
    %25 = vector.load %arg5[%c0_11, %c0_12] : memref<448x224xbf16, #tpu.memory_space<vmem>>, vector<448x224xbf16>
    %cst_13 = arith.constant dense<0.000000e+00> : vector<14x224xf32>
    %26 = tpu.matmul %22, %25, %cst_13 {dimension_numbers = #tpu.dot_dimension_numbers<[1], [0], [0], [1], [0, 0, 1, 1], [], []>} : vector<14x448xbf16>, vector<448x224xbf16>, vector<14x224xf32> -> vector<14x224xf32>
    %27 = arith.maximumf %24, %26 : vector<14x224xf32>
    %28 = arith.truncf %27 : vector<14x224xf32> to vector<14x224xbf16>
    %29 = vector.shape_cast %28 : vector<14x224xbf16> to vector<1x14x224xbf16>
    %cst_14 = arith.constant 0.000000e+00 : bf16
    %30 = vector.broadcast %cst_14 : bf16 to vector<1x1x224xbf16>
    %31 = tpu.concatenate %30, %29, %30 in 1 : vector<1x1x224xbf16>, vector<1x14x224xbf16>, vector<1x1x224xbf16> -> vector<1x16x224xbf16>
    %32 = vector.extract_strided_slice %31 {offsets = [0, 0, 0], sizes = [1, 14, 224], strides = [1, 1, 1]} : vector<1x16x224xbf16> to vector<1x14x224xbf16>
    %33 = vector.extract_strided_slice %31 {offsets = [0, 1, 0], sizes = [1, 14, 224], strides = [1, 1, 1]} : vector<1x16x224xbf16> to vector<1x14x224xbf16>
    %34 = vector.extract_strided_slice %31 {offsets = [0, 2, 0], sizes = [1, 14, 224], strides = [1, 1, 1]} : vector<1x16x224xbf16> to vector<1x14x224xbf16>
    %35 = tpu.concatenate %32, %33, %34 in 2 : vector<1x14x224xbf16>, vector<1x14x224xbf16>, vector<1x14x224xbf16> -> vector<1x14x672xbf16>
    %36 = vector.shape_cast %35 : vector<1x14x672xbf16> to vector<14x672xbf16>
    %c0_15 = arith.constant 0 : index
    %c0_16 = arith.constant 0 : index
    %37 = vector.load %arg6[%c0_15, %c0_16] : memref<672x448xbf16, #tpu.memory_space<vmem>>, vector<672x448xbf16>
    %cst_17 = arith.constant dense<0.000000e+00> : vector<14x448xf32>
    %38 = tpu.matmul %36, %37, %cst_17 {dimension_numbers = #tpu.dot_dimension_numbers<[1], [0], [0], [1], [0, 0, 1, 1], [], []>} : vector<14x672xbf16>, vector<672x448xbf16>, vector<14x448xf32> -> vector<14x448xf32>
    %c0_18 = arith.constant 0 : index
    %c0_19 = arith.constant 0 : index
    %39 = vector.load %arg7[%c0_18, %c0_19] : memref<1x448xf32, #tpu.memory_space<vmem>>, vector<1x448xf32>
    %40 = vector.broadcast %39 : vector<1x448xf32> to vector<14x448xf32>
    %41 = arith.addf %38, %40 : vector<14x448xf32>
    %cst_20 = arith.constant 0.000000e+00 : f32
    %42 = vector.broadcast %cst_20 : f32 to vector<14x448xf32>
    %43 = arith.maximumf %41, %42 : vector<14x448xf32>
    %44 = vector.shape_cast %43 : vector<14x448xf32> to vector<1x7x2x448xf32>
    %45 = vector.extract_strided_slice %44 {offsets = [0, 0, 0, 0], sizes = [1, 7, 1, 448], strides = [1, 1, 1, 1]} : vector<1x7x2x448xf32> to vector<1x7x1x448xf32>
    %46 = vector.shape_cast %45 : vector<1x7x1x448xf32> to vector<1x7x448xf32>
    %47 = vector.extract_strided_slice %44 {offsets = [0, 0, 1, 0], sizes = [1, 7, 1, 448], strides = [1, 1, 1, 1]} : vector<1x7x2x448xf32> to vector<1x7x1x448xf32>
    %48 = vector.shape_cast %47 : vector<1x7x1x448xf32> to vector<1x7x448xf32>
    %49 = arith.maximumf %46, %48 : vector<1x7x448xf32>
    %50 = arith.truncf %49 : vector<1x7x448xf32> to vector<1x7x448xbf16>
    %51 = vector.shape_cast %50 : vector<1x7x448xbf16> to vector<7x448xbf16>
    %c0_21 = arith.constant 0 : index
    %c0_22 = arith.constant 0 : index
    %52 = vector.load %arg8[%c0_21, %c0_22] : memref<448x224xbf16, #tpu.memory_space<vmem>>, vector<448x224xbf16>
    %cst_23 = arith.constant dense<0.000000e+00> : vector<7x224xf32>
    %53 = tpu.matmul %51, %52, %cst_23 {dimension_numbers = #tpu.dot_dimension_numbers<[1], [0], [0], [1], [0, 0, 1, 1], [], []>} : vector<7x448xbf16>, vector<448x224xbf16>, vector<7x224xf32> -> vector<7x224xf32>
    %c0_24 = arith.constant 0 : index
    %c0_25 = arith.constant 0 : index
    %54 = vector.load %arg9[%c0_24, %c0_25] : memref<448x224xbf16, #tpu.memory_space<vmem>>, vector<448x224xbf16>
    %cst_26 = arith.constant dense<0.000000e+00> : vector<7x224xf32>
    %55 = tpu.matmul %51, %54, %cst_26 {dimension_numbers = #tpu.dot_dimension_numbers<[1], [0], [0], [1], [0, 0, 1, 1], [], []>} : vector<7x448xbf16>, vector<448x224xbf16>, vector<7x224xf32> -> vector<7x224xf32>
    %56 = arith.maximumf %53, %55 : vector<7x224xf32>
    %57 = arith.truncf %56 : vector<7x224xf32> to vector<7x224xbf16>
    %58 = vector.shape_cast %57 : vector<7x224xbf16> to vector<1x7x224xbf16>
    %59 = vector.extract_strided_slice %58 {offsets = [0, 0, 0], sizes = [1, 1, 224], strides = [1, 1, 1]} : vector<1x7x224xbf16> to vector<1x1x224xbf16>
    %60 = vector.shape_cast %59 : vector<1x1x224xbf16> to vector<1x224xbf16>
    %61 = vector.extract_strided_slice %58 {offsets = [0, 1, 0], sizes = [1, 1, 224], strides = [1, 1, 1]} : vector<1x7x224xbf16> to vector<1x1x224xbf16>
    %62 = vector.shape_cast %61 : vector<1x1x224xbf16> to vector<1x224xbf16>
    %63 = vector.extract_strided_slice %58 {offsets = [0, 2, 0], sizes = [1, 1, 224], strides = [1, 1, 1]} : vector<1x7x224xbf16> to vector<1x1x224xbf16>
    %64 = vector.shape_cast %63 : vector<1x1x224xbf16> to vector<1x224xbf16>
    %65 = vector.extract_strided_slice %58 {offsets = [0, 3, 0], sizes = [1, 1, 224], strides = [1, 1, 1]} : vector<1x7x224xbf16> to vector<1x1x224xbf16>
    %66 = vector.shape_cast %65 : vector<1x1x224xbf16> to vector<1x224xbf16>
    %67 = vector.extract_strided_slice %58 {offsets = [0, 4, 0], sizes = [1, 1, 224], strides = [1, 1, 1]} : vector<1x7x224xbf16> to vector<1x1x224xbf16>
    %68 = vector.shape_cast %67 : vector<1x1x224xbf16> to vector<1x224xbf16>
    %69 = vector.extract_strided_slice %58 {offsets = [0, 5, 0], sizes = [1, 1, 224], strides = [1, 1, 1]} : vector<1x7x224xbf16> to vector<1x1x224xbf16>
    %70 = vector.shape_cast %69 : vector<1x1x224xbf16> to vector<1x224xbf16>
    %71 = vector.extract_strided_slice %58 {offsets = [0, 6, 0], sizes = [1, 1, 224], strides = [1, 1, 1]} : vector<1x7x224xbf16> to vector<1x1x224xbf16>
    %72 = vector.shape_cast %71 : vector<1x1x224xbf16> to vector<1x224xbf16>
    %73 = tpu.concatenate %60, %62, %64, %66, %68, %70, %72 in 1 : vector<1x224xbf16>, vector<1x224xbf16>, vector<1x224xbf16>, vector<1x224xbf16>, vector<1x224xbf16>, vector<1x224xbf16>, vector<1x224xbf16> -> vector<1x1568xbf16>
    %c0_27 = arith.constant 0 : index
    %c0_28 = arith.constant 0 : index
    %74 = vector.load %arg10[%c0_27, %c0_28] : memref<1568x64xbf16, #tpu.memory_space<vmem>>, vector<1568x64xbf16>
    %cst_29 = arith.constant dense<0.000000e+00> : vector<1x64xf32>
    %75 = tpu.matmul %73, %74, %cst_29 {dimension_numbers = #tpu.dot_dimension_numbers<[1], [0], [0], [1], [0, 0, 1, 1], [], []>} : vector<1x1568xbf16>, vector<1568x64xbf16>, vector<1x64xf32> -> vector<1x64xf32>
    %c0_30 = arith.constant 0 : index
    %c0_31 = arith.constant 0 : index
    %76 = vector.load %arg11[%c0_30, %c0_31] : memref<1x64xf32, #tpu.memory_space<vmem>>, vector<1x64xf32>
    %77 = arith.addf %75, %76 : vector<1x64xf32>
    %cst_32 = arith.constant 0.000000e+00 : f32
    %78 = vector.broadcast %cst_32 : f32 to vector<1x64xf32>
    %79 = arith.maximumf %77, %78 : vector<1x64xf32>
    %80 = arith.truncf %79 : vector<1x64xf32> to vector<1x64xbf16>
    %c0_33 = arith.constant 0 : index
    %c0_34 = arith.constant 0 : index
    %81 = vector.load %arg12[%c0_33, %c0_34] : memref<64x10xbf16, #tpu.memory_space<vmem>>, vector<64x10xbf16>
    %cst_35 = arith.constant dense<0.000000e+00> : vector<1x10xf32>
    %82 = tpu.matmul %80, %81, %cst_35 {dimension_numbers = #tpu.dot_dimension_numbers<[1], [0], [0], [1], [0, 0, 1, 1], [], []>} : vector<1x64xbf16>, vector<64x10xbf16>, vector<1x10xf32> -> vector<1x10xf32>
    %c0_36 = arith.constant 0 : index
    %c0_37 = arith.constant 0 : index
    %83 = vector.load %arg13[%c0_36, %c0_37] : memref<1x10xf32, #tpu.memory_space<vmem>>, vector<1x10xf32>
    %84 = arith.addf %82, %83 : vector<1x10xf32>
    %85 = vector.shape_cast %84 : vector<1x10xf32> to vector<1x1x10xf32>
    %c0_38 = arith.constant 0 : index
    %c0_39 = arith.constant 0 : index
    %c0_40 = arith.constant 0 : index
    %86 = vector.load %arg14[%c0_38, %c0_39, %c0_40] : memref<1x1x10xf32, #tpu.memory_space<vmem>>, vector<1x1x10xf32>
    tpu.vector_store %arg14[%c0_38, %c0_39, %c0_40], %85 {strides = array<i32>} : memref<1x1x10xf32, #tpu.memory_space<vmem>>, vector<1x1x10xf32>,
    return
  }
  func.func @transform_0(%arg0: i32) -> (i32, i32, i32) {
    %c0_i32 = arith.constant 0 : i32
    %c0_i32_0 = arith.constant 0 : i32
    %c0_i32_1 = arith.constant 0 : i32
    return %arg0, %c0_i32, %c0_i32_0 : i32, i32, i32
  }
  func.func @transform_1(%arg0: i32) -> (i32, i32) {
    %c0_i32 = arith.constant 0 : i32
    %c0_i32_0 = arith.constant 0 : i32
    %c0_i32_1 = arith.constant 0 : i32
    return %c0_i32, %c0_i32_0 : i32, i32
  }
  func.func @transform_2(%arg0: i32) -> (i32, i32) {
    %c0_i32 = arith.constant 0 : i32
    %c0_i32_0 = arith.constant 0 : i32
    %c0_i32_1 = arith.constant 0 : i32
    return %c0_i32, %c0_i32_0 : i32, i32
  }
  func.func @transform_3(%arg0: i32) -> (i32, i32) {
    %c0_i32 = arith.constant 0 : i32
    %c0_i32_0 = arith.constant 0 : i32
    %c0_i32_1 = arith.constant 0 : i32
    return %c0_i32, %c0_i32_0 : i32, i32
  }
  func.func @transform_4(%arg0: i32) -> (i32, i32) {
    %c0_i32 = arith.constant 0 : i32
    %c0_i32_0 = arith.constant 0 : i32
    %c0_i32_1 = arith.constant 0 : i32
    return %c0_i32, %c0_i32_0 : i32, i32
  }
  func.func @transform_5(%arg0: i32) -> (i32, i32) {
    %c0_i32 = arith.constant 0 : i32
    %c0_i32_0 = arith.constant 0 : i32
    %c0_i32_1 = arith.constant 0 : i32
    return %c0_i32, %c0_i32_0 : i32, i32
  }
  func.func @transform_6(%arg0: i32) -> (i32, i32) {
    %c0_i32 = arith.constant 0 : i32
    %c0_i32_0 = arith.constant 0 : i32
    %c0_i32_1 = arith.constant 0 : i32
    return %c0_i32, %c0_i32_0 : i32, i32
  }
  func.func @transform_7(%arg0: i32) -> (i32, i32) {
    %c0_i32 = arith.constant 0 : i32
    %c0_i32_0 = arith.constant 0 : i32
    %c0_i32_1 = arith.constant 0 : i32
    return %c0_i32, %c0_i32_0 : i32, i32
  }
  func.func @transform_8(%arg0: i32) -> (i32, i32) {
    %c0_i32 = arith.constant 0 : i32
    %c0_i32_0 = arith.constant 0 : i32
    %c0_i32_1 = arith.constant 0 : i32
    return %c0_i32, %c0_i32_0 : i32, i32
  }
  func.func @transform_9(%arg0: i32) -> (i32, i32) {
    %c0_i32 = arith.constant 0 : i32
    %c0_i32_0 = arith.constant 0 : i32
    %c0_i32_1 = arith.constant 0 : i32
    return %c0_i32, %c0_i32_0 : i32, i32
  }
  func.func @transform_10(%arg0: i32) -> (i32, i32) {
    %c0_i32 = arith.constant 0 : i32
    %c0_i32_0 = arith.constant 0 : i32
    %c0_i32_1 = arith.constant 0 : i32
    return %c0_i32, %c0_i32_0 : i32, i32
  }
  func.func @transform_11(%arg0: i32) -> (i32, i32) {
    %c0_i32 = arith.constant 0 : i32
    %c0_i32_0 = arith.constant 0 : i32
    %c0_i32_1 = arith.constant 0 : i32
    return %c0_i32, %c0_i32_0 : i32, i32
  }
  func.func @transform_12(%arg0: i32) -> (i32, i32) {
    %c0_i32 = arith.constant 0 : i32
    %c0_i32_0 = arith.constant 0 : i32
    %c0_i32_1 = arith.constant 0 : i32
    return %c0_i32, %c0_i32_0 : i32, i32
  }
  func.func @transform_13(%arg0: i32) -> (i32, i32, i32) {
    %c0_i32 = arith.constant 0 : i32
    %c0_i32_0 = arith.constant 0 : i32
    %c0_i32_1 = arith.constant 0 : i32
    return %arg0, %c0_i32, %c0_i32_0 : i32, i32, i32
  }
}

</mosaic_0001>

<llo_original>
// kernel: digit_cnn_forward.1
$region0: #{digit_cnn_forward.1}
  #allocation0 [shape = 'u32[]', space=smem, size = 0x4, offset = 0x4, fixed_abs, tag = 'smem constant byte address 0x4 - core index']
  #allocation1 [shape = 'u32[144,128]{1,0:T(1,128)}', space=vmem, size = 0x12000, scoped, tag = 'internal scratch']
  %s0 = inlined_call_operand.vmem [shape: bf16[2,28,28], index: 0, kind: input, shape index: {}]
  %s1 = inlined_call_operand.hbm [shape: bf16[84,448], index: 1, kind: input, shape index: {}]
  %s2 = inlined_call_operand.vmem [shape: f32[1,448], index: 2, kind: input, shape index: {}]
  %s3 = inlined_call_operand.hbm [shape: bf16[448,224], index: 3, kind: input, shape index: {}]
  %s4 = inlined_call_operand.hbm [shape: bf16[448,224], index: 4, kind: input, shape index: {}]
  %s5 = inlined_call_operand.vmem [shape: bf16[672,448], index: 5, kind: input, shape index: {}]
  %s6 = inlined_call_operand.vmem [shape: f32[1,448], index: 6, kind: input, shape index: {}]
  %s7 = inlined_call_operand.hbm [shape: bf16[448,224], index: 7, kind: input, shape index: {}]
  %s8 = inlined_call_operand.hbm [shape: bf16[448,224], index: 8, kind: input, shape index: {}]
  %s9 = inlined_call_operand.vmem [shape: bf16[1568,64], index: 9, kind: input, shape index: {}]
  %s10 = inlined_call_operand.vmem [shape: f32[1,64], index: 10, kind: input, shape index: {}]
  %s11 = inlined_call_operand.vmem [shape: bf16[64,10], index: 11, kind: input, shape index: {}]
  %s12 = inlined_call_operand.vmem [shape: f32[1,10], index: 12, kind: input, shape index: {}]
  %s13 = inlined_call_operand.hbm [shape: f32[2,1,10], index: 13, kind: output, shape index: {}]
  %s14 = sld [smem:[#allocation0]]
  $region105: #{digit_cnn_forward.1} parent=0
    _
  %s16 = ssub.s32 1, %s14
  %s17 = scalar_select 0, %s16, %s14
  $region1: #{digit_cnn_forward.1} parent=0
    #allocation2 [shape = 'u8[90112]{0}', space=vmem, size = 0x16000, scoped, tag = 'input window, operand 1, single buffered']
    #allocation3 [shape = 's32[2]{0}', space=sflag, size = 0x8, scoped, tag = 'scoped memory for digit_cnn_forward.1']
    #allocation4 [shape = 's32[2]{0}', space=sflag, size = 0x8, scoped, tag = 'scoped memory for digit_cnn_forward.1']
    #allocation5 [shape = 'u8[229376]{0}', space=vmem, size = 0x38000, scoped, tag = 'input window, operand 3, single buffered']
    #allocation6 [shape = 's32[1]{0}', space=sflag, size = 0x4, scoped, tag = 'scoped memory for digit_cnn_forward.1']
    #allocation7 [shape = 'u8[229376]{0}', space=vmem, size = 0x38000, scoped, tag = 'input window, operand 4, single buffered']
    #allocation8 [shape = 'u8[229376]{0}', space=vmem, size = 0x38000, scoped, tag = 'input window, operand 7, single buffered']
    #allocation9 [shape = 's32[1]{0}', space=sflag, size = 0x4, scoped, tag = 'scoped memory for digit_cnn_forward.1']
    #allocation10 [shape = 'u8[229376]{0}', space=vmem, size = 0x38000, scoped, tag = 'input window, operand 8, single buffered']
    #allocation11 [shape = 'u8[1024]{0}', space=vmem, size = 0x400, scoped, tag = 'output window, operand 0']
    %18 = vsyncpa [#allocation3], 0
    %19 = vsyncpa [#allocation6], 0
    %20 = vsyncpa [#allocation9], 0
    %21 = vsyncpa [#allocation4], 0
    %s22 = scalar_lea.sflag [#allocation4], 1
    %23 = vsyncpa %s22, 0
    loop: start=0, step=1, limit=4
    $region2: #{digit_cnn_forward.1} parent=1 // loop_pre_header
      _
    $region3: #{digit_cnn_forward.1} parent=1 // loop_header
      %s25 = sphi 0, %s29
      %p26 = scmp.ge.s32.totalorder %s25, 4
      %s35 = sphi 0, %s37
      %s38 = sphi 0, %s35
      %s39 = sphi 0, %s38
      %s55 = sphi 0, %s39
      %s59 = sphi 0, %s59
      %s61 = sphi 0, %s59
      %s62 = sphi 0, %s61
      %s76 = sphi 0, %s62
      %s80 = sphi 0, %s80
      %s82 = sphi 0, %s80
      %s83 = sphi 0, %s82
      %s97 = sphi 0, %s83
      %s101 = sphi 0, %s101
      %s103 = sphi 0, %s101
      %s104 = sphi 0, %s103
      %s118 = sphi 0, %s104
      %s122 = sphi 0, %s122
      %s124 = sphi 0, %s122
      %s125 = sphi 0, %s124
      %s139 = sphi 0, %s125
      %s143 = sphi 0, %s143
      %s145 = sphi 0, %s143
      %s146 = sphi 0, %s145
      %s160 = sphi 0, %s146
      %s164 = sphi 0, %s164
      %s166 = sphi 0, %s164
      %s167 = sphi 0, %s166
      %s181 = sphi 0, %s167
      %s185 = sphi 0, %s185
      %s187 = sphi 0, %s185
      %s188 = sphi 0, %s187
      %s202 = sphi 0, %s188
      %s206 = sphi 0, %s206
      %s208 = sphi 0, %s206
      %s209 = sphi 0, %s208
      %s223 = sphi 0, %s209
      %s227 = sphi 0, %s227
      %s229 = sphi 0, %s227
      %s230 = sphi 0, %s229
      %s244 = sphi 0, %s230
      %s248 = sphi 0, %s248
      %s250 = sphi 0, %s248
      %s251 = sphi 0, %s250
      %s265 = sphi 0, %s251
      %s269 = sphi 0, %s269
      %s271 = sphi 0, %s269
      %s272 = sphi 0, %s271
      %s286 = sphi 0, %s272
      %s290 = sphi 0, %s290
      %s292 = sphi 0, %s290
      %s293 = sphi 0, %s292
      %s307 = sphi 0, %s293
      %s313 = sphi 0, %s315
      %s316 = sphi 0, %s313
      %s317 = sphi 0, %s316
      %s333 = sphi 0, %s317
    $region4: #{digit_cnn_forward.1} parent=1 // loop_header_branch
      %28 = sbr.rel (%p26) target = $region8
    $region5: #{digit_cnn_forward.1} parent=1 // loop_body
      %s30 = ssub.s32 %s25, 1
      %s31 = ssub.s32 %s25, 2
      %s32 = sadd.s32 %s25, 1
      %s33 = ssub.s32 %s25, %s32
      %p34 = scmp.eq.s32.totalorder %s33, 0
      %s36 = sadd.s32 %s35, 1
      %s37 = scalar_select %p34, %s35, %s36
      %p40 = pneg %p34
      %p41 = scmp.eq.s32.totalorder %s25, 1
      %p42 = por %p40, %p41
      %p43 = scmp.ne.s32.totalorder %s35, %s38
      %p44 = scmp.eq.s32.totalorder %s25, 0
      %p45 = por %p43, %p44
      %p46 = scmp.ne.s32.totalorder %s35, %s38
      %p47 = scmp.eq.s32.totalorder %s30, 1
      %p48 = por %p46, %p47
      %p49 = scmp.ne.s32.totalorder %s38, %s39
      %p50 = scmp.eq.s32.totalorder %s30, 0
      %p51 = por %p49, %p50
      %p52 = scmp.ne.s32.totalorder %s38, %s39
      %p53 = scmp.eq.s32.totalorder %s31, 1
      %p54 = por %p52, %p53
      %p56 = scmp.ne.s32.totalorder %s39, %s55
      %p57 = scmp.eq.s32.totalorder %s31, 0
      %p58 = por %p56, %p57
      %s60 = sadd.s32 %s59, 1
      %p63 = scmp.eq.s32.totalorder %s25, 1
      %p64 = scmp.ne.s32.totalorder %s59, %s61
      %p65 = scmp.eq.s32.totalorder %s25, 0
      %p66 = por %p64, %p65
      %p67 = scmp.ne.s32.totalorder %s59, %s61
      %p68 = scmp.eq.s32.totalorder %s30, 1
      %p69 = por %p67, %p68
      %p70 = scmp.ne.s32.totalorder %s61, %s62
      %p71 = scmp.eq.s32.totalorder %s30, 0
      %p72 = por %p70, %p71
      %p73 = scmp.ne.s32.totalorder %s61, %s62
      %p74 = scmp.eq.s32.totalorder %s31, 1
      %p75 = por %p73, %p74
      %p77 = scmp.ne.s32.totalorder %s62, %s76
      %p78 = scmp.eq.s32.totalorder %s31, 0
      %p79 = por %p77, %p78
      %s81 = sadd.s32 %s80, 1
      %p84 = scmp.eq.s32.totalorder %s25, 1
      %p85 = scmp.ne.s32.totalorder %s80, %s82
      %p86 = scmp.eq.s32.totalorder %s25, 0
      %p87 = por %p85, %p86
      %p88 = scmp.ne.s32.totalorder %s80, %s82
      %p89 = scmp.eq.s32.totalorder %s30, 1
      %p90 = por %p88, %p89
      %p91 = scmp.ne.s32.totalorder %s82, %s83
      %p92 = scmp.eq.s32.totalorder %s30, 0
      %p93 = por %p91, %p92
      %p94 = scmp.ne.s32.totalorder %s82, %s83
      %p95 = scmp.eq.s32.totalorder %s31, 1
      %p96 = por %p94, %p95
      %p98 = scmp.ne.s32.totalorder %s83, %s97
      %p99 = scmp.eq.s32.totalorder %s31, 0
      %p100 = por %p98, %p99
      %s102 = sadd.s32 %s101, 1
      %p105 = scmp.eq.s32.totalorder %s25, 1
      %p106 = scmp.ne.s32.totalorder %s101, %s103
      %p107 = scmp.eq.s32.totalorder %s25, 0
      %p108 = por %p106, %p107
      %p109 = scmp.ne.s32.totalorder %s101, %s103
      %p110 = scmp.eq.s32.totalorder %s30, 1
      %p111 = por %p109, %p110
      %p112 = scmp.ne.s32.totalorder %s103, %s104
      %p113 = scmp.eq.s32.totalorder %s30, 0
      %p114 = por %p112, %p113
      %p115 = scmp.ne.s32.totalorder %s103, %s104
      %p116 = scmp.eq.s32.totalorder %s31, 1
      %p117 = por %p115, %p116
      %p119 = scmp.ne.s32.totalorder %s104, %s118
      %p120 = scmp.eq.s32.totalorder %s31, 0
      %p121 = por %p119, %p120
      %s123 = sadd.s32 %s122, 1
      %p126 = scmp.eq.s32.totalorder %s25, 1
      %p127 = scmp.ne.s32.totalorder %s122, %s124
      %p128 = scmp.eq.s32.totalorder %s25, 0
      %p129 = por %p127, %p128
      %p130 = scmp.ne.s32.totalorder %s122, %s124
      %p131 = scmp.eq.s32.totalorder %s30, 1
      %p132 = por %p130, %p131
      %p133 = scmp.ne.s32.totalorder %s124, %s125
      %p134 = scmp.eq.s32.totalorder %s30, 0
      %p135 = por %p133, %p134
      %p136 = scmp.ne.s32.totalorder %s124, %s125
      %p137 = scmp.eq.s32.totalorder %s31, 1
      %p138 = por %p136, %p137
      %p140 = scmp.ne.s32.totalorder %s125, %s139
      %p141 = scmp.eq.s32.totalorder %s31, 0
      %p142 = por %p140, %p141
      %s144 = sadd.s32 %s143, 1
      %p147 = scmp.eq.s32.totalorder %s25, 1
      %p148 = scmp.ne.s32.totalorder %s143, %s145
      %p149 = scmp.eq.s32.totalorder %s25, 0
      %p150 = por %p148, %p149
      %p151 = scmp.ne.s32.totalorder %s143, %s145
      %p152 = scmp.eq.s32.totalorder %s30, 1
      %p153 = por %p151, %p152
      %p154 = scmp.ne.s32.totalorder %s145, %s146
      %p155 = scmp.eq.s32.totalorder %s30, 0
      %p156 = por %p154, %p155
      %p157 = scmp.ne.s32.totalorder %s145, %s146
      %p158 = scmp.eq.s32.totalorder %s31, 1
      %p159 = por %p157, %p158
      %p161 = scmp.ne.s32.totalorder %s146, %s160
      %p162 = scmp.eq.s32.totalorder %s31, 0
      %p163 = por %p161, %p162
      %s165 = sadd.s32 %s164, 1
      %p168 = scmp.eq.s32.totalorder %s25, 1
      %p169 = scmp.ne.s32.totalorder %s164, %s166
      %p170 = scmp.eq.s32.totalorder %s25, 0
      %p171 = por %p169, %p170
      %p172 = scmp.ne.s32.totalorder %s164, %s166
      %p173 = scmp.eq.s32.totalorder %s30, 1
      %p174 = por %p172, %p173
      %p175 = scmp.ne.s32.totalorder %s166, %s167
      %p176 = scmp.eq.s32.totalorder %s30, 0
      %p177 = por %p175, %p176
      %p178 = scmp.ne.s32.totalorder %s166, %s167
      %p179 = scmp.eq.s32.totalorder %s31, 1
      %p180 = por %p178, %p179
      %p182 = scmp.ne.s32.totalorder %s167, %s181
      %p183 = scmp.eq.s32.totalorder %s31, 0
      %p184 = por %p182, %p183
      %s186 = sadd.s32 %s185, 1
      %p189 = scmp.eq.s32.totalorder %s25, 1
      %p190 = scmp.ne.s32.totalorder %s185, %s187
      %p191 = scmp.eq.s32.totalorder %s25, 0
      %p192 = por %p190, %p191
      %p193 = scmp.ne.s32.totalorder %s185, %s187
      %p194 = scmp.eq.s32.totalorder %s30, 1
      %p195 = por %p193, %p194
      %p196 = scmp.ne.s32.totalorder %s187, %s188
      %p197 = scmp.eq.s32.totalorder %s30, 0
      %p198 = por %p196, %p197
      %p199 = scmp.ne.s32.totalorder %s187, %s188
      %p200 = scmp.eq.s32.totalorder %s31, 1
      %p201 = por %p199, %p200
      %p203 = scmp.ne.s32.totalorder %s188, %s202
      %p204 = scmp.eq.s32.totalorder %s31, 0
      %p205 = por %p203, %p204
      %s207 = sadd.s32 %s206, 1
      %p210 = scmp.eq.s32.totalorder %s25, 1
      %p211 = scmp.ne.s32.totalorder %s206, %s208
      %p212 = scmp.eq.s32.totalorder %s25, 0
      %p213 = por %p211, %p212
      %p214 = scmp.ne.s32.totalorder %s206, %s208
      %p215 = scmp.eq.s32.totalorder %s30, 1
      %p216 = por %p214, %p215
      %p217 = scmp.ne.s32.totalorder %s208, %s209
      %p218 = scmp.eq.s32.totalorder %s30, 0
      %p219 = por %p217, %p218
      %p220 = scmp.ne.s32.totalorder %s208, %s209
      %p221 = scmp.eq.s32.totalorder %s31, 1
      %p222 = por %p220, %p221
      %p224 = scmp.ne.s32.totalorder %s209, %s223
      %p225 = scmp.eq.s32.totalorder %s31, 0
      %p226 = por %p224, %p225
      %s228 = sadd.s32 %s227, 1
      %p231 = scmp.eq.s32.totalorder %s25, 1
      %p232 = scmp.ne.s32.totalorder %s227, %s229
      %p233 = scmp.eq.s32.totalorder %s25, 0
      %p234 = por %p232, %p233
      %p235 = scmp.ne.s32.totalorder %s227, %s229
      %p236 = scmp.eq.s32.totalorder %s30, 1
      %p237 = por %p235, %p236
      %p238 = scmp.ne.s32.totalorder %s229, %s230
      %p239 = scmp.eq.s32.totalorder %s30, 0
      %p240 = por %p238, %p239
      %p241 = scmp.ne.s32.totalorder %s229, %s230
      %p242 = scmp.eq.s32.totalorder %s31, 1
      %p243 = por %p241, %p242
      %p245 = scmp.ne.s32.totalorder %s230, %s244
      %p246 = scmp.eq.s32.totalorder %s31, 0
      %p247 = por %p245, %p246
      %s249 = sadd.s32 %s248, 1
      %p252 = scmp.eq.s32.totalorder %s25, 1
      %p253 = scmp.ne.s32.totalorder %s248, %s250
      %p254 = scmp.eq.s32.totalorder %s25, 0
      %p255 = por %p253, %p254
      %p256 = scmp.ne.s32.totalorder %s248, %s250
      %p257 = scmp.eq.s32.totalorder %s30, 1
      %p258 = por %p256, %p257
      %p259 = scmp.ne.s32.totalorder %s250, %s251
      %p260 = scmp.eq.s32.totalorder %s30, 0
      %p261 = por %p259, %p260
      %p262 = scmp.ne.s32.totalorder %s250, %s251
      %p263 = scmp.eq.s32.totalorder %s31, 1
      %p264 = por %p262, %p263
      %p266 = scmp.ne.s32.totalorder %s251, %s265
      %p267 = scmp.eq.s32.totalorder %s31, 0
      %p268 = por %p266, %p267
      %s270 = sadd.s32 %s269, 1
      %p273 = scmp.eq.s32.totalorder %s25, 1
      %p274 = scmp.ne.s32.totalorder %s269, %s271
      %p275 = scmp.eq.s32.totalorder %s25, 0
      %p276 = por %p274, %p275
      %p277 = scmp.ne.s32.totalorder %s269, %s271
      %p278 = scmp.eq.s32.totalorder %s30, 1
      %p279 = por %p277, %p278
      %p280 = scmp.ne.s32.totalorder %s271, %s272
      %p281 = scmp.eq.s32.totalorder %s30, 0
      %p282 = por %p280, %p281
      %p283 = scmp.ne.s32.totalorder %s271, %s272
      %p284 = scmp.eq.s32.totalorder %s31, 1
      %p285 = por %p283, %p284
      %p287 = scmp.ne.s32.totalorder %s272, %s286
      %p288 = scmp.eq.s32.totalorder %s31, 0
      %p289 = por %p287, %p288
      %s291 = sadd.s32 %s290, 1
      %p294 = scmp.eq.s32.totalorder %s25, 1
      %p295 = scmp.ne.s32.totalorder %s290, %s292
      %p296 = scmp.eq.s32.totalorder %s25, 0
      %p297 = por %p295, %p296
      %p298 = scmp.ne.s32.totalorder %s290, %s292
      %p299 = scmp.eq.s32.totalorder %s30, 1
      %p300 = por %p298, %p299
      %p301 = scmp.ne.s32.totalorder %s292, %s293
      %p302 = scmp.eq.s32.totalorder %s30, 0
      %p303 = por %p301, %p302
      %p304 = scmp.ne.s32.totalorder %s292, %s293
      %p305 = scmp.eq.s32.totalorder %s31, 1
      %p306 = por %p304, %p305
      %p308 = scmp.ne.s32.totalorder %s293, %s307
      %p309 = scmp.eq.s32.totalorder %s31, 0
      %p310 = por %p308, %p309
      %s311 = ssub.s32 %s25, %s32
      %p312 = scmp.eq.s32.totalorder %s311, 0
      %s314 = sadd.s32 %s313, 1
      %s315 = scalar_select %p312, %s313, %s314
      %p318 = pneg %p312
      %p319 = scmp.eq.s32.totalorder %s25, 1
      %p320 = por %p318, %p319
      %p321 = scmp.ne.s32.totalorder %s313, %s316
      %p322 = scmp.eq.s32.totalorder %s25, 0
      %p323 = por %p321, %p322
      %p324 = scmp.ne.s32.totalorder %s313, %s316
      %p325 = scmp.eq.s32.totalorder %s30, 1
      %p326 = por %p324, %p325
      %p327 = scmp.ne.s32.totalorder %s316, %s317
      %p328 = scmp.eq.s32.totalorder %s30, 0
      %p329 = por %p327, %p328
      %p330 = scmp.ne.s32.totalorder %s316, %s317
      %p331 = scmp.eq.s32.totalorder %s31, 1
      %p332 = por %p330, %p331
      %p334 = scmp.ne.s32.totalorder %s317, %s333
      %p335 = scmp.eq.s32.totalorder %s31, 0
      %p336 = por %p334, %p335
      %p337 = scmp.le.s32.totalorder 1, %s25
      %p338 = scmp.lt.s32.totalorder %s25, 3
      %p339 = pnand %p337, %p338
      %p340 = pneg %p339
      // Predicated region
      $region9: #{digit_cnn_forward.1} parent=5 // pred_check
        _
      $region10: #{digit_cnn_forward.1} parent=5 // pred_check_branch
        %342 = sbr.rel (%p339) target = $region12
      $region11: #{digit_cnn_forward.1} parent=5 // pred_region
        %s343 = ssub.s32 %s25, 1
        // Predicated region
        $region13: #{digit_cnn_forward.1} parent=11 // pred_check
          %p344 = pneg %p72
        $region14: #{digit_cnn_forward.1} parent=11 // pred_check_branch
          %346 = sbr.rel (%p344) target = $region16
        $region15: #{digit_cnn_forward.1} parent=11 // pred_region
          %s348 = ssub.s32 2816, 2816
          %349 = vsyncadd [#allocation3], %s348
          %s350 = sshll.u32 [#allocation2], 4
          %s351 = int_to_ptr.vmem [resolvable:$true] %s350
          %356 = dma.hbm_to_vmem [thread:$0]  %s1, 2816, %s351, [#allocation3], 256, 256, 16
        $region16: #{digit_cnn_forward.1} parent=11 // pred_fallthru
          _
        // Predicated region
        $region17: #{digit_cnn_forward.1} parent=11 // pred_check
          %p357 = pneg %p93
        $region18: #{digit_cnn_forward.1} parent=11 // pred_check_branch
          %359 = sbr.rel (%p357) target = $region20
        $region19: #{digit_cnn_forward.1} parent=11 // pred_region
          _
        $region20: #{digit_cnn_forward.1} parent=11 // pred_fallthru
          _
        // Predicated region
        $region21: #{digit_cnn_forward.1} parent=11 // pred_check
          %p360 = pneg %p114
        $region22: #{digit_cnn_forward.1} parent=11 // pred_check_branch
          %362 = sbr.rel (%p360) target = $region24
        $region23: #{digit_cnn_forward.1} parent=11 // pred_region
          %s364 = ssub.s32 7168, 7168
          %365 = vsyncadd [#allocation6], %s364
          %s366 = sshll.u32 [#allocation5], 4
          %s367 = int_to_ptr.vmem [resolvable:$true] %s366
          %372 = dma.hbm_to_vmem [thread:$0]  %s3, 7168, %s367, [#allocation6], 128, 128, 8
        $region24: #{digit_cnn_forward.1} parent=11 // pred_fallthru
          _
        // Predicated region
        $region25: #{digit_cnn_forward.1} parent=11 // pred_check
          %p373 = pneg %p135
        $region26: #{digit_cnn_forward.1} parent=11 // pred_check_branch
          %375 = sbr.rel (%p373) target = $region28
        $region27: #{digit_cnn_forward.1} parent=11 // pred_region
          %s377 = ssub.s32 7168, 7168
          %378 = vsyncadd [#allocation6], %s377
          %s379 = sshll.u32 [#allocation7], 4
          %s380 = int_to_ptr.vmem [resolvable:$true] %s379
          %385 = dma.hbm_to_vmem [thread:$0]  %s4, 7168, %s380, [#allocation6], 128, 128, 8
        $region28: #{digit_cnn_forward.1} parent=11 // pred_fallthru
          _
        // Predicated region
        $region29: #{digit_cnn_forward.1} parent=11 // pred_check
          %p386 = pneg %p156
        $region30: #{digit_cnn_forward.1} parent=11 // pred_check_branch
          %388 = sbr.rel (%p386) target = $region32
        $region31: #{digit_cnn_forward.1} parent=11 // pred_region
          _
        $region32: #{digit_cnn_forward.1} parent=11 // pred_fallthru
          _
        // Predicated region
        $region33: #{digit_cnn_forward.1} parent=11 // pred_check
          %p389 = pneg %p177
        $region34: #{digit_cnn_forward.1} parent=11 // pred_check_branch
          %391 = sbr.rel (%p389) target = $region36
        $region35: #{digit_cnn_forward.1} parent=11 // pred_region
          _
        $region36: #{digit_cnn_forward.1} parent=11 // pred_fallthru
          _
        // Predicated region
        $region37: #{digit_cnn_forward.1} parent=11 // pred_check
          %p392 = pneg %p198
        $region38: #{digit_cnn_forward.1} parent=11 // pred_check_branch
          %394 = sbr.rel (%p392) target = $region40
        $region39: #{digit_cnn_forward.1} parent=11 // pred_region
          %s396 = ssub.s32 7168, 7168
          %397 = vsyncadd [#allocation9], %s396
          %s398 = sshll.u32 [#allocation8], 4
          %s399 = int_to_ptr.vmem [resolvable:$true] %s398
          %404 = dma.hbm_to_vmem [thread:$0]  %s7, 7168, %s399, [#allocation9], 128, 128, 8
        $region40: #{digit_cnn_forward.1} parent=11 // pred_fallthru
          _
        // Predicated region
        $region41: #{digit_cnn_forward.1} parent=11 // pred_check
          %p405 = pneg %p219
        $region42: #{digit_cnn_forward.1} parent=11 // pred_check_branch
          %407 = sbr.rel (%p405) target = $region44
        $region43: #{digit_cnn_forward.1} parent=11 // pred_region
          %s409 = ssub.s32 7168, 7168
          %410 = vsyncadd [#allocation9], %s409
          %s411 = sshll.u32 [#allocation10], 4
          %s412 = int_to_ptr.vmem [resolvable:$true] %s411
          %417 = dma.hbm_to_vmem [thread:$0]  %s8, 7168, %s412, [#allocation9], 128, 128, 8
        $region44: #{digit_cnn_forward.1} parent=11 // pred_fallthru
          _
        // Predicated region
        $region45: #{digit_cnn_forward.1} parent=11 // pred_check
          %p418 = pneg %p240
        $region46: #{digit_cnn_forward.1} parent=11 // pred_check_branch
          %420 = sbr.rel (%p418) target = $region48
        $region47: #{digit_cnn_forward.1} parent=11 // pred_region
          _
        $region48: #{digit_cnn_forward.1} parent=11 // pred_fallthru
          _
        // Predicated region
        $region49: #{digit_cnn_forward.1} parent=11 // pred_check
          %p421 = pneg %p261
        $region50: #{digit_cnn_forward.1} parent=11 // pred_check_branch
          %423 = sbr.rel (%p421) target = $region52
        $region51: #{digit_cnn_forward.1} parent=11 // pred_region
          _
        $region52: #{digit_cnn_forward.1} parent=11 // pred_fallthru
          _
        // Predicated region
        $region53: #{digit_cnn_forward.1} parent=11 // pred_check
          %p424 = pneg %p282
        $region54: #{digit_cnn_forward.1} parent=11 // pred_check_branch
          %426 = sbr.rel (%p424) target = $region56
        $region55: #{digit_cnn_forward.1} parent=11 // pred_region
          _
        $region56: #{digit_cnn_forward.1} parent=11 // pred_fallthru
          _
        // Predicated region
        $region57: #{digit_cnn_forward.1} parent=11 // pred_check
          %p427 = pneg %p303
        $region58: #{digit_cnn_forward.1} parent=11 // pred_check_branch
          %429 = sbr.rel (%p427) target = $region60
        $region59: #{digit_cnn_forward.1} parent=11 // pred_region
          _
        $region60: #{digit_cnn_forward.1} parent=11 // pred_fallthru
          _
      $region12: #{digit_cnn_forward.1} parent=5 // pred_fallthru
        _
      %p430 = scmp.lt.s32.totalorder %s25, 2
      // Predicated region
      $region61: #{digit_cnn_forward.1} parent=5 // pred_check
        %p431 = pneg %p430
      $region62: #{digit_cnn_forward.1} parent=5 // pred_check_branch
        %433 = sbr.rel (%p431) target = $region64
      $region63: #{digit_cnn_forward.1} parent=5 // pred_region
        // Predicated region
        $region65: #{digit_cnn_forward.1} parent=63 // pred_check
          %p434 = pneg %p45
        $region66: #{digit_cnn_forward.1} parent=63 // pred_check_branch
          %436 = sbr.rel (%p434) target = $region68
        $region67: #{digit_cnn_forward.1} parent=63 // pred_region
          %p437 = scmp.lt.s32.totalorder %s25, 1
          %s438 = scalar_select %p437, %s25, 1
          %s439 = smul.addr %s438, 4
          %s440 = smul.addr %s439, 4
          %s441 = scalar_lea.vmem %s0, %s440
        $region68: #{digit_cnn_forward.1} parent=63 // pred_fallthru
          _
      $region64: #{digit_cnn_forward.1} parent=5 // pred_fallthru
        _
      %p442 = scmp.le.s32.totalorder 1, %s25
      %p443 = scmp.lt.s32.totalorder %s25, 3
      %p444 = pnand %p442, %p443
      %p445 = pneg %p444
      // Predicated region
      $region69: #{digit_cnn_forward.1} parent=5 // pred_check
        _
      $region70: #{digit_cnn_forward.1} parent=5 // pred_check_branch
        %447 = sbr.rel (%p444) target = $region72
      $region71: #{digit_cnn_forward.1} parent=5 // pred_region
        %s448 = ssub.s32 %s25, 1
        // Predicated region
        $region73: #{digit_cnn_forward.1} parent=71 // pred_check
          %p449 = pneg %p72
        $region74: #{digit_cnn_forward.1} parent=71 // pred_check_branch
          %451 = sbr.rel (%p449) target = $region76
        $region75: #{digit_cnn_forward.1} parent=71 // pred_region
          %452 = dma.done [#allocation3], 2816
        $region76: #{digit_cnn_forward.1} parent=71 // pred_fallthru
          _
        // Predicated region
        $region77: #{digit_cnn_forward.1} parent=71 // pred_check
          %p453 = pneg %p114
        $region78: #{digit_cnn_forward.1} parent=71 // pred_check_branch
          %455 = sbr.rel (%p453) target = $region80
        $region79: #{digit_cnn_forward.1} parent=71 // pred_region
          %456 = dma.done [#allocation6], 7168
        $region80: #{digit_cnn_forward.1} parent=71 // pred_fallthru
          _
        // Predicated region
        $region81: #{digit_cnn_forward.1} parent=71 // pred_check
          %p457 = pneg %p135
        $region82: #{digit_cnn_forward.1} parent=71 // pred_check_branch
          %459 = sbr.rel (%p457) target = $region84
        $region83: #{digit_cnn_forward.1} parent=71 // pred_region
          %460 = dma.done [#allocation6], 7168
        $region84: #{digit_cnn_forward.1} parent=71 // pred_fallthru
          _
        // Predicated region
        $region85: #{digit_cnn_forward.1} parent=71 // pred_check
          %p461 = pneg %p198
        $region86: #{digit_cnn_forward.1} parent=71 // pred_check_branch
          %463 = sbr.rel (%p461) target = $region88
        $region87: #{digit_cnn_forward.1} parent=71 // pred_region
          %464 = dma.done [#allocation9], 7168
        $region88: #{digit_cnn_forward.1} parent=71 // pred_fallthru
          _
        // Predicated region
        $region89: #{digit_cnn_forward.1} parent=71 // pred_check
          %p465 = pneg %p219
        $region90: #{digit_cnn_forward.1} parent=71 // pred_check_branch
          %467 = sbr.rel (%p465) target = $region92
        $region91: #{digit_cnn_forward.1} parent=71 // pred_region
          %468 = dma.done [#allocation9], 7168
        $region92: #{digit_cnn_forward.1} parent=71 // pred_fallthru
          _
        %p469 = scmp.lt.s32.totalorder %s30, 1
        %s470 = scalar_select %p469, %s30, 1
        %s471 = smul.addr %s470, 4
        %s472 = smul.addr %s471, 4
        %s473 = scalar_lea.vmem %s0, %s472
        %p474 = pneg %p51
        %p475 = pneg %p48
        %p476 = pneg %p72
        %p477 = pneg %p69
        %p478 = pneg %p93
        %p479 = pneg %p90
        %p480 = pneg %p114
        %p481 = pneg %p111
        %p482 = pneg %p135
        %p483 = pneg %p132
        %p484 = pneg %p156
        %p485 = pneg %p153
        %p486 = pneg %p177
        %p487 = pneg %p174
        %p488 = pneg %p198
        %p489 = pneg %p195
        %p490 = pneg %p219
        %p491 = pneg %p216
        %p492 = pneg %p240
        %p493 = pneg %p237
        %p494 = pneg %p261
        %p495 = pneg %p258
        %p496 = pneg %p282
        %p497 = pneg %p279
        %p498 = pneg %p303
        %p499 = pneg %p300
        %p500 = pneg %p329
        %p501 = pneg %p326
        %s502 = sand.u32 %s316, 1
        %s503 = scalar_lea.sflag [#allocation4], %s502
        %s504 = sand.u32 %s316, 1
        %s505 = scalar_lea.vmem [#allocation11], %s504
        %p506 = scmp.lt.s32.totalorder %s30, 1
        %s507 = scalar_select %p506, %s30, 1
        %s508 = smul.addr %s507, 4
        %s509 = smul.addr %s508, 4
        %s510 = scalar_lea.vmem %s0, %s509
        %v512 = vld [vmem:[%s510] sm:$0xf]
        %v513 = vld [vmem:[%s510 + $0x4] sm:$0xf]
        %v514 = vld [vmem:[%s510 + $0x8] sm:$0xf]
        %v515 = vld [vmem:[%s510 + $0xc] sm:$0x3]
        %v520 = vunpack.c.l.b16 %v512
        %v521 = vunpack.c.l.b16 %v513
        %v522 = vunpack.c.l.b16 %v514
        %v523 = vunpack.c.l.b16 %v515
        %v524 = vpack.c.b16 %v521, %v520
        %v525 = vpack.c.b16 %v523, %v522
        %vm526 = vsmask.f32 256
        %v528 = vshrl.u32 %v524, 16
        %v530 = vrot.slane %v528, 7
        %v531 = vshll.u32 %v524, 16
        %v533 = vor.u32 %v530, %v531
        %v535 = vshrl.u32 %v525, 16
        %v537 = vrot.slane %v535, 7
        %v538 = vshll.u32 %v525, 16
        %v540 = vor.u32 %v537, %v538
        %v541 = vsel %vm526, %v530, %v540
        %vm544 = vcmask 1040384
        %vm545 = vmand %vm544, %vm526
        %v546 = vsel %vm545, 0, %v533
        %vm547 = vcmask 1046528
        %vm548 = vsmask.f32 6400
        %vm549 = vmand %vm547, %vm548
        %v550 = vsel %vm549, %v541, 0
        %vm551 = vsmask.f32 7424
        %v553 = vshrl.u32 %v546, 16
        %v555 = vshll.u32 %v546, 16
        %v557 = vrot.slane %v555, 1
        %v558 = vor.u32 %v553, %v557
        %v560 = vshll.u32 %v550, 16
        %v562 = vrot.slane %v560, 1
        %v563 = vsel %vm551, %v558, %v562
        %v564 = vshrl.u32 %v550, 16
        %v566 = vor.u32 %v564, %v562
        %567 = vrot.lane.b32.xlu0 %v563, 28
        %v568 = vpop.permute.xlu0 %567
        %569 = vrot.lane.b32.xlu0 %v566, 28
        %v570 = vpop.permute.xlu0 %569
        %v573 = vrot.slane %v546, 1
        %v574 = vrot.slane %v550, 1
        %v575 = vsel %vm547, %v573, %v574
        %576 = vrot.lane.b32.xlu0 %v575, 56
        %v577 = vpop.permute.xlu0 %576
        %578 = vrot.lane.b32.xlu0 %v574, 56
        %v579 = vpop.permute.xlu0 %578
        %vm580 = vcmask 228352
        %v582 = vsel %vm580, %v546, %v568
        %v584 = vsel %vm580, %v550, %v570
        %vm585 = vcmask 457728
        %v587 = vsel %vm585, %v582, %v577
        %v589 = vsel %vm585, %v584, %v579
        %v590 = vld [vmem:[#allocation2] sm:$0xff]
        %v591 = vld [vmem:[#allocation2 + $0x8] sm:$0xff]
        %v592 = vld [vmem:[#allocation2 + $0x10] sm:$0xff]
        %v593 = vld [vmem:[#allocation2 + $0x18] sm:$0xff]
        %v594 = vld [vmem:[#allocation2 + $0x20] sm:$0xff]
        %v595 = vld [vmem:[#allocation2 + $0x28] sm:$0xff]
        %v596 = vld [vmem:[#allocation2 + $0x30] sm:$0xff]
        %v597 = vld [vmem:[#allocation2 + $0x38] sm:$0xff]
        %v598 = vld [vmem:[#allocation2 + $0x40] sm:$0xff]
        %v599 = vld [vmem:[#allocation2 + $0x48] sm:$0xff]
        %v600 = vld [vmem:[#allocation2 + $0x50] sm:$0xff]
        %v601 = vld [vmem:[#allocation2 + $0x58] sm:$0xff]
        %v602 = vld [vmem:[#allocation2 + $0x60] sm:$0xff]
        %v603 = vld [vmem:[#allocation2 + $0x68] sm:$0xff]
        %v604 = vld [vmem:[#allocation2 + $0x70] sm:$0xff]
        %v605 = vld [vmem:[#allocation2 + $0x78] sm:$0xff]
        %v606 = vld [vmem:[#allocation2 + $0x80] sm:$0xff]
        %v607 = vld [vmem:[#allocation2 + $0x88] sm:$0xff]
        %v608 = vld [vmem:[#allocation2 + $0x90] sm:$0xff]
        %v609 = vld [vmem:[#allocation2 + $0x98] sm:$0xff]
        %v610 = vld [vmem:[#allocation2 + $0xa0] sm:$0x33]
        %v611 = vld [vmem:[#allocation2 + $0xa8] sm:$0x33]
        %v612 = vld [vmem:[%s2] sm:$0xf]
        %v614 = vlaneseq
        %v615 = vshrl.u32 %v614, 7
        %v616 = vsub.s32 0, %v615
        %v617 = vrot.slane %v612, %v616
        %v618 = vlaneseq
        %v619 = vshrl.u32 %v618, 7
        %v620 = vsub.s32 1, %v619
        %v621 = vrot.slane %v612, %v620
        %v622 = vlaneseq
        %v623 = vshrl.u32 %v622, 7
        %v624 = vsub.s32 2, %v623
        %v625 = vrot.slane %v612, %v624
        %v626 = vlaneseq
        %v627 = vshrl.u32 %v626, 7
        %v628 = vsub.s32 3, %v627
        %v629 = vrot.slane %v612, %v628
        %v656 = vunpack.c.l.b16 %v590
        %v657 = vunpack.c.h.b16 %v590
        %v658 = vunpack.c.l.b16 %v591
        %v659 = vunpack.c.h.b16 %v591
        %v660 = vunpack.c.l.b16 %v592
        %v661 = vunpack.c.h.b16 %v592
        %v662 = vunpack.c.l.b16 %v593
        %v663 = vunpack.c.h.b16 %v593
        %v664 = vunpack.c.l.b16 %v594
        %v665 = vunpack.c.h.b16 %v594
        %v666 = vunpack.c.l.b16 %v595
        %v667 = vunpack.c.h.b16 %v595
        %v668 = vunpack.c.l.b16 %v596
        %v669 = vunpack.c.h.b16 %v596
        %v670 = vunpack.c.l.b16 %v597
        %v671 = vunpack.c.h.b16 %v597
        %v672 = vunpack.c.l.b16 %v598
        %v673 = vunpack.c.h.b16 %v598
        %v674 = vunpack.c.l.b16 %v599
        %v675 = vunpack.c.h.b16 %v599
        %v676 = vunpack.c.l.b16 %v600
        %v677 = vunpack.c.h.b16 %v600
        %v678 = vunpack.c.l.b16 %v601
        %v679 = vunpack.c.h.b16 %v601
        %v680 = vunpack.c.l.b16 %v602
        %v681 = vunpack.c.h.b16 %v602
        %v682 = vunpack.c.l.b16 %v603
        %v683 = vunpack.c.h.b16 %v603
        %v684 = vunpack.c.l.b16 %v604
        %v685 = vunpack.c.h.b16 %v604
        %v686 = vunpack.c.l.b16 %v605
        %v687 = vunpack.c.h.b16 %v605
        %v688 = vunpack.c.l.b16 %v606
        %v689 = vunpack.c.h.b16 %v606
        %v690 = vunpack.c.l.b16 %v607
        %v691 = vunpack.c.h.b16 %v607
        %v692 = vunpack.c.l.b16 %v608
        %v693 = vunpack.c.h.b16 %v608
        %v694 = vunpack.c.l.b16 %v609
        %v695 = vunpack.c.h.b16 %v609
        %v696 = vunpack.c.l.b16 %v610
        %v697 = vunpack.c.h.b16 %v610
        %v698 = vunpack.c.l.b16 %v611
        %v699 = vunpack.c.h.b16 %v611
        %v700 = vpack.c.b16 %v660, %v656
        %v701 = vpack.c.b16 %v661, %v657
        %v702 = vpack.c.b16 %v662, %v658
        %v703 = vpack.c.b16 %v663, %v659
        %v704 = vpack.c.b16 %v668, %v664
        %v705 = vpack.c.b16 %v669, %v665
        %v706 = vpack.c.b16 %v670, %v666
        %v707 = vpack.c.b16 %v671, %v667
        %v708 = vpack.c.b16 %v676, %v672
        %v709 = vpack.c.b16 %v677, %v673
        %v710 = vpack.c.b16 %v678, %v674
        %v711 = vpack.c.b16 %v679, %v675
        %v712 = vpack.c.b16 %v684, %v680
        %v713 = vpack.c.b16 %v685, %v681
        %v714 = vpack.c.b16 %v686, %v682
        %v715 = vpack.c.b16 %v687, %v683
        %v716 = vpack.c.b16 %v692, %v688
        %v717 = vpack.c.b16 %v693, %v689
        %v718 = vpack.c.b16 %v694, %v690
        %v719 = vpack.c.b16 %v695, %v691
        %v720 = vpack.c.b16 %v696, %v696
        %v721 = vpack.c.b16 %v697, %v697
        %v722 = vpack.c.b16 %v698, %v698
        %v723 = vpack.c.b16 %v699, %v699
        %vm744 = vcmask 687104
        %v745 = vsel %vm744, %v587, 0
        %v747 = vsel %vm744, %v589, 0
        %vm749 = vcmask 1041408
        %v751 = vsel %vm749, %v720, 0
        %v754 = vsel %vm749, %v721, 0
        %v757 = vsel %vm749, %v722, 0
        %v760 = vsel %vm749, %v723, 0
        %762 = vmatprep.subr.bf16.mxu0 %v701
        %763 = vmatpush1.bf16.msra.mxu0 %v700
        %764 = vmatprep.subr.bf16.mxu0 %v705
        %765 = vmatpush1.bf16.msra.mxu0 %v704
        %766 = vmatprep.subr.bf16.mxu0 %v709
        %767 = vmatpush1.bf16.msra.mxu0 %v708
        %768 = vmatprep.subr.bf16.mxu0 %v713
        %769 = vmatpush1.bf16.msra.mxu0 %v712
        %770 = vmatprep.subr.bf16.mxu0 %v717
        %771 = vmatpush1.bf16.msra.mxu0 %v716
        %772 = vmatprep.subr.bf16.mxu0 %v754
        %773 = vmatpush1.bf16.msra.mxu0 %v751
        %774 = vmatprep.subr.bf16.mxu0 0
        %775 = vmatpush1.bf16.msra.mxu0 0
        %776 = vmatprep.subr.bf16.mxu0 0
        %777 = vmatpush1.bf16.msra.mxu0 0
        %778 = vmatprep.subr.bf16.mxu0 0
        %779 = vmatpush1.bf16.msra.mxu0 0
        %780 = vmatprep.subr.bf16.mxu0 0
        %781 = vmatpush1.bf16.msra.mxu0 0
        %782 = vmatprep.subr.bf16.mxu0 0
        %783 = vmatpush1.bf16.msra.mxu0 0
        %784 = vmatprep.subr.bf16.mxu0 0
        %785 = vmatpush1.bf16.msra.mxu0 0
        %786 = vmatprep.subr.bf16.mxu0 0
        %787 = vmatpush1.bf16.msra.mxu0 0
        %788 = vmatprep.subr.bf16.mxu0 0
        %789 = vmatpush1.bf16.msra.mxu0 0
        %790 = vmatprep.subr.bf16.mxu0 0
        %791 = vmatpush1.bf16.msra.mxu0 0
        %792 = vmatprep.subr.bf16.mxu0 0
        %793 = vmatpush1.bf16.msra.mxu0 0
        %794 = vmatprep.mubr.bf16.mxu0 0
        %795 = vmatmul.mubr.bf16.gmra.mrb[0].mxu0 %v745
        %v796 = vpop.f32.mrb[0].mxu0
        %v797 = vadd.f32 %v617, %v796
        %v798 = vpop.f32.mrb[0].mxu0
        %v799 = vadd.f32 %v621, %v798
        %v800 = vpop.f32.mrb[0].mxu0
        %v801 = vadd.f32 %v617, %v800
        %v802 = vpop.f32.mrb[0].mxu0
        %v803 = vadd.f32 %v621, %v802
        %804 = vmatprep.mubr.bf16.mxu0 0
        %805 = vmatmul.mubr.bf16.gmra.mrb[0].mxu0 %v747
        %v806 = vpop.f32.mrb[0].mxu0
        %v807 = vadd.f32 %v617, %v806
        %v808 = vpop.f32.mrb[0].mxu0
        %v809 = vadd.f32 %v621, %v808
        %v810 = vpop.f32.mrb[0].mxu0
        %v811 = vadd.f32 %v617, %v810
        %v812 = vpop.f32.mrb[0].mxu0
        %v813 = vadd.f32 %v621, %v812
        %814 = vdwg.mxu0
        %815 = vmatprep.subr.bf16.mxu0 %v703
        %816 = vmatpush1.bf16.msra.mxu0 %v702
        %817 = vmatprep.subr.bf16.mxu0 %v707
        %818 = vmatpush1.bf16.msra.mxu0 %v706
        %819 = vmatprep.subr.bf16.mxu0 %v711
        %820 = vmatpush1.bf16.msra.mxu0 %v710
        %821 = vmatprep.subr.bf16.mxu0 %v715
        %822 = vmatpush1.bf16.msra.mxu0 %v714
        %823 = vmatprep.subr.bf16.mxu0 %v719
        %824 = vmatpush1.bf16.msra.mxu0 %v718
        %825 = vmatprep.subr.bf16.mxu0 %v760
        %826 = vmatpush1.bf16.msra.mxu0 %v757
        %827 = vmatprep.subr.bf16.mxu0 0
        %828 = vmatpush1.bf16.msra.mxu0 0
        %829 = vmatprep.subr.bf16.mxu0 0
        %830 = vmatpush1.bf16.msra.mxu0 0
        %831 = vmatprep.subr.bf16.mxu0 0
        %832 = vmatpush1.bf16.msra.mxu0 0
        %833 = vmatprep.subr.bf16.mxu0 0
        %834 = vmatpush1.bf16.msra.mxu0 0
        %835 = vmatprep.subr.bf16.mxu0 0
        %836 = vmatpush1.bf16.msra.mxu0 0
        %837 = vmatprep.subr.bf16.mxu0 0
        %838 = vmatpush1.bf16.msra.mxu0 0
        %839 = vmatprep.subr.bf16.mxu0 0
        %840 = vmatpush1.bf16.msra.mxu0 0
        %841 = vmatprep.subr.bf16.mxu0 0
        %842 = vmatpush1.bf16.msra.mxu0 0
        %843 = vmatprep.subr.bf16.mxu0 0
        %844 = vmatpush1.bf16.msra.mxu0 0
        %845 = vmatprep.subr.bf16.mxu0 0
        %846 = vmatpush1.bf16.msra.mxu0 0
        %847 = vmatprep.mubr.bf16.mxu0 0
        %848 = vmatmul.mubr.bf16.gmra.mrb[0].mxu0 %v745
        %v849 = vpop.f32.mrb[0].mxu0
        %v850 = vadd.f32 %v625, %v849
        %v851 = vpop.f32.mrb[0].mxu0
        %v852 = vadd.f32 %v629, %v851
        %v853 = vpop.f32.mrb[0].mxu0
        %v854 = vadd.f32 %v625, %v853
        %v855 = vpop.f32.mrb[0].mxu0
        %v856 = vadd.f32 %v629, %v855
        %857 = vmatprep.mubr.bf16.mxu0 0
        %858 = vmatmul.mubr.bf16.gmra.mrb[0].mxu0 %v747
        %v859 = vpop.f32.mrb[0].mxu0
        %v860 = vadd.f32 %v625, %v859
        %v861 = vpop.f32.mrb[0].mxu0
        %v862 = vadd.f32 %v629, %v861
        %v863 = vpop.f32.mrb[0].mxu0
        %v864 = vadd.f32 %v625, %v863
        %v865 = vpop.f32.mrb[0].mxu0
        %v866 = vadd.f32 %v629, %v865
        %867 = vdwg.mxu0
        %v868 = vmax.f32 %v797, 0.0
        %v869 = vmax.f32 %v799, 0.0
        %v870 = vmax.f32 %v850, 0.0
        %v871 = vmax.f32 %v852, 0.0
        %v872 = vmax.f32 %v801, 0.0
        %v873 = vmax.f32 %v803, 0.0
        %v874 = vmax.f32 %v854, 0.0
        %v875 = vmax.f32 %v856, 0.0
        %v876 = vmax.f32 %v807, 0.0
        %v877 = vmax.f32 %v809, 0.0
        %v878 = vmax.f32 %v860, 0.0
        %v879 = vmax.f32 %v862, 0.0
        %v880 = vmax.f32 %v811, 0.0
        %v881 = vmax.f32 %v813, 0.0
        %v882 = vmax.f32 %v864, 0.0
        %v883 = vmax.f32 %v866, 0.0
        %v900 = vcombine.low %v868, %v869
        %v901 = vcombine.high %v868, %v869
        %v902 = vcombine.low %v870, %v871
        %v903 = vcombine.high %v870, %v871
        %v905 = vunpack.c.l.s4 1983009808
        %v906 = vunpack.c.0.s8 %v905
        %v907 = vlaneseq
        %v908 = vshrl.u32 %v907, 7
        %v909 = vsub.s32 %v906, %v908
        %v910 = vrot.slane %v900, %v909
        %v912 = vunpack.c.l.s4 1983009808
        %v913 = vunpack.c.0.s8 %v912
        %v914 = vlaneseq
        %v915 = vshrl.u32 %v914, 7
        %v916 = vsub.s32 %v913, %v915
        %v917 = vrot.slane %v901, %v916
        %v919 = vunpack.c.l.s4 1983009808
        %v920 = vunpack.c.0.s8 %v919
        %v921 = vlaneseq
        %v922 = vshrl.u32 %v921, 7
        %v923 = vsub.s32 %v920, %v922
        %v924 = vrot.slane %v902, %v923
        %v926 = vunpack.c.l.s4 1983009808
        %v927 = vunpack.c.0.s8 %v926
        %v928 = vlaneseq
        %v929 = vshrl.u32 %v928, 7
        %v930 = vsub.s32 %v927, %v929
        %v931 = vrot.slane %v903, %v930
        %v932 = vcombine.low %v910, %v924
        %v933 = vcombine.high %v910, %v924
        %v934 = vcombine.low %v917, %v931
        %v935 = vcombine.high %v917, %v931
        %v936 = vcombine.low %v872, %v873
        %v937 = vcombine.high %v872, %v873
        %v938 = vcombine.low %v874, %v875
        %v939 = vcombine.high %v874, %v875
        %v941 = vunpack.c.l.s4 1983009808
        %v942 = vunpack.c.0.s8 %v941
        %v943 = vlaneseq
        %v944 = vshrl.u32 %v943, 7
        %v945 = vsub.s32 %v942, %v944
        %v946 = vrot.slane %v936, %v945
        %v948 = vunpack.c.l.s4 1983009808
        %v949 = vunpack.c.0.s8 %v948
        %v950 = vlaneseq
        %v951 = vshrl.u32 %v950, 7
        %v952 = vsub.s32 %v949, %v951
        %v953 = vrot.slane %v937, %v952
        %v955 = vunpack.c.l.s4 1983009808
        %v956 = vunpack.c.0.s8 %v955
        %v957 = vlaneseq
        %v958 = vshrl.u32 %v957, 7
        %v959 = vsub.s32 %v956, %v958
        %v960 = vrot.slane %v938, %v959
        %v962 = vunpack.c.l.s4 1983009808
        %v963 = vunpack.c.0.s8 %v962
        %v964 = vlaneseq
        %v965 = vshrl.u32 %v964, 7
        %v966 = vsub.s32 %v963, %v965
        %v967 = vrot.slane %v939, %v966
        %v968 = vcombine.low %v946, %v960
        %v969 = vcombine.high %v946, %v960
        %v970 = vcombine.low %v953, %v967
        %v971 = vcombine.high %v953, %v967
        %v972 = vcombine.low %v876, %v877
        %v973 = vcombine.high %v876, %v877
        %v974 = vcombine.low %v878, %v879
        %v975 = vcombine.high %v878, %v879
        %v977 = vunpack.c.l.s4 1983009808
        %v978 = vunpack.c.0.s8 %v977
        %v979 = vlaneseq
        %v980 = vshrl.u32 %v979, 7
        %v981 = vsub.s32 %v978, %v980
        %v982 = vrot.slane %v972, %v981
        %v984 = vunpack.c.l.s4 1983009808
        %v985 = vunpack.c.0.s8 %v984
        %v986 = vlaneseq
        %v987 = vshrl.u32 %v986, 7
        %v988 = vsub.s32 %v985, %v987
        %v989 = vrot.slane %v973, %v988
        %v991 = vunpack.c.l.s4 1983009808
        %v992 = vunpack.c.0.s8 %v991
        %v993 = vlaneseq
        %v994 = vshrl.u32 %v993, 7
        %v995 = vsub.s32 %v992, %v994
        %v996 = vrot.slane %v974, %v995
        %v998 = vunpack.c.l.s4 1983009808
        %v999 = vunpack.c.0.s8 %v998
        %v1000 = vlaneseq
        %v1001 = vshrl.u32 %v1000, 7
        %v1002 = vsub.s32 %v999, %v1001
        %v1003 = vrot.slane %v975, %v1002
        %v1004 = vcombine.low %v982, %v996
        %v1005 = vcombine.high %v982, %v996
        %v1006 = vcombine.low %v989, %v1003
        %v1007 = vcombine.high %v989, %v1003
        %v1008 = vcombine.low %v880, %v881
        %v1009 = vcombine.low %v882, %v883
        %v1011 = vunpack.c.l.s4 1983009808
        %v1012 = vunpack.c.0.s8 %v1011
        %v1013 = vlaneseq
        %v1014 = vshrl.u32 %v1013, 7
        %v1015 = vsub.s32 %v1012, %v1014
        %v1016 = vrot.slane %v1008, %v1015
        %v1018 = vunpack.c.l.s4 1983009808
        %v1019 = vunpack.c.0.s8 %v1018
        %v1020 = vlaneseq
        %v1021 = vshrl.u32 %v1020, 7
        %v1022 = vsub.s32 %v1019, %v1021
        %v1023 = vrot.slane %v1009, %v1022
        %v1024 = vcombine.low %v1016, %v1023
        %v1025 = vcombine.high %v1016, %v1023
        %v1040 = vrot.slane %v932, 7
        %v1041 = vrot.slane %v1040, 2
        %v1042 = vrot.slane %v933, 7
        %v1043 = vrot.slane %v1042, 2
        %v1044 = vrot.slane %v934, 7
        %v1045 = vrot.slane %v1044, 2
        %v1046 = vrot.slane %v935, 7
        %v1047 = vrot.slane %v1046, 2
        %v1048 = vrot.slane %v968, 7
        %v1049 = vrot.slane %v1048, 2
        %v1050 = vrot.slane %v969, 7
        %v1051 = vrot.slane %v1050, 2
        %v1052 = vrot.slane %v970, 7
        %v1053 = vrot.slane %v1052, 2
        %v1054 = vrot.slane %v971, 7
        %v1055 = vrot.slane %v1054, 2
        %v1056 = vrot.slane %v1004, 7
        %v1057 = vrot.slane %v1056, 2
        %v1058 = vrot.slane %v1005, 7
        %v1059 = vrot.slane %v1058, 2
        %v1060 = vrot.slane %v1006, 7
        %v1061 = vrot.slane %v1060, 2
        %v1062 = vrot.slane %v1007, 7
        %v1063 = vrot.slane %v1062, 2
        %v1064 = vrot.slane %v1024, 7
        %v1065 = vrot.slane %v1064, 2
        %v1066 = vrot.slane %v1025, 7
        %v1067 = vrot.slane %v1066, 2
        %v1082 = vmax.f32 %v932, %v1041
        %v1083 = vmax.f32 %v933, %v1043
        %v1084 = vmax.f32 %v934, %v1045
        %v1085 = vmax.f32 %v935, %v1047
        %v1086 = vmax.f32 %v968, %v1049
        %v1087 = vmax.f32 %v969, %v1051
        %v1088 = vmax.f32 %v970, %v1053
        %v1089 = vmax.f32 %v971, %v1055
        %v1090 = vmax.f32 %v1004, %v1057
        %v1091 = vmax.f32 %v1005, %v1059
        %v1092 = vmax.f32 %v1006, %v1061
        %v1093 = vmax.f32 %v1007, %v1063
        %v1094 = vmax.f32 %v1024, %v1065
        %v1095 = vmax.f32 %v1025, %v1067
        %v1110 = vlaneseq
        %v1111 = vshrl.u32 %v1110, 7
        %v1112 = vsub.s32 0, %v1111
        %v1113 = vrot.slane %v1082, %v1112
        %v1114 = vlaneseq
        %v1115 = vshrl.u32 %v1114, 7
        %v1116 = vsub.s32 2, %v1115
        %v1117 = vrot.slane %v1082, %v1116
        %v1118 = vlaneseq
        %v1119 = vshrl.u32 %v1118, 7
        %v1120 = vsub.s32 4, %v1119
        %v1121 = vrot.slane %v1082, %v1120
        %v1122 = vlaneseq
        %v1123 = vshrl.u32 %v1122, 7
        %v1124 = vsub.s32 6, %v1123
        %v1125 = vrot.slane %v1082, %v1124
        %v1126 = vlaneseq
        %v1127 = vshrl.u32 %v1126, 7
        %v1128 = vsub.s32 0, %v1127
        %v1129 = vrot.slane %v1083, %v1128
        %v1130 = vlaneseq
        %v1131 = vshrl.u32 %v1130, 7
        %v1132 = vsub.s32 2, %v1131
        %v1133 = vrot.slane %v1083, %v1132
        %v1134 = vlaneseq
        %v1135 = vshrl.u32 %v1134, 7
        %v1136 = vsub.s32 4, %v1135
        %v1137 = vrot.slane %v1083, %v1136
        %v1138 = vlaneseq
        %v1139 = vshrl.u32 %v1138, 7
        %v1140 = vsub.s32 6, %v1139
        %v1141 = vrot.slane %v1083, %v1140
        %v1142 = vlaneseq
        %v1143 = vshrl.u32 %v1142, 7
        %v1144 = vsub.s32 0, %v1143
        %v1145 = vrot.slane %v1084, %v1144
        %v1146 = vlaneseq
        %v1147 = vshrl.u32 %v1146, 7
        %v1148 = vsub.s32 2, %v1147
        %v1149 = vrot.slane %v1084, %v1148
        %v1150 = vlaneseq
        %v1151 = vshrl.u32 %v1150, 7
        %v1152 = vsub.s32 4, %v1151
        %v1153 = vrot.slane %v1084, %v1152
        %v1154 = vlaneseq
        %v1155 = vshrl.u32 %v1154, 7
        %v1156 = vsub.s32 6, %v1155
        %v1157 = vrot.slane %v1084, %v1156
        %v1158 = vlaneseq
        %v1159 = vshrl.u32 %v1158, 7
        %v1160 = vsub.s32 0, %v1159
        %v1161 = vrot.slane %v1085, %v1160
        %v1162 = vlaneseq
        %v1163 = vshrl.u32 %v1162, 7
        %v1164 = vsub.s32 2, %v1163
        %v1165 = vrot.slane %v1085, %v1164
        %v1166 = vlaneseq
        %v1167 = vshrl.u32 %v1166, 7
        %v1168 = vsub.s32 4, %v1167
        %v1169 = vrot.slane %v1085, %v1168
        %v1170 = vlaneseq
        %v1171 = vshrl.u32 %v1170, 7
        %v1172 = vsub.s32 6, %v1171
        %v1173 = vrot.slane %v1085, %v1172
        %v1174 = vlaneseq
        %v1175 = vshrl.u32 %v1174, 7
        %v1176 = vsub.s32 0, %v1175
        %v1177 = vrot.slane %v1086, %v1176
        %v1178 = vlaneseq
        %v1179 = vshrl.u32 %v1178, 7
        %v1180 = vsub.s32 2, %v1179
        %v1181 = vrot.slane %v1086, %v1180
        %v1182 = vlaneseq
        %v1183 = vshrl.u32 %v1182, 7
        %v1184 = vsub.s32 4, %v1183
        %v1185 = vrot.slane %v1086, %v1184
        %v1186 = vlaneseq
        %v1187 = vshrl.u32 %v1186, 7
        %v1188 = vsub.s32 6, %v1187
        %v1189 = vrot.slane %v1086, %v1188
        %v1190 = vlaneseq
        %v1191 = vshrl.u32 %v1190, 7
        %v1192 = vsub.s32 0, %v1191
        %v1193 = vrot.slane %v1087, %v1192
        %v1194 = vlaneseq
        %v1195 = vshrl.u32 %v1194, 7
        %v1196 = vsub.s32 2, %v1195
        %v1197 = vrot.slane %v1087, %v1196
        %v1198 = vlaneseq
        %v1199 = vshrl.u32 %v1198, 7
        %v1200 = vsub.s32 4, %v1199
        %v1201 = vrot.slane %v1087, %v1200
        %v1202 = vlaneseq
        %v1203 = vshrl.u32 %v1202, 7
        %v1204 = vsub.s32 6, %v1203
        %v1205 = vrot.slane %v1087, %v1204
        %v1206 = vlaneseq
        %v1207 = vshrl.u32 %v1206, 7
        %v1208 = vsub.s32 0, %v1207
        %v1209 = vrot.slane %v1088, %v1208
        %v1210 = vlaneseq
        %v1211 = vshrl.u32 %v1210, 7
        %v1212 = vsub.s32 2, %v1211
        %v1213 = vrot.slane %v1088, %v1212
        %v1214 = vlaneseq
        %v1215 = vshrl.u32 %v1214, 7
        %v1216 = vsub.s32 4, %v1215
        %v1217 = vrot.slane %v1088, %v1216
        %v1218 = vlaneseq
        %v1219 = vshrl.u32 %v1218, 7
        %v1220 = vsub.s32 6, %v1219
        %v1221 = vrot.slane %v1088, %v1220
        %v1222 = vlaneseq
        %v1223 = vshrl.u32 %v1222, 7
        %v1224 = vsub.s32 0, %v1223
        %v1225 = vrot.slane %v1089, %v1224
        %v1226 = vlaneseq
        %v1227 = vshrl.u32 %v1226, 7
        %v1228 = vsub.s32 2, %v1227
        %v1229 = vrot.slane %v1089, %v1228
        %v1230 = vlaneseq
        %v1231 = vshrl.u32 %v1230, 7
        %v1232 = vsub.s32 4, %v1231
        %v1233 = vrot.slane %v1089, %v1232
        %v1234 = vlaneseq
        %v1235 = vshrl.u32 %v1234, 7
        %v1236 = vsub.s32 6, %v1235
        %v1237 = vrot.slane %v1089, %v1236
        %v1238 = vlaneseq
        %v1239 = vshrl.u32 %v1238, 7
        %v1240 = vsub.s32 0, %v1239
        %v1241 = vrot.slane %v1090, %v1240
        %v1242 = vlaneseq
        %v1243 = vshrl.u32 %v1242, 7
        %v1244 = vsub.s32 2, %v1243
        %v1245 = vrot.slane %v1090, %v1244
        %v1246 = vlaneseq
        %v1247 = vshrl.u32 %v1246, 7
        %v1248 = vsub.s32 4, %v1247
        %v1249 = vrot.slane %v1090, %v1248
        %v1250 = vlaneseq
        %v1251 = vshrl.u32 %v1250, 7
        %v1252 = vsub.s32 6, %v1251
        %v1253 = vrot.slane %v1090, %v1252
        %v1254 = vlaneseq
        %v1255 = vshrl.u32 %v1254, 7
        %v1256 = vsub.s32 0, %v1255
        %v1257 = vrot.slane %v1091, %v1256
        %v1258 = vlaneseq
        %v1259 = vshrl.u32 %v1258, 7
        %v1260 = vsub.s32 2, %v1259
        %v1261 = vrot.slane %v1091, %v1260
        %v1262 = vlaneseq
        %v1263 = vshrl.u32 %v1262, 7
        %v1264 = vsub.s32 4, %v1263
        %v1265 = vrot.slane %v1091, %v1264
        %v1266 = vlaneseq
        %v1267 = vshrl.u32 %v1266, 7
        %v1268 = vsub.s32 6, %v1267
        %v1269 = vrot.slane %v1091, %v1268
        %v1270 = vlaneseq
        %v1271 = vshrl.u32 %v1270, 7
        %v1272 = vsub.s32 0, %v1271
        %v1273 = vrot.slane %v1092, %v1272
        %v1274 = vlaneseq
        %v1275 = vshrl.u32 %v1274, 7
        %v1276 = vsub.s32 2, %v1275
        %v1277 = vrot.slane %v1092, %v1276
        %v1278 = vlaneseq
        %v1279 = vshrl.u32 %v1278, 7
        %v1280 = vsub.s32 4, %v1279
        %v1281 = vrot.slane %v1092, %v1280
        %v1282 = vlaneseq
        %v1283 = vshrl.u32 %v1282, 7
        %v1284 = vsub.s32 6, %v1283
        %v1285 = vrot.slane %v1092, %v1284
        %v1286 = vlaneseq
        %v1287 = vshrl.u32 %v1286, 7
        %v1288 = vsub.s32 0, %v1287
        %v1289 = vrot.slane %v1093, %v1288
        %v1290 = vlaneseq
        %v1291 = vshrl.u32 %v1290, 7
        %v1292 = vsub.s32 2, %v1291
        %v1293 = vrot.slane %v1093, %v1292
        %v1294 = vlaneseq
        %v1295 = vshrl.u32 %v1294, 7
        %v1296 = vsub.s32 4, %v1295
        %v1297 = vrot.slane %v1093, %v1296
        %v1298 = vlaneseq
        %v1299 = vshrl.u32 %v1298, 7
        %v1300 = vsub.s32 6, %v1299
        %v1301 = vrot.slane %v1093, %v1300
        %v1302 = vlaneseq
        %v1303 = vshrl.u32 %v1302, 7
        %v1304 = vsub.s32 0, %v1303
        %v1305 = vrot.slane %v1094, %v1304
        %v1306 = vlaneseq
        %v1307 = vshrl.u32 %v1306, 7
        %v1308 = vsub.s32 2, %v1307
        %v1309 = vrot.slane %v1094, %v1308
        %v1310 = vlaneseq
        %v1311 = vshrl.u32 %v1310, 7
        %v1312 = vsub.s32 4, %v1311
        %v1313 = vrot.slane %v1094, %v1312
        %v1314 = vlaneseq
        %v1315 = vshrl.u32 %v1314, 7
        %v1316 = vsub.s32 6, %v1315
        %v1317 = vrot.slane %v1094, %v1316
        %v1318 = vlaneseq
        %v1319 = vshrl.u32 %v1318, 7
        %v1320 = vsub.s32 0, %v1319
        %v1321 = vrot.slane %v1095, %v1320
        %v1322 = vlaneseq
        %v1323 = vshrl.u32 %v1322, 7
        %v1324 = vsub.s32 2, %v1323
        %v1325 = vrot.slane %v1095, %v1324
        %v1326 = vlaneseq
        %v1327 = vshrl.u32 %v1326, 7
        %v1328 = vsub.s32 4, %v1327
        %v1329 = vrot.slane %v1095, %v1328
        %v1330 = vlaneseq
        %v1331 = vshrl.u32 %v1330, 7
        %v1332 = vsub.s32 6, %v1331
        %v1333 = vrot.slane %v1095, %v1332
        %v1390 = vpack.c.bf16 %v1113, %v1113
        %v1391 = vpack.c.bf16 %v1117, %v1117
        %v1392 = vpack.c.bf16 %v1121, %v1121
        %v1393 = vpack.c.bf16 %v1125, %v1125
        %v1394 = vpack.c.bf16 %v1129, %v1129
        %v1395 = vpack.c.bf16 %v1133, %v1133
        %v1396 = vpack.c.bf16 %v1137, %v1137
        %v1397 = vpack.c.bf16 %v1141, %v1141
        %v1398 = vpack.c.bf16 %v1145, %v1145
        %v1399 = vpack.c.bf16 %v1149, %v1149
        %v1400 = vpack.c.bf16 %v1153, %v1153
        %v1401 = vpack.c.bf16 %v1157, %v1157
        %v1402 = vpack.c.bf16 %v1161, %v1161
        %v1403 = vpack.c.bf16 %v1165, %v1165
        %v1404 = vpack.c.bf16 %v1169, %v1169
        %v1405 = vpack.c.bf16 %v1173, %v1173
        %v1406 = vpack.c.bf16 %v1177, %v1177
        %v1407 = vpack.c.bf16 %v1181, %v1181
        %v1408 = vpack.c.bf16 %v1185, %v1185
        %v1409 = vpack.c.bf16 %v1189, %v1189
        %v1410 = vpack.c.bf16 %v1193, %v1193
        %v1411 = vpack.c.bf16 %v1197, %v1197
        %v1412 = vpack.c.bf16 %v1201, %v1201
        %v1413 = vpack.c.bf16 %v1205, %v1205
        %v1414 = vpack.c.bf16 %v1209, %v1209
        %v1415 = vpack.c.bf16 %v1213, %v1213
        %v1416 = vpack.c.bf16 %v1217, %v1217
        %v1417 = vpack.c.bf16 %v1221, %v1221
        %v1418 = vpack.c.bf16 %v1225, %v1225
        %v1419 = vpack.c.bf16 %v1229, %v1229
        %v1420 = vpack.c.bf16 %v1233, %v1233
        %v1421 = vpack.c.bf16 %v1237, %v1237
        %v1422 = vpack.c.bf16 %v1241, %v1241
        %v1423 = vpack.c.bf16 %v1245, %v1245
        %v1424 = vpack.c.bf16 %v1249, %v1249
        %v1425 = vpack.c.bf16 %v1253, %v1253
        %v1426 = vpack.c.bf16 %v1257, %v1257
        %v1427 = vpack.c.bf16 %v1261, %v1261
        %v1428 = vpack.c.bf16 %v1265, %v1265
        %v1429 = vpack.c.bf16 %v1269, %v1269
        %v1430 = vpack.c.bf16 %v1273, %v1273
        %v1431 = vpack.c.bf16 %v1277, %v1277
        %v1432 = vpack.c.bf16 %v1281, %v1281
        %v1433 = vpack.c.bf16 %v1285, %v1285
        %v1434 = vpack.c.bf16 %v1289, %v1289
        %v1435 = vpack.c.bf16 %v1293, %v1293
        %v1436 = vpack.c.bf16 %v1297, %v1297
        %v1437 = vpack.c.bf16 %v1301, %v1301
        %v1438 = vpack.c.bf16 %v1305, %v1305
        %v1439 = vpack.c.bf16 %v1309, %v1309
        %v1440 = vpack.c.bf16 %v1313, %v1313
        %v1441 = vpack.c.bf16 %v1317, %v1317
        %v1442 = vpack.c.bf16 %v1321, %v1321
        %v1443 = vpack.c.bf16 %v1325, %v1325
        %v1444 = vpack.c.bf16 %v1329, %v1329
        %v1445 = vpack.c.bf16 %v1333, %v1333
        %v1446 = vld [vmem:[#allocation5] sm:$0xff]
        %v1447 = vld [vmem:[#allocation5 + $0x8] sm:$0xff]
        %v1448 = vld [vmem:[#allocation5 + $0x10] sm:$0xff]
        %v1449 = vld [vmem:[#allocation5 + $0x18] sm:$0xff]
        %v1450 = vld [vmem:[#allocation5 + $0x20] sm:$0xff]
        %v1451 = vld [vmem:[#allocation5 + $0x28] sm:$0xff]
        %v1452 = vld [vmem:[#allocation5 + $0x30] sm:$0xff]
        %v1453 = vld [vmem:[#allocation5 + $0x38] sm:$0xff]
        %v1454 = vld [vmem:[#allocation5 + $0x40] sm:$0xff]
        %v1455 = vld [vmem:[#allocation5 + $0x48] sm:$0xff]
        %v1456 = vld [vmem:[#allocation5 + $0x50] sm:$0xff]
        %v1457 = vld [vmem:[#allocation5 + $0x58] sm:$0xff]
        %v1458 = vld [vmem:[#allocation5 + $0x60] sm:$0xff]
        %v1459 = vld [vmem:[#allocation5 + $0x68] sm:$0xff]
        %v1460 = vld [vmem:[#allocation5 + $0x70] sm:$0xff]
        %v1461 = vld [vmem:[#allocation5 + $0x78] sm:$0xff]
        %v1462 = vld [vmem:[#allocation5 + $0x80] sm:$0xff]
        %v1463 = vld [vmem:[#allocation5 + $0x88] sm:$0xff]
        %v1464 = vld [vmem:[#allocation5 + $0x90] sm:$0xff]
        %v1465 = vld [vmem:[#allocation5 + $0x98] sm:$0xff]
        %v1466 = vld [vmem:[#allocation5 + $0xa0] sm:$0xff]
        %v1467 = vld [vmem:[#allocation5 + $0xa8] sm:$0xff]
        %v1468 = vld [vmem:[#allocation5 + $0xb0] sm:$0xff]
        %v1469 = vld [vmem:[#allocation5 + $0xb8] sm:$0xff]
        %v1470 = vld [vmem:[#allocation5 + $0xc0] sm:$0xff]
        %v1471 = vld [vmem:[#allocation5 + $0xc8] sm:$0xff]
        %v1472 = vld [vmem:[#allocation5 + $0xd0] sm:$0xff]
        %v1473 = vld [vmem:[#allocation5 + $0xd8] sm:$0xff]
        %v1474 = vld [vmem:[#allocation5 + $0xe0] sm:$0xff]
        %v1475 = vld [vmem:[#allocation5 + $0xe8] sm:$0xff]
        %v1476 = vld [vmem:[#allocation5 + $0xf0] sm:$0xff]
        %v1477 = vld [vmem:[#allocation5 + $0xf8] sm:$0xff]
        %v1478 = vld [vmem:[#allocation5 + $0x100] sm:$0xff]
        %v1479 = vld [vmem:[#allocation5 + $0x108] sm:$0xff]
        %v1480 = vld [vmem:[#allocation5 + $0x110] sm:$0xff]
        %v1481 = vld [vmem:[#allocation5 + $0x118] sm:$0xff]
        %v1482 = vld [vmem:[#allocation5 + $0x120] sm:$0xff]
        %v1483 = vld [vmem:[#allocation5 + $0x128] sm:$0xff]
        %v1484 = vld [vmem:[#allocation5 + $0x130] sm:$0xff]
        %v1485 = vld [vmem:[#allocation5 + $0x138] sm:$0xff]
        %v1486 = vld [vmem:[#allocation5 + $0x140] sm:$0xff]
        %v1487 = vld [vmem:[#allocation5 + $0x148] sm:$0xff]
        %v1488 = vld [vmem:[#allocation5 + $0x150] sm:$0xff]
        %v1489 = vld [vmem:[#allocation5 + $0x158] sm:$0xff]
        %v1490 = vld [vmem:[#allocation5 + $0x160] sm:$0xff]
        %v1491 = vld [vmem:[#allocation5 + $0x168] sm:$0xff]
        %v1492 = vld [vmem:[#allocation5 + $0x170] sm:$0xff]
        %v1493 = vld [vmem:[#allocation5 + $0x178] sm:$0xff]
        %v1494 = vld [vmem:[#allocation5 + $0x180] sm:$0xff]
        %v1495 = vld [vmem:[#allocation5 + $0x188] sm:$0xff]
        %v1496 = vld [vmem:[#allocation5 + $0x190] sm:$0xff]
        %v1497 = vld [vmem:[#allocation5 + $0x198] sm:$0xff]
        %v1498 = vld [vmem:[#allocation5 + $0x1a0] sm:$0xff]
        %v1499 = vld [vmem:[#allocation5 + $0x1a8] sm:$0xff]
        %v1500 = vld [vmem:[#allocation5 + $0x1b0] sm:$0xff]
        %v1501 = vld [vmem:[#allocation5 + $0x1b8] sm:$0xff]
        %v1558 = vunpack.c.l.b16 %v1390
        %v1559 = vunpack.c.l.b16 %v1391
        %v1560 = vunpack.c.l.b16 %v1392
        %v1561 = vunpack.c.l.b16 %v1393
        %v1562 = vunpack.c.l.b16 %v1394
        %v1563 = vunpack.c.l.b16 %v1395
        %v1564 = vunpack.c.l.b16 %v1396
        %v1565 = vunpack.c.l.b16 %v1397
        %v1566 = vunpack.c.l.b16 %v1398
        %v1567 = vunpack.c.l.b16 %v1399
        %v1568 = vunpack.c.l.b16 %v1400
        %v1569 = vunpack.c.l.b16 %v1401
        %v1570 = vunpack.c.l.b16 %v1402
        %v1571 = vunpack.c.l.b16 %v1403
        %v1572 = vunpack.c.l.b16 %v1404
        %v1573 = vunpack.c.l.b16 %v1405
        %v1574 = vunpack.c.l.b16 %v1406
        %v1575 = vunpack.c.l.b16 %v1407
        %v1576 = vunpack.c.l.b16 %v1408
        %v1577 = vunpack.c.l.b16 %v1409
        %v1578 = vunpack.c.l.b16 %v1410
        %v1579 = vunpack.c.l.b16 %v1411
        %v1580 = vunpack.c.l.b16 %v1412
        %v1581 = vunpack.c.l.b16 %v1413
        %v1582 = vunpack.c.l.b16 %v1414
        %v1583 = vunpack.c.l.b16 %v1415
        %v1584 = vunpack.c.l.b16 %v1416
        %v1585 = vunpack.c.l.b16 %v1417
        %v1586 = vunpack.c.l.b16 %v1418
        %v1587 = vunpack.c.l.b16 %v1419
        %v1588 = vunpack.c.l.b16 %v1420
        %v1589 = vunpack.c.l.b16 %v1421
        %v1590 = vunpack.c.l.b16 %v1422
        %v1591 = vunpack.c.l.b16 %v1423
        %v1592 = vunpack.c.l.b16 %v1424
        %v1593 = vunpack.c.l.b16 %v1425
        %v1594 = vunpack.c.l.b16 %v1426
        %v1595 = vunpack.c.l.b16 %v1427
        %v1596 = vunpack.c.l.b16 %v1428
        %v1597 = vunpack.c.l.b16 %v1429
        %v1598 = vunpack.c.l.b16 %v1430
        %v1599 = vunpack.c.l.b16 %v1431
        %v1600 = vunpack.c.l.b16 %v1432
        %v1601 = vunpack.c.l.b16 %v1433
        %v1602 = vunpack.c.l.b16 %v1434
        %v1603 = vunpack.c.l.b16 %v1435
        %v1604 = vunpack.c.l.b16 %v1436
        %v1605 = vunpack.c.l.b16 %v1437
        %v1606 = vunpack.c.l.b16 %v1438
        %v1607 = vunpack.c.l.b16 %v1439
        %v1608 = vunpack.c.l.b16 %v1440
        %v1609 = vunpack.c.l.b16 %v1441
        %v1610 = vunpack.c.l.b16 %v1442
        %v1611 = vunpack.c.l.b16 %v1443
        %v1612 = vunpack.c.l.b16 %v1444
        %v1613 = vunpack.c.l.b16 %v1445
        %v1614 = vrot.slane %v1562, 7
        %vm1615 = vcmask 1041409
        %v1616 = vsel %vm1615, %v1614, %v1558
        %v1617 = vrot.slane %v1566, 6
        %vm1618 = vcmask 1042434
        %v1619 = vsel %vm1618, %v1617, %v1616
        %v1620 = vrot.slane %v1570, 5
        %vm1621 = vcmask 1043459
        %v1622 = vsel %vm1621, %v1620, %v1619
        %v1623 = vrot.slane %v1574, 4
        %vm1624 = vcmask 1044484
        %v1625 = vsel %vm1624, %v1623, %v1622
        %v1626 = vrot.slane %v1578, 3
        %vm1627 = vcmask 1045509
        %v1628 = vsel %vm1627, %v1626, %v1625
        %v1629 = vrot.slane %v1582, 2
        %vm1630 = vcmask 1046534
        %v1631 = vsel %vm1630, %v1629, %v1628
        %v1632 = vrot.slane %v1586, 1
        %vm1633 = vcmask 1047559
        %v1634 = vsel %vm1633, %v1632, %v1631
        %v1635 = vrot.slane %v1563, 7
        %v1636 = vsel %vm1615, %v1635, %v1559
        %v1637 = vrot.slane %v1567, 6
        %v1638 = vsel %vm1618, %v1637, %v1636
        %v1639 = vrot.slane %v1571, 5
        %v1640 = vsel %vm1621, %v1639, %v1638
        %v1641 = vrot.slane %v1575, 4
        %v1642 = vsel %vm1624, %v1641, %v1640
        %v1643 = vrot.slane %v1579, 3
        %v1644 = vsel %vm1627, %v1643, %v1642
        %v1645 = vrot.slane %v1583, 2
        %v1646 = vsel %vm1630, %v1645, %v1644
        %v1647 = vrot.slane %v1587, 1
        %v1648 = vsel %vm1633, %v1647, %v1646
        %v1649 = vrot.slane %v1564, 7
        %v1650 = vsel %vm1615, %v1649, %v1560
        %v1651 = vrot.slane %v1568, 6
        %v1652 = vsel %vm1618, %v1651, %v1650
        %v1653 = vrot.slane %v1572, 5
        %v1654 = vsel %vm1621, %v1653, %v1652
        %v1655 = vrot.slane %v1576, 4
        %v1656 = vsel %vm1624, %v1655, %v1654
        %v1657 = vrot.slane %v1580, 3
        %v1658 = vsel %vm1627, %v1657, %v1656
        %v1659 = vrot.slane %v1584, 2
        %v1660 = vsel %vm1630, %v1659, %v1658
        %v1661 = vrot.slane %v1588, 1
        %v1662 = vsel %vm1633, %v1661, %v1660
        %v1663 = vrot.slane %v1565, 7
        %v1664 = vsel %vm1615, %v1663, %v1561
        %v1665 = vrot.slane %v1569, 6
        %v1666 = vsel %vm1618, %v1665, %v1664
        %v1667 = vrot.slane %v1573, 5
        %v1668 = vsel %vm1621, %v1667, %v1666
        %v1669 = vrot.slane %v1577, 4
        %v1670 = vsel %vm1624, %v1669, %v1668
        %v1671 = vrot.slane %v1581, 3
        %v1672 = vsel %vm1627, %v1671, %v1670
        %v1673 = vrot.slane %v1585, 2
        %v1674 = vsel %vm1630, %v1673, %v1672
        %v1675 = vrot.slane %v1589, 1
        %v1676 = vsel %vm1633, %v1675, %v1674
        %v1677 = vrot.slane %v1594, 7
        %v1678 = vsel %vm1615, %v1677, %v1590
        %v1679 = vrot.slane %v1598, 6
        %v1680 = vsel %vm1618, %v1679, %v1678
        %v1681 = vrot.slane %v1602, 5
        %v1682 = vsel %vm1621, %v1681, %v1680
        %v1683 = vrot.slane %v1606, 4
        %v1684 = vsel %vm1624, %v1683, %v1682
        %v1685 = vrot.slane %v1610, 3
        %v1686 = vsel %vm1627, %v1685, %v1684
        %v1687 = vrot.slane %v1595, 7
        %v1688 = vsel %vm1615, %v1687, %v1591
        %v1689 = vrot.slane %v1599, 6
        %v1690 = vsel %vm1618, %v1689, %v1688
        %v1691 = vrot.slane %v1603, 5
        %v1692 = vsel %vm1621, %v1691, %v1690
        %v1693 = vrot.slane %v1607, 4
        %v1694 = vsel %vm1624, %v1693, %v1692
        %v1695 = vrot.slane %v1611, 3
        %v1696 = vsel %vm1627, %v1695, %v1694
        %v1697 = vrot.slane %v1596, 7
        %v1698 = vsel %vm1615, %v1697, %v1592
        %v1699 = vrot.slane %v1600, 6
        %v1700 = vsel %vm1618, %v1699, %v1698
        %v1701 = vrot.slane %v1604, 5
        %v1702 = vsel %vm1621, %v1701, %v1700
        %v1703 = vrot.slane %v1608, 4
        %v1704 = vsel %vm1624, %v1703, %v1702
        %v1705 = vrot.slane %v1612, 3
        %v1706 = vsel %vm1627, %v1705, %v1704
        %v1707 = vrot.slane %v1597, 7
        %v1708 = vsel %vm1615, %v1707, %v1593
        %v1709 = vrot.slane %v1601, 6
        %v1710 = vsel %vm1618, %v1709, %v1708
        %v1711 = vrot.slane %v1605, 5
        %v1712 = vsel %vm1621, %v1711, %v1710
        %v1713 = vrot.slane %v1609, 4
        %v1714 = vsel %vm1624, %v1713, %v1712
        %v1715 = vrot.slane %v1613, 3
        %v1716 = vsel %vm1627, %v1715, %v1714
        %v1717 = vpack.c.b16 %v1686, %v1634
        %v1718 = vpack.c.b16 %v1696, %v1648
        %v1719 = vpack.c.b16 %v1706, %v1662
        %v1720 = vpack.c.b16 %v1716, %v1676
        %v1780 = vunpack.c.l.b16 %v1446
        %v1781 = vunpack.c.h.b16 %v1446
        %v1782 = vunpack.c.l.b16 %v1447
        %v1783 = vunpack.c.h.b16 %v1447
        %v1784 = vunpack.c.l.b16 %v1448
        %v1785 = vunpack.c.h.b16 %v1448
        %v1786 = vunpack.c.l.b16 %v1449
        %v1787 = vunpack.c.h.b16 %v1449
        %v1788 = vunpack.c.l.b16 %v1450
        %v1789 = vunpack.c.h.b16 %v1450
        %v1790 = vunpack.c.l.b16 %v1451
        %v1791 = vunpack.c.h.b16 %v1451
        %v1792 = vunpack.c.l.b16 %v1452
        %v1793 = vunpack.c.h.b16 %v1452
        %v1794 = vunpack.c.l.b16 %v1453
        %v1795 = vunpack.c.h.b16 %v1453
        %v1796 = vunpack.c.l.b16 %v1454
        %v1797 = vunpack.c.h.b16 %v1454
        %v1798 = vunpack.c.l.b16 %v1455
        %v1799 = vunpack.c.h.b16 %v1455
        %v1800 = vunpack.c.l.b16 %v1456
        %v1801 = vunpack.c.h.b16 %v1456
        %v1802 = vunpack.c.l.b16 %v1457
        %v1803 = vunpack.c.h.b16 %v1457
        %v1804 = vunpack.c.l.b16 %v1458
        %v1805 = vunpack.c.h.b16 %v1458
        %v1806 = vunpack.c.l.b16 %v1459
        %v1807 = vunpack.c.h.b16 %v1459
        %v1808 = vunpack.c.l.b16 %v1460
        %v1809 = vunpack.c.h.b16 %v1460
        %v1810 = vunpack.c.l.b16 %v1461
        %v1811 = vunpack.c.h.b16 %v1461
        %v1812 = vunpack.c.l.b16 %v1462
        %v1813 = vunpack.c.h.b16 %v1462
        %v1814 = vunpack.c.l.b16 %v1463
        %v1815 = vunpack.c.h.b16 %v1463
        %v1816 = vunpack.c.l.b16 %v1464
        %v1817 = vunpack.c.h.b16 %v1464
        %v1818 = vunpack.c.l.b16 %v1465
        %v1819 = vunpack.c.h.b16 %v1465
        %v1820 = vunpack.c.l.b16 %v1466
        %v1821 = vunpack.c.h.b16 %v1466
        %v1822 = vunpack.c.l.b16 %v1467
        %v1823 = vunpack.c.h.b16 %v1467
        %v1824 = vunpack.c.l.b16 %v1468
        %v1825 = vunpack.c.h.b16 %v1468
        %v1826 = vunpack.c.l.b16 %v1469
        %v1827 = vunpack.c.h.b16 %v1469
        %v1828 = vunpack.c.l.b16 %v1470
        %v1829 = vunpack.c.h.b16 %v1470
        %v1830 = vunpack.c.l.b16 %v1471
        %v1831 = vunpack.c.h.b16 %v1471
        %v1832 = vunpack.c.l.b16 %v1472
        %v1833 = vunpack.c.h.b16 %v1472
        %v1834 = vunpack.c.l.b16 %v1473
        %v1835 = vunpack.c.h.b16 %v1473
        %v1836 = vunpack.c.l.b16 %v1474
        %v1837 = vunpack.c.h.b16 %v1474
        %v1838 = vunpack.c.l.b16 %v1475
        %v1839 = vunpack.c.h.b16 %v1475
        %v1840 = vunpack.c.l.b16 %v1476
        %v1841 = vunpack.c.h.b16 %v1476
        %v1842 = vunpack.c.l.b16 %v1477
        %v1843 = vunpack.c.h.b16 %v1477
        %v1844 = vunpack.c.l.b16 %v1478
        %v1845 = vunpack.c.h.b16 %v1478
        %v1846 = vunpack.c.l.b16 %v1479
        %v1847 = vunpack.c.h.b16 %v1479
        %v1848 = vunpack.c.l.b16 %v1480
        %v1849 = vunpack.c.h.b16 %v1480
        %v1850 = vunpack.c.l.b16 %v1481
        %v1851 = vunpack.c.h.b16 %v1481
        %v1852 = vunpack.c.l.b16 %v1482
        %v1853 = vunpack.c.h.b16 %v1482
        %v1854 = vunpack.c.l.b16 %v1483
        %v1855 = vunpack.c.h.b16 %v1483
        %v1856 = vunpack.c.l.b16 %v1484
        %v1857 = vunpack.c.h.b16 %v1484
        %v1858 = vunpack.c.l.b16 %v1485
        %v1859 = vunpack.c.h.b16 %v1485
        %v1860 = vunpack.c.l.b16 %v1486
        %v1861 = vunpack.c.h.b16 %v1486
        %v1862 = vunpack.c.l.b16 %v1487
        %v1863 = vunpack.c.h.b16 %v1487
        %v1864 = vunpack.c.l.b16 %v1488
        %v1865 = vunpack.c.h.b16 %v1488
        %v1866 = vunpack.c.l.b16 %v1489
        %v1867 = vunpack.c.h.b16 %v1489
        %v1868 = vunpack.c.l.b16 %v1490
        %v1869 = vunpack.c.h.b16 %v1490
        %v1870 = vunpack.c.l.b16 %v1491
        %v1871 = vunpack.c.h.b16 %v1491
        %v1872 = vunpack.c.l.b16 %v1492
        %v1873 = vunpack.c.h.b16 %v1492
        %v1874 = vunpack.c.l.b16 %v1493
        %v1875 = vunpack.c.h.b16 %v1493
        %v1876 = vunpack.c.l.b16 %v1494
        %v1877 = vunpack.c.h.b16 %v1494
        %v1878 = vunpack.c.l.b16 %v1495
        %v1879 = vunpack.c.h.b16 %v1495
        %v1880 = vunpack.c.l.b16 %v1496
        %v1881 = vunpack.c.h.b16 %v1496
        %v1882 = vunpack.c.l.b16 %v1497
        %v1883 = vunpack.c.h.b16 %v1497
        %v1884 = vunpack.c.l.b16 %v1498
        %v1885 = vunpack.c.h.b16 %v1498
        %v1886 = vunpack.c.l.b16 %v1499
        %v1887 = vunpack.c.h.b16 %v1499
        %v1888 = vunpack.c.l.b16 %v1500
        %v1889 = vunpack.c.h.b16 %v1500
        %v1890 = vunpack.c.l.b16 %v1501
        %v1891 = vunpack.c.h.b16 %v1501
        %v1892 = vpack.c.b16 %v1782, %v1780
        %v1893 = vpack.c.b16 %v1783, %v1781
        %v1894 = vpack.c.b16 %v1786, %v1784
        %v1895 = vpack.c.b16 %v1787, %v1785
        %v1896 = vpack.c.b16 %v1790, %v1788
        %v1897 = vpack.c.b16 %v1791, %v1789
        %v1898 = vpack.c.b16 %v1794, %v1792
        %v1899 = vpack.c.b16 %v1795, %v1793
        %v1900 = vpack.c.b16 %v1798, %v1796
        %v1901 = vpack.c.b16 %v1799, %v1797
        %v1902 = vpack.c.b16 %v1802, %v1800
        %v1903 = vpack.c.b16 %v1803, %v1801
        %v1904 = vpack.c.b16 %v1806, %v1804
        %v1905 = vpack.c.b16 %v1807, %v1805
        %v1906 = vpack.c.b16 %v1810, %v1808
        %v1907 = vpack.c.b16 %v1811, %v1809
        %v1908 = vpack.c.b16 %v1814, %v1812
        %v1909 = vpack.c.b16 %v1815, %v1813
        %v1910 = vpack.c.b16 %v1818, %v1816
        %v1911 = vpack.c.b16 %v1819, %v1817
        %v1912 = vpack.c.b16 %v1822, %v1820
        %v1913 = vpack.c.b16 %v1823, %v1821
        %v1914 = vpack.c.b16 %v1826, %v1824
        %v1915 = vpack.c.b16 %v1827, %v1825
        %v1916 = vpack.c.b16 %v1830, %v1828
        %v1917 = vpack.c.b16 %v1831, %v1829
        %v1918 = vpack.c.b16 %v1834, %v1832
        %v1919 = vpack.c.b16 %v1835, %v1833
        %v1920 = vpack.c.b16 %v1838, %v1836
        %v1921 = vpack.c.b16 %v1839, %v1837
        %v1922 = vpack.c.b16 %v1842, %v1840
        %v1923 = vpack.c.b16 %v1843, %v1841
        %v1924 = vpack.c.b16 %v1846, %v1844
        %v1925 = vpack.c.b16 %v1847, %v1845
        %v1926 = vpack.c.b16 %v1850, %v1848
        %v1927 = vpack.c.b16 %v1851, %v1849
        %v1928 = vpack.c.b16 %v1854, %v1852
        %v1929 = vpack.c.b16 %v1855, %v1853
        %v1930 = vpack.c.b16 %v1858, %v1856
        %v1931 = vpack.c.b16 %v1859, %v1857
        %v1932 = vpack.c.b16 %v1862, %v1860
        %v1933 = vpack.c.b16 %v1863, %v1861
        %v1934 = vpack.c.b16 %v1866, %v1864
        %v1935 = vpack.c.b16 %v1867, %v1865
        %v1936 = vpack.c.b16 %v1870, %v1868
        %v1937 = vpack.c.b16 %v1871, %v1869
        %v1938 = vpack.c.b16 %v1874, %v1872
        %v1939 = vpack.c.b16 %v1875, %v1873
        %v1940 = vpack.c.b16 %v1878, %v1876
        %v1941 = vpack.c.b16 %v1879, %v1877
        %v1942 = vpack.c.b16 %v1882, %v1880
        %v1943 = vpack.c.b16 %v1883, %v1881
        %v1944 = vpack.c.b16 %v1886, %v1884
        %v1945 = vpack.c.b16 %v1887, %v1885
        %v1946 = vpack.c.b16 %v1890, %v1888
        %v1947 = vpack.c.b16 %v1891, %v1889
        %vm2004 = vcmask 523264
        %v2006 = vsel %vm2004, %v1720, 0
        %2008 = vmatprep.subr.bf16.mxu0 %v1893
        %2009 = vmatpush1.bf16.msra.mxu0 %v1892
        %2010 = vmatprep.subr.bf16.mxu0 %v1895
        %2011 = vmatpush1.bf16.msra.mxu0 %v1894
        %2012 = vmatprep.subr.bf16.mxu0 %v1897
        %2013 = vmatpush1.bf16.msra.mxu0 %v1896
        %2014 = vmatprep.subr.bf16.mxu0 %v1899
        %2015 = vmatpush1.bf16.msra.mxu0 %v1898
        %2016 = vmatprep.subr.bf16.mxu0 %v1901
        %2017 = vmatpush1.bf16.msra.mxu0 %v1900
        %2018 = vmatprep.subr.bf16.mxu0 %v1903
        %2019 = vmatpush1.bf16.msra.mxu0 %v1902
        %2020 = vmatprep.subr.bf16.mxu0 %v1905
        %2021 = vmatpush1.bf16.msra.mxu0 %v1904
        %2022 = vmatprep.subr.bf16.mxu0 %v1907
        %2023 = vmatpush1.bf16.msra.mxu0 %v1906
        %2024 = vmatprep.subr.bf16.mxu0 %v1909
        %2025 = vmatpush1.bf16.msra.mxu0 %v1908
        %2026 = vmatprep.subr.bf16.mxu0 %v1911
        %2027 = vmatpush1.bf16.msra.mxu0 %v1910
        %2028 = vmatprep.subr.bf16.mxu0 %v1913
        %2029 = vmatpush1.bf16.msra.mxu0 %v1912
        %2030 = vmatprep.subr.bf16.mxu0 %v1915
        %2031 = vmatpush1.bf16.msra.mxu0 %v1914
        %2032 = vmatprep.subr.bf16.mxu0 %v1917
        %2033 = vmatpush1.bf16.msra.mxu0 %v1916
        %2034 = vmatprep.subr.bf16.mxu0 %v1919
        %2035 = vmatpush1.bf16.msra.mxu0 %v1918
        %2036 = vmatprep.subr.bf16.mxu0 %v1921
        %2037 = vmatpush1.bf16.msra.mxu0 %v1920
        %2038 = vmatprep.subr.bf16.mxu0 %v1923
        %2039 = vmatpush1.bf16.msra.mxu0 %v1922
        %2040 = vmatprep.mubr.bf16.mxu0 %v1718
        %2041 = vmatmul.mubr.bf16.gmra.mrb[0].mxu0 %v1717
        %v2042 = vpop.f32.mrb[0].mxu0
        %v2043 = vadd.f32 0.0, %v2042
        %v2044 = vpop.f32.mrb[0].mxu0
        %v2045 = vadd.f32 0.0, %v2044
        %v2046 = vpop.f32.mrb[0].mxu0
        %v2047 = vadd.f32 0.0, %v2046
        %v2048 = vpop.f32.mrb[0].mxu0
        %v2049 = vadd.f32 0.0, %v2048
        %2050 = vdwg.mxu0
        %2051 = vmatprep.subr.bf16.mxu0 %v1925
        %2052 = vmatpush1.bf16.msra.mxu0 %v1924
        %2053 = vmatprep.subr.bf16.mxu0 %v1927
        %2054 = vmatpush1.bf16.msra.mxu0 %v1926
        %2055 = vmatprep.subr.bf16.mxu0 %v1929
        %2056 = vmatpush1.bf16.msra.mxu0 %v1928
        %2057 = vmatprep.subr.bf16.mxu0 %v1931
        %2058 = vmatpush1.bf16.msra.mxu0 %v1930
        %2059 = vmatprep.subr.bf16.mxu0 %v1933
        %2060 = vmatpush1.bf16.msra.mxu0 %v1932
        %2061 = vmatprep.subr.bf16.mxu0 %v1935
        %2062 = vmatpush1.bf16.msra.mxu0 %v1934
        %2063 = vmatprep.subr.bf16.mxu0 %v1937
        %2064 = vmatpush1.bf16.msra.mxu0 %v1936
        %2065 = vmatprep.subr.bf16.mxu0 %v1939
        %2066 = vmatpush1.bf16.msra.mxu0 %v1938
        %2067 = vmatprep.subr.bf16.mxu0 %v1941
        %2068 = vmatpush1.bf16.msra.mxu0 %v1940
        %2069 = vmatprep.subr.bf16.mxu0 %v1943
        %2070 = vmatpush1.bf16.msra.mxu0 %v1942
        %2071 = vmatprep.subr.bf16.mxu0 %v1945
        %2072 = vmatpush1.bf16.msra.mxu0 %v1944
        %2073 = vmatprep.subr.bf16.mxu0 %v1947
        %2074 = vmatpush1.bf16.msra.mxu0 %v1946
        %2075 = vmatprep.subr.bf16.mxu0 0
        %2076 = vmatpush1.bf16.msra.mxu0 0
        %2077 = vmatprep.subr.bf16.mxu0 0
        %2078 = vmatpush1.bf16.msra.mxu0 0
        %2079 = vmatprep.subr.bf16.mxu0 0
        %2080 = vmatpush1.bf16.msra.mxu0 0
        %2081 = vmatprep.subr.bf16.mxu0 0
        %2082 = vmatpush1.bf16.msra.mxu0 0
        %2083 = vmatprep.mubr.bf16.mxu0 %v2006
        %2084 = vmatmul.mubr.bf16.gmra.mrb[0].mxu0 %v1719
        %v2085 = vpop.f32.mrb[0].mxu0
        %v2086 = vadd.f32 %v2043, %v2085
        %v2087 = vpop.f32.mrb[0].mxu0
        %v2088 = vadd.f32 %v2045, %v2087
        %v2089 = vpop.f32.mrb[0].mxu0
        %v2090 = vadd.f32 %v2047, %v2089
        %v2091 = vpop.f32.mrb[0].mxu0
        %v2092 = vadd.f32 %v2049, %v2091
        %2093 = vdwg.mxu0
        %v2094 = vld [vmem:[#allocation7] sm:$0xff]
        %v2095 = vld [vmem:[#allocation7 + $0x8] sm:$0xff]
        %v2096 = vld [vmem:[#allocation7 + $0x10] sm:$0xff]
        %v2097 = vld [vmem:[#allocation7 + $0x18] sm:$0xff]
        %v2098 = vld [vmem:[#allocation7 + $0x20] sm:$0xff]
        %v2099 = vld [vmem:[#allocation7 + $0x28] sm:$0xff]
        %v2100 = vld [vmem:[#allocation7 + $0x30] sm:$0xff]
        %v2101 = vld [vmem:[#allocation7 + $0x38] sm:$0xff]
        %v2102 = vld [vmem:[#allocation7 + $0x40] sm:$0xff]
        %v2103 = vld [vmem:[#allocation7 + $0x48] sm:$0xff]
        %v2104 = vld [vmem:[#allocation7 + $0x50] sm:$0xff]
        %v2105 = vld [vmem:[#allocation7 + $0x58] sm:$0xff]
        %v2106 = vld [vmem:[#allocation7 + $0x60] sm:$0xff]
        %v2107 = vld [vmem:[#allocation7 + $0x68] sm:$0xff]
        %v2108 = vld [vmem:[#allocation7 + $0x70] sm:$0xff]
        %v2109 = vld [vmem:[#allocation7 + $0x78] sm:$0xff]
        %v2110 = vld [vmem:[#allocation7 + $0x80] sm:$0xff]
        %v2111 = vld [vmem:[#allocation7 + $0x88] sm:$0xff]
        %v2112 = vld [vmem:[#allocation7 + $0x90] sm:$0xff]
        %v2113 = vld [vmem:[#allocation7 + $0x98] sm:$0xff]
        %v2114 = vld [vmem:[#allocation7 + $0xa0] sm:$0xff]
        %v2115 = vld [vmem:[#allocation7 + $0xa8] sm:$0xff]
        %v2116 = vld [vmem:[#allocation7 + $0xb0] sm:$0xff]
        %v2117 = vld [vmem:[#allocation7 + $0xb8] sm:$0xff]
        %v2118 = vld [vmem:[#allocation7 + $0xc0] sm:$0xff]
        %v2119 = vld [vmem:[#allocation7 + $0xc8] sm:$0xff]
        %v2120 = vld [vmem:[#allocation7 + $0xd0] sm:$0xff]
        %v2121 = vld [vmem:[#allocation7 + $0xd8] sm:$0xff]
        %v2122 = vld [vmem:[#allocation7 + $0xe0] sm:$0xff]
        %v2123 = vld [vmem:[#allocation7 + $0xe8] sm:$0xff]
        %v2124 = vld [vmem:[#allocation7 + $0xf0] sm:$0xff]
        %v2125 = vld [vmem:[#allocation7 + $0xf8] sm:$0xff]
        %v2126 = vld [vmem:[#allocation7 + $0x100] sm:$0xff]
        %v2127 = vld [vmem:[#allocation7 + $0x108] sm:$0xff]
        %v2128 = vld [vmem:[#allocation7 + $0x110] sm:$0xff]
        %v2129 = vld [vmem:[#allocation7 + $0x118] sm:$0xff]
        %v2130 = vld [vmem:[#allocation7 + $0x120] sm:$0xff]
        %v2131 = vld [vmem:[#allocation7 + $0x128] sm:$0xff]
        %v2132 = vld [vmem:[#allocation7 + $0x130] sm:$0xff]
        %v2133 = vld [vmem:[#allocation7 + $0x138] sm:$0xff]
        %v2134 = vld [vmem:[#allocation7 + $0x140] sm:$0xff]
        %v2135 = vld [vmem:[#allocation7 + $0x148] sm:$0xff]
        %v2136 = vld [vmem:[#allocation7 + $0x150] sm:$0xff]
        %v2137 = vld [vmem:[#allocation7 + $0x158] sm:$0xff]
        %v2138 = vld [vmem:[#allocation7 + $0x160] sm:$0xff]
        %v2139 = vld [vmem:[#allocation7 + $0x168] sm:$0xff]
        %v2140 = vld [vmem:[#allocation7 + $0x170] sm:$0xff]
        %v2141 = vld [vmem:[#allocation7 + $0x178] sm:$0xff]
        %v2142 = vld [vmem:[#allocation7 + $0x180] sm:$0xff]
        %v2143 = vld [vmem:[#allocation7 + $0x188] sm:$0xff]
        %v2144 = vld [vmem:[#allocation7 + $0x190] sm:$0xff]
        %v2145 = vld [vmem:[#allocation7 + $0x198] sm:$0xff]
        %v2146 = vld [vmem:[#allocation7 + $0x1a0] sm:$0xff]
        %v2147 = vld [vmem:[#allocation7 + $0x1a8] sm:$0xff]
        %v2148 = vld [vmem:[#allocation7 + $0x1b0] sm:$0xff]
        %v2149 = vld [vmem:[#allocation7 + $0x1b8] sm:$0xff]
        %v2206 = vunpack.c.l.b16 %v2094
        %v2207 = vunpack.c.h.b16 %v2094
        %v2208 = vunpack.c.l.b16 %v2095
        %v2209 = vunpack.c.h.b16 %v2095
        %v2210 = vunpack.c.l.b16 %v2096
        %v2211 = vunpack.c.h.b16 %v2096
        %v2212 = vunpack.c.l.b16 %v2097
        %v2213 = vunpack.c.h.b16 %v2097
        %v2214 = vunpack.c.l.b16 %v2098
        %v2215 = vunpack.c.h.b16 %v2098
        %v2216 = vunpack.c.l.b16 %v2099
        %v2217 = vunpack.c.h.b16 %v2099
        %v2218 = vunpack.c.l.b16 %v2100
        %v2219 = vunpack.c.h.b16 %v2100
        %v2220 = vunpack.c.l.b16 %v2101
        %v2221 = vunpack.c.h.b16 %v2101
        %v2222 = vunpack.c.l.b16 %v2102
        %v2223 = vunpack.c.h.b16 %v2102
        %v2224 = vunpack.c.l.b16 %v2103
        %v2225 = vunpack.c.h.b16 %v2103
        %v2226 = vunpack.c.l.b16 %v2104
        %v2227 = vunpack.c.h.b16 %v2104
        %v2228 = vunpack.c.l.b16 %v2105
        %v2229 = vunpack.c.h.b16 %v2105
        %v2230 = vunpack.c.l.b16 %v2106
        %v2231 = vunpack.c.h.b16 %v2106
        %v2232 = vunpack.c.l.b16 %v2107
        %v2233 = vunpack.c.h.b16 %v2107
        %v2234 = vunpack.c.l.b16 %v2108
        %v2235 = vunpack.c.h.b16 %v2108
        %v2236 = vunpack.c.l.b16 %v2109
        %v2237 = vunpack.c.h.b16 %v2109
        %v2238 = vunpack.c.l.b16 %v2110
        %v2239 = vunpack.c.h.b16 %v2110
        %v2240 = vunpack.c.l.b16 %v2111
        %v2241 = vunpack.c.h.b16 %v2111
        %v2242 = vunpack.c.l.b16 %v2112
        %v2243 = vunpack.c.h.b16 %v2112
        %v2244 = vunpack.c.l.b16 %v2113
        %v2245 = vunpack.c.h.b16 %v2113
        %v2246 = vunpack.c.l.b16 %v2114
        %v2247 = vunpack.c.h.b16 %v2114
        %v2248 = vunpack.c.l.b16 %v2115
        %v2249 = vunpack.c.h.b16 %v2115
        %v2250 = vunpack.c.l.b16 %v2116
        %v2251 = vunpack.c.h.b16 %v2116
        %v2252 = vunpack.c.l.b16 %v2117
        %v2253 = vunpack.c.h.b16 %v2117
        %v2254 = vunpack.c.l.b16 %v2118
        %v2255 = vunpack.c.h.b16 %v2118
        %v2256 = vunpack.c.l.b16 %v2119
        %v2257 = vunpack.c.h.b16 %v2119
        %v2258 = vunpack.c.l.b16 %v2120
        %v2259 = vunpack.c.h.b16 %v2120
        %v2260 = vunpack.c.l.b16 %v2121
        %v2261 = vunpack.c.h.b16 %v2121
        %v2262 = vunpack.c.l.b16 %v2122
        %v2263 = vunpack.c.h.b16 %v2122
        %v2264 = vunpack.c.l.b16 %v2123
        %v2265 = vunpack.c.h.b16 %v2123
        %v2266 = vunpack.c.l.b16 %v2124
        %v2267 = vunpack.c.h.b16 %v2124
        %v2268 = vunpack.c.l.b16 %v2125
        %v2269 = vunpack.c.h.b16 %v2125
        %v2270 = vunpack.c.l.b16 %v2126
        %v2271 = vunpack.c.h.b16 %v2126
        %v2272 = vunpack.c.l.b16 %v2127
        %v2273 = vunpack.c.h.b16 %v2127
        %v2274 = vunpack.c.l.b16 %v2128
        %v2275 = vunpack.c.h.b16 %v2128
        %v2276 = vunpack.c.l.b16 %v2129
        %v2277 = vunpack.c.h.b16 %v2129
        %v2278 = vunpack.c.l.b16 %v2130
        %v2279 = vunpack.c.h.b16 %v2130
        %v2280 = vunpack.c.l.b16 %v2131
        %v2281 = vunpack.c.h.b16 %v2131
        %v2282 = vunpack.c.l.b16 %v2132
        %v2283 = vunpack.c.h.b16 %v2132
        %v2284 = vunpack.c.l.b16 %v2133
        %v2285 = vunpack.c.h.b16 %v2133
        %v2286 = vunpack.c.l.b16 %v2134
        %v2287 = vunpack.c.h.b16 %v2134
        %v2288 = vunpack.c.l.b16 %v2135
        %v2289 = vunpack.c.h.b16 %v2135
        %v2290 = vunpack.c.l.b16 %v2136
        %v2291 = vunpack.c.h.b16 %v2136
        %v2292 = vunpack.c.l.b16 %v2137
        %v2293 = vunpack.c.h.b16 %v2137
        %v2294 = vunpack.c.l.b16 %v2138
        %v2295 = vunpack.c.h.b16 %v2138
        %v2296 = vunpack.c.l.b16 %v2139
        %v2297 = vunpack.c.h.b16 %v2139
        %v2298 = vunpack.c.l.b16 %v2140
        %v2299 = vunpack.c.h.b16 %v2140
        %v2300 = vunpack.c.l.b16 %v2141
        %v2301 = vunpack.c.h.b16 %v2141
        %v2302 = vunpack.c.l.b16 %v2142
        %v2303 = vunpack.c.h.b16 %v2142
        %v2304 = vunpack.c.l.b16 %v2143
        %v2305 = vunpack.c.h.b16 %v2143
        %v2306 = vunpack.c.l.b16 %v2144
        %v2307 = vunpack.c.h.b16 %v2144
        %v2308 = vunpack.c.l.b16 %v2145
        %v2309 = vunpack.c.h.b16 %v2145
        %v2310 = vunpack.c.l.b16 %v2146
        %v2311 = vunpack.c.h.b16 %v2146
        %v2312 = vunpack.c.l.b16 %v2147
        %v2313 = vunpack.c.h.b16 %v2147
        %v2314 = vunpack.c.l.b16 %v2148
        %v2315 = vunpack.c.h.b16 %v2148
        %v2316 = vunpack.c.l.b16 %v2149
        %v2317 = vunpack.c.h.b16 %v2149
        %v2318 = vpack.c.b16 %v2208, %v2206
        %v2319 = vpack.c.b16 %v2209, %v2207
        %v2320 = vpack.c.b16 %v2212, %v2210
        %v2321 = vpack.c.b16 %v2213, %v2211
        %v2322 = vpack.c.b16 %v2216, %v2214
        %v2323 = vpack.c.b16 %v2217, %v2215
        %v2324 = vpack.c.b16 %v2220, %v2218
        %v2325 = vpack.c.b16 %v2221, %v2219
        %v2326 = vpack.c.b16 %v2224, %v2222
        %v2327 = vpack.c.b16 %v2225, %v2223
        %v2328 = vpack.c.b16 %v2228, %v2226
        %v2329 = vpack.c.b16 %v2229, %v2227
        %v2330 = vpack.c.b16 %v2232, %v2230
        %v2331 = vpack.c.b16 %v2233, %v2231
        %v2332 = vpack.c.b16 %v2236, %v2234
        %v2333 = vpack.c.b16 %v2237, %v2235
        %v2334 = vpack.c.b16 %v2240, %v2238
        %v2335 = vpack.c.b16 %v2241, %v2239
        %v2336 = vpack.c.b16 %v2244, %v2242
        %v2337 = vpack.c.b16 %v2245, %v2243
        %v2338 = vpack.c.b16 %v2248, %v2246
        %v2339 = vpack.c.b16 %v2249, %v2247
        %v2340 = vpack.c.b16 %v2252, %v2250
        %v2341 = vpack.c.b16 %v2253, %v2251
        %v2342 = vpack.c.b16 %v2256, %v2254
        %v2343 = vpack.c.b16 %v2257, %v2255
        %v2344 = vpack.c.b16 %v2260, %v2258
        %v2345 = vpack.c.b16 %v2261, %v2259
        %v2346 = vpack.c.b16 %v2264, %v2262
        %v2347 = vpack.c.b16 %v2265, %v2263
        %v2348 = vpack.c.b16 %v2268, %v2266
        %v2349 = vpack.c.b16 %v2269, %v2267
        %v2350 = vpack.c.b16 %v2272, %v2270
        %v2351 = vpack.c.b16 %v2273, %v2271
        %v2352 = vpack.c.b16 %v2276, %v2274
        %v2353 = vpack.c.b16 %v2277, %v2275
        %v2354 = vpack.c.b16 %v2280, %v2278
        %v2355 = vpack.c.b16 %v2281, %v2279
        %v2356 = vpack.c.b16 %v2284, %v2282
        %v2357 = vpack.c.b16 %v2285, %v2283
        %v2358 = vpack.c.b16 %v2288, %v2286
        %v2359 = vpack.c.b16 %v2289, %v2287
        %v2360 = vpack.c.b16 %v2292, %v2290
        %v2361 = vpack.c.b16 %v2293, %v2291
        %v2362 = vpack.c.b16 %v2296, %v2294
        %v2363 = vpack.c.b16 %v2297, %v2295
        %v2364 = vpack.c.b16 %v2300, %v2298
        %v2365 = vpack.c.b16 %v2301, %v2299
        %v2366 = vpack.c.b16 %v2304, %v2302
        %v2367 = vpack.c.b16 %v2305, %v2303
        %v2368 = vpack.c.b16 %v2308, %v2306
        %v2369 = vpack.c.b16 %v2309, %v2307
        %v2370 = vpack.c.b16 %v2312, %v2310
        %v2371 = vpack.c.b16 %v2313, %v2311
        %v2372 = vpack.c.b16 %v2316, %v2314
        %v2373 = vpack.c.b16 %v2317, %v2315
        %2430 = vmatprep.subr.bf16.mxu0 %v2319
        %2431 = vmatpush1.bf16.msra.mxu0 %v2318
        %2432 = vmatprep.subr.bf16.mxu0 %v2321
        %2433 = vmatpush1.bf16.msra.mxu0 %v2320
        %2434 = vmatprep.subr.bf16.mxu0 %v2323
        %2435 = vmatpush1.bf16.msra.mxu0 %v2322
        %2436 = vmatprep.subr.bf16.mxu0 %v2325
        %2437 = vmatpush1.bf16.msra.mxu0 %v2324
        %2438 = vmatprep.subr.bf16.mxu0 %v2327
        %2439 = vmatpush1.bf16.msra.mxu0 %v2326
        %2440 = vmatprep.subr.bf16.mxu0 %v2329
        %2441 = vmatpush1.bf16.msra.mxu0 %v2328
        %2442 = vmatprep.subr.bf16.mxu0 %v2331
        %2443 = vmatpush1.bf16.msra.mxu0 %v2330
        %2444 = vmatprep.subr.bf16.mxu0 %v2333
        %2445 = vmatpush1.bf16.msra.mxu0 %v2332
        %2446 = vmatprep.subr.bf16.mxu0 %v2335
        %2447 = vmatpush1.bf16.msra.mxu0 %v2334
        %2448 = vmatprep.subr.bf16.mxu0 %v2337
        %2449 = vmatpush1.bf16.msra.mxu0 %v2336
        %2450 = vmatprep.subr.bf16.mxu0 %v2339
        %2451 = vmatpush1.bf16.msra.mxu0 %v2338
        %2452 = vmatprep.subr.bf16.mxu0 %v2341
        %2453 = vmatpush1.bf16.msra.mxu0 %v2340
        %2454 = vmatprep.subr.bf16.mxu0 %v2343
        %2455 = vmatpush1.bf16.msra.mxu0 %v2342
        %2456 = vmatprep.subr.bf16.mxu0 %v2345
        %2457 = vmatpush1.bf16.msra.mxu0 %v2344
        %2458 = vmatprep.subr.bf16.mxu0 %v2347
        %2459 = vmatpush1.bf16.msra.mxu0 %v2346
        %2460 = vmatprep.subr.bf16.mxu0 %v2349
        %2461 = vmatpush1.bf16.msra.mxu0 %v2348
        %2462 = vmatprep.mubr.bf16.mxu0 %v1718
        %2463 = vmatmul.mubr.bf16.gmra.mrb[0].mxu0 %v1717
        %v2464 = vpop.f32.mrb[0].mxu0
        %v2465 = vadd.f32 0.0, %v2464
        %v2466 = vpop.f32.mrb[0].mxu0
        %v2467 = vadd.f32 0.0, %v2466
        %v2468 = vpop.f32.mrb[0].mxu0
        %v2469 = vadd.f32 0.0, %v2468
        %v2470 = vpop.f32.mrb[0].mxu0
        %v2471 = vadd.f32 0.0, %v2470
        %2472 = vdwg.mxu0
        %2473 = vmatprep.subr.bf16.mxu0 %v2351
        %2474 = vmatpush1.bf16.msra.mxu0 %v2350
        %2475 = vmatprep.subr.bf16.mxu0 %v2353
        %2476 = vmatpush1.bf16.msra.mxu0 %v2352
        %2477 = vmatprep.subr.bf16.mxu0 %v2355
        %2478 = vmatpush1.bf16.msra.mxu0 %v2354
        %2479 = vmatprep.subr.bf16.mxu0 %v2357
        %2480 = vmatpush1.bf16.msra.mxu0 %v2356
        %2481 = vmatprep.subr.bf16.mxu0 %v2359
        %2482 = vmatpush1.bf16.msra.mxu0 %v2358
        %2483 = vmatprep.subr.bf16.mxu0 %v2361
        %2484 = vmatpush1.bf16.msra.mxu0 %v2360
        %2485 = vmatprep.subr.bf16.mxu0 %v2363
        %2486 = vmatpush1.bf16.msra.mxu0 %v2362
        %2487 = vmatprep.subr.bf16.mxu0 %v2365
        %2488 = vmatpush1.bf16.msra.mxu0 %v2364
        %2489 = vmatprep.subr.bf16.mxu0 %v2367
        %2490 = vmatpush1.bf16.msra.mxu0 %v2366
        %2491 = vmatprep.subr.bf16.mxu0 %v2369
        %2492 = vmatpush1.bf16.msra.mxu0 %v2368
        %2493 = vmatprep.subr.bf16.mxu0 %v2371
        %2494 = vmatpush1.bf16.msra.mxu0 %v2370
        %2495 = vmatprep.subr.bf16.mxu0 %v2373
        %2496 = vmatpush1.bf16.msra.mxu0 %v2372
        %2497 = vmatprep.subr.bf16.mxu0 0
        %2498 = vmatpush1.bf16.msra.mxu0 0
        %2499 = vmatprep.subr.bf16.mxu0 0
        %2500 = vmatpush1.bf16.msra.mxu0 0
        %2501 = vmatprep.subr.bf16.mxu0 0
        %2502 = vmatpush1.bf16.msra.mxu0 0
        %2503 = vmatprep.subr.bf16.mxu0 0
        %2504 = vmatpush1.bf16.msra.mxu0 0
        %2505 = vmatprep.mubr.bf16.mxu0 %v2006
        %2506 = vmatmul.mubr.bf16.gmra.mrb[0].mxu0 %v1719
        %v2507 = vpop.f32.mrb[0].mxu0
        %v2508 = vadd.f32 %v2465, %v2507
        %v2509 = vpop.f32.mrb[0].mxu0
        %v2510 = vadd.f32 %v2467, %v2509
        %v2511 = vpop.f32.mrb[0].mxu0
        %v2512 = vadd.f32 %v2469, %v2511
        %v2513 = vpop.f32.mrb[0].mxu0
        %v2514 = vadd.f32 %v2471, %v2513
        %2515 = vdwg.mxu0
        %v2516 = vmax.f32 %v2086, %v2508
        %v2517 = vmax.f32 %v2088, %v2510
        %v2518 = vmax.f32 %v2090, %v2512
        %v2519 = vmax.f32 %v2092, %v2514
        %v2520 = vpack.c.bf16 %v2518, %v2516
        %v2521 = vpack.c.bf16 %v2519, %v2517
        %v2523 = vshrl.u32 %v2520, 16
        %v2525 = vrot.slane %v2523, 7
        %v2526 = vshll.u32 %v2520, 16
        %v2528 = vor.u32 %v2525, %v2526
        %v2530 = vshrl.u32 %v2521, 16
        %v2532 = vrot.slane %v2530, 7
        %v2533 = vshll.u32 %v2521, 16
        %v2535 = vor.u32 %v2532, %v2533
        %v2538 = vsel %vm545, 0, %v2528
        %v2539 = vsel %vm545, 0, %v2535
        %vm2540 = vcmask 1047552
        %vm2541 = vmand %vm2540, %vm551
        %v2542 = vsel %vm2541, %v2538, 0
        %v2543 = vsel %vm2541, %v2539, 0
        %v2545 = vshrl.u32 %v2542, 16
        %v2547 = vshll.u32 %v2542, 16
        %v2549 = vrot.slane %v2547, 1
        %v2550 = vor.u32 %v2545, %v2549
        %v2552 = vshrl.u32 %v2543, 16
        %v2554 = vshll.u32 %v2543, 16
        %v2556 = vrot.slane %v2554, 1
        %v2557 = vor.u32 %v2552, %v2556
        %2558 = vrot.lane.b32.xlu0 %v2550, 96
        %v2559 = vpop.permute.xlu0 %2558
        %2560 = vrot.lane.b32.xlu0 %v2557, 96
        %v2561 = vpop.permute.xlu0 %2560
        %vm2562 = vcmask 785408
        %v2563 = vsel %vm2562, %v2559, %v2561
        %v2567 = vrot.slane %v2542, 1
        %v2568 = vrot.slane %v2543, 1
        %2569 = vrot.lane.b32.xlu0 %v2567, 64
        %v2570 = vpop.permute.xlu0 %2569
        %2571 = vrot.lane.b32.xlu0 %v2568, 64
        %v2572 = vpop.permute.xlu0 %2571
        %vm2573 = vcmask 523264
        %v2574 = vsel %vm2573, %v2570, %v2572
        %vm2576 = vcmask 785408
        %v2578 = vsel %vm2576, %v2543, %v2559
        %v2582 = vsel %vm2004, %v2561, %v2570
        %v2584 = vld [vmem:[%s5] sm:$0xff]
        %v2585 = vld [vmem:[%s5 + $0x8] sm:$0xff]
        %v2586 = vld [vmem:[%s5 + $0x10] sm:$0xff]
        %v2587 = vld [vmem:[%s5 + $0x18] sm:$0xff]
        %v2588 = vld [vmem:[%s5 + $0x20] sm:$0xff]
        %v2589 = vld [vmem:[%s5 + $0x28] sm:$0xff]
        %v2590 = vld [vmem:[%s5 + $0x30] sm:$0xff]
        %v2591 = vld [vmem:[%s5 + $0x38] sm:$0xff]
        %v2592 = vld [vmem:[%s5 + $0x40] sm:$0xff]
        %v2593 = vld [vmem:[%s5 + $0x48] sm:$0xff]
        %v2594 = vld [vmem:[%s5 + $0x50] sm:$0xff]
        %v2595 = vld [vmem:[%s5 + $0x58] sm:$0xff]
        %v2596 = vld [vmem:[%s5 + $0x60] sm:$0xff]
        %v2597 = vld [vmem:[%s5 + $0x68] sm:$0xff]
        %v2598 = vld [vmem:[%s5 + $0x70] sm:$0xff]
        %v2599 = vld [vmem:[%s5 + $0x78] sm:$0xff]
        %v2600 = vld [vmem:[%s5 + $0x80] sm:$0xff]
        %v2601 = vld [vmem:[%s5 + $0x88] sm:$0xff]
        %v2602 = vld [vmem:[%s5 + $0x90] sm:$0xff]
        %v2603 = vld [vmem:[%s5 + $0x98] sm:$0xff]
        %v2604 = vld [vmem:[%s5 + $0xa0] sm:$0xff]
        %v2605 = vld [vmem:[%s5 + $0xa8] sm:$0xff]
        %v2606 = vld [vmem:[%s5 + $0xb0] sm:$0xff]
        %v2607 = vld [vmem:[%s5 + $0xb8] sm:$0xff]
        %v2608 = vld [vmem:[%s5 + $0xc0] sm:$0xff]
        %v2609 = vld [vmem:[%s5 + $0xc8] sm:$0xff]
        %v2610 = vld [vmem:[%s5 + $0xd0] sm:$0xff]
        %v2611 = vld [vmem:[%s5 + $0xd8] sm:$0xff]
        %v2612 = vld [vmem:[%s5 + $0xe0] sm:$0xff]
        %v2613 = vld [vmem:[%s5 + $0xe8] sm:$0xff]
        %v2614 = vld [vmem:[%s5 + $0xf0] sm:$0xff]
        %v2615 = vld [vmem:[%s5 + $0xf8] sm:$0xff]
        %v2616 = vld [vmem:[%s5 + $0x100] sm:$0xff]
        %v2617 = vld [vmem:[%s5 + $0x108] sm:$0xff]
        %v2618 = vld [vmem:[%s5 + $0x110] sm:$0xff]
        %v2619 = vld [vmem:[%s5 + $0x118] sm:$0xff]
        %v2620 = vld [vmem:[%s5 + $0x120] sm:$0xff]
        %v2621 = vld [vmem:[%s5 + $0x128] sm:$0xff]
        %v2622 = vld [vmem:[%s5 + $0x130] sm:$0xff]
        %v2623 = vld [vmem:[%s5 + $0x138] sm:$0xff]
        %v2624 = vld [vmem:[%s5 + $0x140] sm:$0xff]
        %v2625 = vld [vmem:[%s5 + $0x148] sm:$0xff]
        %v2626 = vld [vmem:[%s5 + $0x150] sm:$0xff]
        %v2627 = vld [vmem:[%s5 + $0x158] sm:$0xff]
        %v2628 = vld [vmem:[%s5 + $0x160] sm:$0xff]
        %v2629 = vld [vmem:[%s5 + $0x168] sm:$0xff]
        %v2630 = vld [vmem:[%s5 + $0x170] sm:$0xff]
        %v2631 = vld [vmem:[%s5 + $0x178] sm:$0xff]
        %v2632 = vld [vmem:[%s5 + $0x180] sm:$0xff]
        %v2633 = vld [vmem:[%s5 + $0x188] sm:$0xff]
        %v2634 = vld [vmem:[%s5 + $0x190] sm:$0xff]
        %v2635 = vld [vmem:[%s5 + $0x198] sm:$0xff]
        %v2636 = vld [vmem:[%s5 + $0x1a0] sm:$0xff]
        %v2637 = vld [vmem:[%s5 + $0x1a8] sm:$0xff]
        %v2638 = vld [vmem:[%s5 + $0x1b0] sm:$0xff]
        %v2639 = vld [vmem:[%s5 + $0x1b8] sm:$0xff]
        %v2640 = vld [vmem:[%s5 + $0x1c0] sm:$0xff]
        %v2641 = vld [vmem:[%s5 + $0x1c8] sm:$0xff]
        %v2642 = vld [vmem:[%s5 + $0x1d0] sm:$0xff]
        %v2643 = vld [vmem:[%s5 + $0x1d8] sm:$0xff]
        %v2644 = vld [vmem:[%s5 + $0x1e0] sm:$0xff]
        %v2645 = vld [vmem:[%s5 + $0x1e8] sm:$0xff]
        %v2646 = vld [vmem:[%s5 + $0x1f0] sm:$0xff]
        %v2647 = vld [vmem:[%s5 + $0x1f8] sm:$0xff]
        %v2648 = vld [vmem:[%s5 + $0x200] sm:$0xff]
        %v2649 = vld [vmem:[%s5 + $0x208] sm:$0xff]
        %v2650 = vld [vmem:[%s5 + $0x210] sm:$0xff]
        %v2651 = vld [vmem:[%s5 + $0x218] sm:$0xff]
        %v2652 = vld [vmem:[%s5 + $0x220] sm:$0xff]
        %v2653 = vld [vmem:[%s5 + $0x228] sm:$0xff]
        %v2654 = vld [vmem:[%s5 + $0x230] sm:$0xff]
        %v2655 = vld [vmem:[%s5 + $0x238] sm:$0xff]
        %v2656 = vld [vmem:[%s5 + $0x240] sm:$0xff]
        %v2657 = vld [vmem:[%s5 + $0x248] sm:$0xff]
        %v2658 = vld [vmem:[%s5 + $0x250] sm:$0xff]
        %v2659 = vld [vmem:[%s5 + $0x258] sm:$0xff]
        %v2660 = vld [vmem:[%s5 + $0x260] sm:$0xff]
        %v2661 = vld [vmem:[%s5 + $0x268] sm:$0xff]
        %v2662 = vld [vmem:[%s5 + $0x270] sm:$0xff]
        %v2663 = vld [vmem:[%s5 + $0x278] sm:$0xff]
        %v2664 = vld [vmem:[%s5 + $0x280] sm:$0xff]
        %v2665 = vld [vmem:[%s5 + $0x288] sm:$0xff]
        %v2666 = vld [vmem:[%s5 + $0x290] sm:$0xff]
        %v2667 = vld [vmem:[%s5 + $0x298] sm:$0xff]
        %v2668 = vld [vmem:[%s5 + $0x2a0] sm:$0xff]
        %v2669 = vld [vmem:[%s5 + $0x2a8] sm:$0xff]
        %v2670 = vld [vmem:[%s5 + $0x2b0] sm:$0xff]
        %v2671 = vld [vmem:[%s5 + $0x2b8] sm:$0xff]
        %v2672 = vld [vmem:[%s5 + $0x2c0] sm:$0xff]
        %v2673 = vld [vmem:[%s5 + $0x2c8] sm:$0xff]
        %v2674 = vld [vmem:[%s5 + $0x2d0] sm:$0xff]
        %v2675 = vld [vmem:[%s5 + $0x2d8] sm:$0xff]
        %v2676 = vld [vmem:[%s5 + $0x2e0] sm:$0xff]
        %v2677 = vld [vmem:[%s5 + $0x2e8] sm:$0xff]
        %v2678 = vld [vmem:[%s5 + $0x2f0] sm:$0xff]
        %v2679 = vld [vmem:[%s5 + $0x2f8] sm:$0xff]
        %v2680 = vld [vmem:[%s5 + $0x300] sm:$0xff]
        %v2681 = vld [vmem:[%s5 + $0x308] sm:$0xff]
        %v2682 = vld [vmem:[%s5 + $0x310] sm:$0xff]
        %v2683 = vld [vmem:[%s5 + $0x318] sm:$0xff]
        %v2684 = vld [vmem:[%s5 + $0x320] sm:$0xff]
        %v2685 = vld [vmem:[%s5 + $0x328] sm:$0xff]
        %v2686 = vld [vmem:[%s5 + $0x330] sm:$0xff]
        %v2687 = vld [vmem:[%s5 + $0x338] sm:$0xff]
        %v2688 = vld [vmem:[%s5 + $0x340] sm:$0xff]
        %v2689 = vld [vmem:[%s5 + $0x348] sm:$0xff]
        %v2690 = vld [vmem:[%s5 + $0x350] sm:$0xff]
        %v2691 = vld [vmem:[%s5 + $0x358] sm:$0xff]
        %v2692 = vld [vmem:[%s5 + $0x360] sm:$0xff]
        %v2693 = vld [vmem:[%s5 + $0x368] sm:$0xff]
        %v2694 = vld [vmem:[%s5 + $0x370] sm:$0xff]
        %v2695 = vld [vmem:[%s5 + $0x378] sm:$0xff]
        %v2696 = vld [vmem:[%s5 + $0x380] sm:$0xff]
        %v2697 = vld [vmem:[%s5 + $0x388] sm:$0xff]
        %v2698 = vld [vmem:[%s5 + $0x390] sm:$0xff]
        %v2699 = vld [vmem:[%s5 + $0x398] sm:$0xff]
        %v2700 = vld [vmem:[%s5 + $0x3a0] sm:$0xff]
        %v2701 = vld [vmem:[%s5 + $0x3a8] sm:$0xff]
        %v2702 = vld [vmem:[%s5 + $0x3b0] sm:$0xff]
        %v2703 = vld [vmem:[%s5 + $0x3b8] sm:$0xff]
        %v2704 = vld [vmem:[%s5 + $0x3c0] sm:$0xff]
        %v2705 = vld [vmem:[%s5 + $0x3c8] sm:$0xff]
        %v2706 = vld [vmem:[%s5 + $0x3d0] sm:$0xff]
        %v2707 = vld [vmem:[%s5 + $0x3d8] sm:$0xff]
        %v2708 = vld [vmem:[%s5 + $0x3e0] sm:$0xff]
        %v2709 = vld [vmem:[%s5 + $0x3e8] sm:$0xff]
        %v2710 = vld [vmem:[%s5 + $0x3f0] sm:$0xff]
        %v2711 = vld [vmem:[%s5 + $0x3f8] sm:$0xff]
        %v2712 = vld [vmem:[%s5 + $0x400] sm:$0xff]
        %v2713 = vld [vmem:[%s5 + $0x408] sm:$0xff]
        %v2714 = vld [vmem:[%s5 + $0x410] sm:$0xff]
        %v2715 = vld [vmem:[%s5 + $0x418] sm:$0xff]
        %v2716 = vld [vmem:[%s5 + $0x420] sm:$0xff]
        %v2717 = vld [vmem:[%s5 + $0x428] sm:$0xff]
        %v2718 = vld [vmem:[%s5 + $0x430] sm:$0xff]
        %v2719 = vld [vmem:[%s5 + $0x438] sm:$0xff]
        %v2720 = vld [vmem:[%s5 + $0x440] sm:$0xff]
        %v2721 = vld [vmem:[%s5 + $0x448] sm:$0xff]
        %v2722 = vld [vmem:[%s5 + $0x450] sm:$0xff]
        %v2723 = vld [vmem:[%s5 + $0x458] sm:$0xff]
        %v2724 = vld [vmem:[%s5 + $0x460] sm:$0xff]
        %v2725 = vld [vmem:[%s5 + $0x468] sm:$0xff]
        %v2726 = vld [vmem:[%s5 + $0x470] sm:$0xff]
        %v2727 = vld [vmem:[%s5 + $0x478] sm:$0xff]
        %v2728 = vld [vmem:[%s5 + $0x480] sm:$0xff]
        %v2729 = vld [vmem:[%s5 + $0x488] sm:$0xff]
        %v2730 = vld [vmem:[%s5 + $0x490] sm:$0xff]
        %v2731 = vld [vmem:[%s5 + $0x498] sm:$0xff]
        %v2732 = vld [vmem:[%s5 + $0x4a0] sm:$0xff]
        %v2733 = vld [vmem:[%s5 + $0x4a8] sm:$0xff]
        %v2734 = vld [vmem:[%s5 + $0x4b0] sm:$0xff]
        %v2735 = vld [vmem:[%s5 + $0x4b8] sm:$0xff]
        %v2736 = vld [vmem:[%s5 + $0x4c0] sm:$0xff]
        %v2737 = vld [vmem:[%s5 + $0x4c8] sm:$0xff]
        %v2738 = vld [vmem:[%s5 + $0x4d0] sm:$0xff]
        %v2739 = vld [vmem:[%s5 + $0x4d8] sm:$0xff]
        %v2740 = vld [vmem:[%s5 + $0x4e0] sm:$0xff]
        %v2741 = vld [vmem:[%s5 + $0x4e8] sm:$0xff]
        %v2742 = vld [vmem:[%s5 + $0x4f0] sm:$0xff]
        %v2743 = vld [vmem:[%s5 + $0x4f8] sm:$0xff]
        %v2744 = vld [vmem:[%s5 + $0x500] sm:$0xff]
        %v2745 = vld [vmem:[%s5 + $0x508] sm:$0xff]
        %v2746 = vld [vmem:[%s5 + $0x510] sm:$0xff]
        %v2747 = vld [vmem:[%s5 + $0x518] sm:$0xff]
        %v2748 = vld [vmem:[%s5 + $0x520] sm:$0xff]
        %v2749 = vld [vmem:[%s5 + $0x528] sm:$0xff]
        %v2750 = vld [vmem:[%s5 + $0x530] sm:$0xff]
        %v2751 = vld [vmem:[%s5 + $0x538] sm:$0xff]
        %v2752 = vld [vmem:[%s6] sm:$0xf]
        %v2754 = vlaneseq
        %v2755 = vshrl.u32 %v2754, 7
        %v2756 = vsub.s32 0, %v2755
        %v2757 = vrot.slane %v2752, %v2756
        %v2758 = vlaneseq
        %v2759 = vshrl.u32 %v2758, 7
        %v2760 = vsub.s32 1, %v2759
        %v2761 = vrot.slane %v2752, %v2760
        %v2762 = vlaneseq
        %v2763 = vshrl.u32 %v2762, 7
        %v2764 = vsub.s32 2, %v2763
        %v2765 = vrot.slane %v2752, %v2764
        %v2766 = vlaneseq
        %v2767 = vshrl.u32 %v2766, 7
        %v2768 = vsub.s32 3, %v2767
        %v2769 = vrot.slane %v2752, %v2768
        %v2942 = vunpack.c.l.b16 %v2584
        %v2943 = vunpack.c.h.b16 %v2584
        %v2944 = vunpack.c.l.b16 %v2585
        %v2945 = vunpack.c.h.b16 %v2585
        %v2946 = vunpack.c.l.b16 %v2586
        %v2947 = vunpack.c.h.b16 %v2586
        %v2948 = vunpack.c.l.b16 %v2587
        %v2949 = vunpack.c.h.b16 %v2587
        %v2950 = vunpack.c.l.b16 %v2588
        %v2951 = vunpack.c.h.b16 %v2588
        %v2952 = vunpack.c.l.b16 %v2589
        %v2953 = vunpack.c.h.b16 %v2589
        %v2954 = vunpack.c.l.b16 %v2590
        %v2955 = vunpack.c.h.b16 %v2590
        %v2956 = vunpack.c.l.b16 %v2591
        %v2957 = vunpack.c.h.b16 %v2591
        %v2958 = vunpack.c.l.b16 %v2592
        %v2959 = vunpack.c.h.b16 %v2592
        %v2960 = vunpack.c.l.b16 %v2593
        %v2961 = vunpack.c.h.b16 %v2593
        %v2962 = vunpack.c.l.b16 %v2594
        %v2963 = vunpack.c.h.b16 %v2594
        %v2964 = vunpack.c.l.b16 %v2595
        %v2965 = vunpack.c.h.b16 %v2595
        %v2966 = vunpack.c.l.b16 %v2596
        %v2967 = vunpack.c.h.b16 %v2596
        %v2968 = vunpack.c.l.b16 %v2597
        %v2969 = vunpack.c.h.b16 %v2597
        %v2970 = vunpack.c.l.b16 %v2598
        %v2971 = vunpack.c.h.b16 %v2598
        %v2972 = vunpack.c.l.b16 %v2599
        %v2973 = vunpack.c.h.b16 %v2599
        %v2974 = vunpack.c.l.b16 %v2600
        %v2975 = vunpack.c.h.b16 %v2600
        %v2976 = vunpack.c.l.b16 %v2601
        %v2977 = vunpack.c.h.b16 %v2601
        %v2978 = vunpack.c.l.b16 %v2602
        %v2979 = vunpack.c.h.b16 %v2602
        %v2980 = vunpack.c.l.b16 %v2603
        %v2981 = vunpack.c.h.b16 %v2603
        %v2982 = vunpack.c.l.b16 %v2604
        %v2983 = vunpack.c.h.b16 %v2604
        %v2984 = vunpack.c.l.b16 %v2605
        %v2985 = vunpack.c.h.b16 %v2605
        %v2986 = vunpack.c.l.b16 %v2606
        %v2987 = vunpack.c.h.b16 %v2606
        %v2988 = vunpack.c.l.b16 %v2607
        %v2989 = vunpack.c.h.b16 %v2607
        %v2990 = vunpack.c.l.b16 %v2608
        %v2991 = vunpack.c.h.b16 %v2608
        %v2992 = vunpack.c.l.b16 %v2609
        %v2993 = vunpack.c.h.b16 %v2609
        %v2994 = vunpack.c.l.b16 %v2610
        %v2995 = vunpack.c.h.b16 %v2610
        %v2996 = vunpack.c.l.b16 %v2611
        %v2997 = vunpack.c.h.b16 %v2611
        %v2998 = vunpack.c.l.b16 %v2612
        %v2999 = vunpack.c.h.b16 %v2612
        %v3000 = vunpack.c.l.b16 %v2613
        %v3001 = vunpack.c.h.b16 %v2613
        %v3002 = vunpack.c.l.b16 %v2614
        %v3003 = vunpack.c.h.b16 %v2614
        %v3004 = vunpack.c.l.b16 %v2615
        %v3005 = vunpack.c.h.b16 %v2615
        %v3006 = vunpack.c.l.b16 %v2616
        %v3007 = vunpack.c.h.b16 %v2616
        %v3008 = vunpack.c.l.b16 %v2617
        %v3009 = vunpack.c.h.b16 %v2617
        %v3010 = vunpack.c.l.b16 %v2618
        %v3011 = vunpack.c.h.b16 %v2618
        %v3012 = vunpack.c.l.b16 %v2619
        %v3013 = vunpack.c.h.b16 %v2619
        %v3014 = vunpack.c.l.b16 %v2620
        %v3015 = vunpack.c.h.b16 %v2620
        %v3016 = vunpack.c.l.b16 %v2621
        %v3017 = vunpack.c.h.b16 %v2621
        %v3018 = vunpack.c.l.b16 %v2622
        %v3019 = vunpack.c.h.b16 %v2622
        %v3020 = vunpack.c.l.b16 %v2623
        %v3021 = vunpack.c.h.b16 %v2623
        %v3022 = vunpack.c.l.b16 %v2624
        %v3023 = vunpack.c.h.b16 %v2624
        %v3024 = vunpack.c.l.b16 %v2625
        %v3025 = vunpack.c.h.b16 %v2625
        %v3026 = vunpack.c.l.b16 %v2626
        %v3027 = vunpack.c.h.b16 %v2626
        %v3028 = vunpack.c.l.b16 %v2627
        %v3029 = vunpack.c.h.b16 %v2627
        %v3030 = vunpack.c.l.b16 %v2628
        %v3031 = vunpack.c.h.b16 %v2628
        %v3032 = vunpack.c.l.b16 %v2629
        %v3033 = vunpack.c.h.b16 %v2629
        %v3034 = vunpack.c.l.b16 %v2630
        %v3035 = vunpack.c.h.b16 %v2630
        %v3036 = vunpack.c.l.b16 %v2631
        %v3037 = vunpack.c.h.b16 %v2631
        %v3038 = vunpack.c.l.b16 %v2632
        %v3039 = vunpack.c.h.b16 %v2632
        %v3040 = vunpack.c.l.b16 %v2633
        %v3041 = vunpack.c.h.b16 %v2633
        %v3042 = vunpack.c.l.b16 %v2634
        %v3043 = vunpack.c.h.b16 %v2634
        %v3044 = vunpack.c.l.b16 %v2635
        %v3045 = vunpack.c.h.b16 %v2635
        %v3046 = vunpack.c.l.b16 %v2636
        %v3047 = vunpack.c.h.b16 %v2636
        %v3048 = vunpack.c.l.b16 %v2637
        %v3049 = vunpack.c.h.b16 %v2637
        %v3050 = vunpack.c.l.b16 %v2638
        %v3051 = vunpack.c.h.b16 %v2638
        %v3052 = vunpack.c.l.b16 %v2639
        %v3053 = vunpack.c.h.b16 %v2639
        %v3054 = vunpack.c.l.b16 %v2640
        %v3055 = vunpack.c.h.b16 %v2640
        %v3056 = vunpack.c.l.b16 %v2641
        %v3057 = vunpack.c.h.b16 %v2641
        %v3058 = vunpack.c.l.b16 %v2642
        %v3059 = vunpack.c.h.b16 %v2642
        %v3060 = vunpack.c.l.b16 %v2643
        %v3061 = vunpack.c.h.b16 %v2643
        %v3062 = vunpack.c.l.b16 %v2644
        %v3063 = vunpack.c.h.b16 %v2644
        %v3064 = vunpack.c.l.b16 %v2645
        %v3065 = vunpack.c.h.b16 %v2645
        %v3066 = vunpack.c.l.b16 %v2646
        %v3067 = vunpack.c.h.b16 %v2646
        %v3068 = vunpack.c.l.b16 %v2647
        %v3069 = vunpack.c.h.b16 %v2647
        %v3070 = vunpack.c.l.b16 %v2648
        %v3071 = vunpack.c.h.b16 %v2648
        %v3072 = vunpack.c.l.b16 %v2649
        %v3073 = vunpack.c.h.b16 %v2649
        %v3074 = vunpack.c.l.b16 %v2650
        %v3075 = vunpack.c.h.b16 %v2650
        %v3076 = vunpack.c.l.b16 %v2651
        %v3077 = vunpack.c.h.b16 %v2651
        %v3078 = vunpack.c.l.b16 %v2652
        %v3079 = vunpack.c.h.b16 %v2652
        %v3080 = vunpack.c.l.b16 %v2653
        %v3081 = vunpack.c.h.b16 %v2653
        %v3082 = vunpack.c.l.b16 %v2654
        %v3083 = vunpack.c.h.b16 %v2654
        %v3084 = vunpack.c.l.b16 %v2655
        %v3085 = vunpack.c.h.b16 %v2655
        %v3086 = vunpack.c.l.b16 %v2656
        %v3087 = vunpack.c.h.b16 %v2656
        %v3088 = vunpack.c.l.b16 %v2657
        %v3089 = vunpack.c.h.b16 %v2657
        %v3090 = vunpack.c.l.b16 %v2658
        %v3091 = vunpack.c.h.b16 %v2658
        %v3092 = vunpack.c.l.b16 %v2659
        %v3093 = vunpack.c.h.b16 %v2659
        %v3094 = vunpack.c.l.b16 %v2660
        %v3095 = vunpack.c.h.b16 %v2660
        %v3096 = vunpack.c.l.b16 %v2661
        %v3097 = vunpack.c.h.b16 %v2661
        %v3098 = vunpack.c.l.b16 %v2662
        %v3099 = vunpack.c.h.b16 %v2662
        %v3100 = vunpack.c.l.b16 %v2663
        %v3101 = vunpack.c.h.b16 %v2663
        %v3102 = vunpack.c.l.b16 %v2664
        %v3103 = vunpack.c.h.b16 %v2664
        %v3104 = vunpack.c.l.b16 %v2665
        %v3105 = vunpack.c.h.b16 %v2665
        %v3106 = vunpack.c.l.b16 %v2666
        %v3107 = vunpack.c.h.b16 %v2666
        %v3108 = vunpack.c.l.b16 %v2667
        %v3109 = vunpack.c.h.b16 %v2667
        %v3110 = vunpack.c.l.b16 %v2668
        %v3111 = vunpack.c.h.b16 %v2668
        %v3112 = vunpack.c.l.b16 %v2669
        %v3113 = vunpack.c.h.b16 %v2669
        %v3114 = vunpack.c.l.b16 %v2670
        %v3115 = vunpack.c.h.b16 %v2670
        %v3116 = vunpack.c.l.b16 %v2671
        %v3117 = vunpack.c.h.b16 %v2671
        %v3118 = vunpack.c.l.b16 %v2672
        %v3119 = vunpack.c.h.b16 %v2672
        %v3120 = vunpack.c.l.b16 %v2673
        %v3121 = vunpack.c.h.b16 %v2673
        %v3122 = vunpack.c.l.b16 %v2674
        %v3123 = vunpack.c.h.b16 %v2674
        %v3124 = vunpack.c.l.b16 %v2675
        %v3125 = vunpack.c.h.b16 %v2675
        %v3126 = vunpack.c.l.b16 %v2676
        %v3127 = vunpack.c.h.b16 %v2676
        %v3128 = vunpack.c.l.b16 %v2677
        %v3129 = vunpack.c.h.b16 %v2677
        %v3130 = vunpack.c.l.b16 %v2678
        %v3131 = vunpack.c.h.b16 %v2678
        %v3132 = vunpack.c.l.b16 %v2679
        %v3133 = vunpack.c.h.b16 %v2679
        %v3134 = vunpack.c.l.b16 %v2680
        %v3135 = vunpack.c.h.b16 %v2680
        %v3136 = vunpack.c.l.b16 %v2681
        %v3137 = vunpack.c.h.b16 %v2681
        %v3138 = vunpack.c.l.b16 %v2682
        %v3139 = vunpack.c.h.b16 %v2682
        %v3140 = vunpack.c.l.b16 %v2683
        %v3141 = vunpack.c.h.b16 %v2683
        %v3142 = vunpack.c.l.b16 %v2684
        %v3143 = vunpack.c.h.b16 %v2684
        %v3144 = vunpack.c.l.b16 %v2685
        %v3145 = vunpack.c.h.b16 %v2685
        %v3146 = vunpack.c.l.b16 %v2686
        %v3147 = vunpack.c.h.b16 %v2686
        %v3148 = vunpack.c.l.b16 %v2687
        %v3149 = vunpack.c.h.b16 %v2687
        %v3150 = vunpack.c.l.b16 %v2688
        %v3151 = vunpack.c.h.b16 %v2688
        %v3152 = vunpack.c.l.b16 %v2689
        %v3153 = vunpack.c.h.b16 %v2689
        %v3154 = vunpack.c.l.b16 %v2690
        %v3155 = vunpack.c.h.b16 %v2690
        %v3156 = vunpack.c.l.b16 %v2691
        %v3157 = vunpack.c.h.b16 %v2691
        %v3158 = vunpack.c.l.b16 %v2692
        %v3159 = vunpack.c.h.b16 %v2692
        %v3160 = vunpack.c.l.b16 %v2693
        %v3161 = vunpack.c.h.b16 %v2693
        %v3162 = vunpack.c.l.b16 %v2694
        %v3163 = vunpack.c.h.b16 %v2694
        %v3164 = vunpack.c.l.b16 %v2695
        %v3165 = vunpack.c.h.b16 %v2695
        %v3166 = vunpack.c.l.b16 %v2696
        %v3167 = vunpack.c.h.b16 %v2696
        %v3168 = vunpack.c.l.b16 %v2697
        %v3169 = vunpack.c.h.b16 %v2697
        %v3170 = vunpack.c.l.b16 %v2698
        %v3171 = vunpack.c.h.b16 %v2698
        %v3172 = vunpack.c.l.b16 %v2699
        %v3173 = vunpack.c.h.b16 %v2699
        %v3174 = vunpack.c.l.b16 %v2700
        %v3175 = vunpack.c.h.b16 %v2700
        %v3176 = vunpack.c.l.b16 %v2701
        %v3177 = vunpack.c.h.b16 %v2701
        %v3178 = vunpack.c.l.b16 %v2702
        %v3179 = vunpack.c.h.b16 %v2702
        %v3180 = vunpack.c.l.b16 %v2703
        %v3181 = vunpack.c.h.b16 %v2703
        %v3182 = vunpack.c.l.b16 %v2704
        %v3183 = vunpack.c.h.b16 %v2704
        %v3184 = vunpack.c.l.b16 %v2705
        %v3185 = vunpack.c.h.b16 %v2705
        %v3186 = vunpack.c.l.b16 %v2706
        %v3187 = vunpack.c.h.b16 %v2706
        %v3188 = vunpack.c.l.b16 %v2707
        %v3189 = vunpack.c.h.b16 %v2707
        %v3190 = vunpack.c.l.b16 %v2708
        %v3191 = vunpack.c.h.b16 %v2708
        %v3192 = vunpack.c.l.b16 %v2709
        %v3193 = vunpack.c.h.b16 %v2709
        %v3194 = vunpack.c.l.b16 %v2710
        %v3195 = vunpack.c.h.b16 %v2710
        %v3196 = vunpack.c.l.b16 %v2711
        %v3197 = vunpack.c.h.b16 %v2711
        %v3198 = vunpack.c.l.b16 %v2712
        %v3199 = vunpack.c.h.b16 %v2712
        %v3200 = vunpack.c.l.b16 %v2713
        %v3201 = vunpack.c.h.b16 %v2713
        %v3202 = vunpack.c.l.b16 %v2714
        %v3203 = vunpack.c.h.b16 %v2714
        %v3204 = vunpack.c.l.b16 %v2715
        %v3205 = vunpack.c.h.b16 %v2715
        %v3206 = vunpack.c.l.b16 %v2716
        %v3207 = vunpack.c.h.b16 %v2716
        %v3208 = vunpack.c.l.b16 %v2717
        %v3209 = vunpack.c.h.b16 %v2717
        %v3210 = vunpack.c.l.b16 %v2718
        %v3211 = vunpack.c.h.b16 %v2718
        %v3212 = vunpack.c.l.b16 %v2719
        %v3213 = vunpack.c.h.b16 %v2719
        %v3214 = vunpack.c.l.b16 %v2720
        %v3215 = vunpack.c.h.b16 %v2720
        %v3216 = vunpack.c.l.b16 %v2721
        %v3217 = vunpack.c.h.b16 %v2721
        %v3218 = vunpack.c.l.b16 %v2722
        %v3219 = vunpack.c.h.b16 %v2722
        %v3220 = vunpack.c.l.b16 %v2723
        %v3221 = vunpack.c.h.b16 %v2723
        %v3222 = vunpack.c.l.b16 %v2724
        %v3223 = vunpack.c.h.b16 %v2724
        %v3224 = vunpack.c.l.b16 %v2725
        %v3225 = vunpack.c.h.b16 %v2725
        %v3226 = vunpack.c.l.b16 %v2726
        %v3227 = vunpack.c.h.b16 %v2726
        %v3228 = vunpack.c.l.b16 %v2727
        %v3229 = vunpack.c.h.b16 %v2727
        %v3230 = vunpack.c.l.b16 %v2728
        %v3231 = vunpack.c.h.b16 %v2728
        %v3232 = vunpack.c.l.b16 %v2729
        %v3233 = vunpack.c.h.b16 %v2729
        %v3234 = vunpack.c.l.b16 %v2730
        %v3235 = vunpack.c.h.b16 %v2730
        %v3236 = vunpack.c.l.b16 %v2731
        %v3237 = vunpack.c.h.b16 %v2731
        %v3238 = vunpack.c.l.b16 %v2732
        %v3239 = vunpack.c.h.b16 %v2732
        %v3240 = vunpack.c.l.b16 %v2733
        %v3241 = vunpack.c.h.b16 %v2733
        %v3242 = vunpack.c.l.b16 %v2734
        %v3243 = vunpack.c.h.b16 %v2734
        %v3244 = vunpack.c.l.b16 %v2735
        %v3245 = vunpack.c.h.b16 %v2735
        %v3246 = vunpack.c.l.b16 %v2736
        %v3247 = vunpack.c.h.b16 %v2736
        %v3248 = vunpack.c.l.b16 %v2737
        %v3249 = vunpack.c.h.b16 %v2737
        %v3250 = vunpack.c.l.b16 %v2738
        %v3251 = vunpack.c.h.b16 %v2738
        %v3252 = vunpack.c.l.b16 %v2739
        %v3253 = vunpack.c.h.b16 %v2739
        %v3254 = vunpack.c.l.b16 %v2740
        %v3255 = vunpack.c.h.b16 %v2740
        %v3256 = vunpack.c.l.b16 %v2741
        %v3257 = vunpack.c.h.b16 %v2741
        %v3258 = vunpack.c.l.b16 %v2742
        %v3259 = vunpack.c.h.b16 %v2742
        %v3260 = vunpack.c.l.b16 %v2743
        %v3261 = vunpack.c.h.b16 %v2743
        %v3262 = vunpack.c.l.b16 %v2744
        %v3263 = vunpack.c.h.b16 %v2744
        %v3264 = vunpack.c.l.b16 %v2745
        %v3265 = vunpack.c.h.b16 %v2745
        %v3266 = vunpack.c.l.b16 %v2746
        %v3267 = vunpack.c.h.b16 %v2746
        %v3268 = vunpack.c.l.b16 %v2747
        %v3269 = vunpack.c.h.b16 %v2747
        %v3270 = vunpack.c.l.b16 %v2748
        %v3271 = vunpack.c.h.b16 %v2748
        %v3272 = vunpack.c.l.b16 %v2749
        %v3273 = vunpack.c.h.b16 %v2749
        %v3274 = vunpack.c.l.b16 %v2750
        %v3275 = vunpack.c.h.b16 %v2750
        %v3276 = vunpack.c.l.b16 %v2751
        %v3277 = vunpack.c.h.b16 %v2751
        %v3278 = vpack.c.b16 %v2946, %v2942
        %v3279 = vpack.c.b16 %v2947, %v2943
        %v3280 = vpack.c.b16 %v2948, %v2944
        %v3281 = vpack.c.b16 %v2949, %v2945
        %v3282 = vpack.c.b16 %v2954, %v2950
        %v3283 = vpack.c.b16 %v2955, %v2951
        %v3284 = vpack.c.b16 %v2956, %v2952
        %v3285 = vpack.c.b16 %v2957, %v2953
        %v3286 = vpack.c.b16 %v2962, %v2958
        %v3287 = vpack.c.b16 %v2963, %v2959
        %v3288 = vpack.c.b16 %v2964, %v2960
        %v3289 = vpack.c.b16 %v2965, %v2961
        %v3290 = vpack.c.b16 %v2970, %v2966
        %v3291 = vpack.c.b16 %v2971, %v2967
        %v3292 = vpack.c.b16 %v2972, %v2968
        %v3293 = vpack.c.b16 %v2973, %v2969
        %v3294 = vpack.c.b16 %v2978, %v2974
        %v3295 = vpack.c.b16 %v2979, %v2975
        %v3296 = vpack.c.b16 %v2980, %v2976
        %v3297 = vpack.c.b16 %v2981, %v2977
        %v3298 = vpack.c.b16 %v2986, %v2982
        %v3299 = vpack.c.b16 %v2987, %v2983
        %v3300 = vpack.c.b16 %v2988, %v2984
        %v3301 = vpack.c.b16 %v2989, %v2985
        %v3302 = vpack.c.b16 %v2994, %v2990
        %v3303 = vpack.c.b16 %v2995, %v2991
        %v3304 = vpack.c.b16 %v2996, %v2992
        %v3305 = vpack.c.b16 %v2997, %v2993
        %v3306 = vpack.c.b16 %v3002, %v2998
        %v3307 = vpack.c.b16 %v3003, %v2999
        %v3308 = vpack.c.b16 %v3004, %v3000
        %v3309 = vpack.c.b16 %v3005, %v3001
        %v3310 = vpack.c.b16 %v3010, %v3006
        %v3311 = vpack.c.b16 %v3011, %v3007
        %v3312 = vpack.c.b16 %v3012, %v3008
        %v3313 = vpack.c.b16 %v3013, %v3009
        %v3314 = vpack.c.b16 %v3018, %v3014
        %v3315 = vpack.c.b16 %v3019, %v3015
        %v3316 = vpack.c.b16 %v3020, %v3016
        %v3317 = vpack.c.b16 %v3021, %v3017
        %v3318 = vpack.c.b16 %v3026, %v3022
        %v3319 = vpack.c.b16 %v3027, %v3023
        %v3320 = vpack.c.b16 %v3028, %v3024
        %v3321 = vpack.c.b16 %v3029, %v3025
        %v3322 = vpack.c.b16 %v3034, %v3030
        %v3323 = vpack.c.b16 %v3035, %v3031
        %v3324 = vpack.c.b16 %v3036, %v3032
        %v3325 = vpack.c.b16 %v3037, %v3033
        %v3326 = vpack.c.b16 %v3042, %v3038
        %v3327 = vpack.c.b16 %v3043, %v3039
        %v3328 = vpack.c.b16 %v3044, %v3040
        %v3329 = vpack.c.b16 %v3045, %v3041
        %v3330 = vpack.c.b16 %v3050, %v3046
        %v3331 = vpack.c.b16 %v3051, %v3047
        %v3332 = vpack.c.b16 %v3052, %v3048
        %v3333 = vpack.c.b16 %v3053, %v3049
        %v3334 = vpack.c.b16 %v3058, %v3054
        %v3335 = vpack.c.b16 %v3059, %v3055
        %v3336 = vpack.c.b16 %v3060, %v3056
        %v3337 = vpack.c.b16 %v3061, %v3057
        %v3338 = vpack.c.b16 %v3066, %v3062
        %v3339 = vpack.c.b16 %v3067, %v3063
        %v3340 = vpack.c.b16 %v3068, %v3064
        %v3341 = vpack.c.b16 %v3069, %v3065
        %v3342 = vpack.c.b16 %v3074, %v3070
        %v3343 = vpack.c.b16 %v3075, %v3071
        %v3344 = vpack.c.b16 %v3076, %v3072
        %v3345 = vpack.c.b16 %v3077, %v3073
        %v3346 = vpack.c.b16 %v3082, %v3078
        %v3347 = vpack.c.b16 %v3083, %v3079
        %v3348 = vpack.c.b16 %v3084, %v3080
        %v3349 = vpack.c.b16 %v3085, %v3081
        %v3350 = vpack.c.b16 %v3090, %v3086
        %v3351 = vpack.c.b16 %v3091, %v3087
        %v3352 = vpack.c.b16 %v3092, %v3088
        %v3353 = vpack.c.b16 %v3093, %v3089
        %v3354 = vpack.c.b16 %v3098, %v3094
        %v3355 = vpack.c.b16 %v3099, %v3095
        %v3356 = vpack.c.b16 %v3100, %v3096
        %v3357 = vpack.c.b16 %v3101, %v3097
        %v3358 = vpack.c.b16 %v3106, %v3102
        %v3359 = vpack.c.b16 %v3107, %v3103
        %v3360 = vpack.c.b16 %v3108, %v3104
        %v3361 = vpack.c.b16 %v3109, %v3105
        %v3362 = vpack.c.b16 %v3114, %v3110
        %v3363 = vpack.c.b16 %v3115, %v3111
        %v3364 = vpack.c.b16 %v3116, %v3112
        %v3365 = vpack.c.b16 %v3117, %v3113
        %v3366 = vpack.c.b16 %v3122, %v3118
        %v3367 = vpack.c.b16 %v3123, %v3119
        %v3368 = vpack.c.b16 %v3124, %v3120
        %v3369 = vpack.c.b16 %v3125, %v3121
        %v3370 = vpack.c.b16 %v3130, %v3126
        %v3371 = vpack.c.b16 %v3131, %v3127
        %v3372 = vpack.c.b16 %v3132, %v3128
        %v3373 = vpack.c.b16 %v3133, %v3129
        %v3374 = vpack.c.b16 %v3138, %v3134
        %v3375 = vpack.c.b16 %v3139, %v3135
        %v3376 = vpack.c.b16 %v3140, %v3136
        %v3377 = vpack.c.b16 %v3141, %v3137
        %v3378 = vpack.c.b16 %v3146, %v3142
        %v3379 = vpack.c.b16 %v3147, %v3143
        %v3380 = vpack.c.b16 %v3148, %v3144
        %v3381 = vpack.c.b16 %v3149, %v3145
        %v3382 = vpack.c.b16 %v3154, %v3150
        %v3383 = vpack.c.b16 %v3155, %v3151
        %v3384 = vpack.c.b16 %v3156, %v3152
        %v3385 = vpack.c.b16 %v3157, %v3153
        %v3386 = vpack.c.b16 %v3162, %v3158
        %v3387 = vpack.c.b16 %v3163, %v3159
        %v3388 = vpack.c.b16 %v3164, %v3160
        %v3389 = vpack.c.b16 %v3165, %v3161
        %v3390 = vpack.c.b16 %v3170, %v3166
        %v3391 = vpack.c.b16 %v3171, %v3167
        %v3392 = vpack.c.b16 %v3172, %v3168
        %v3393 = vpack.c.b16 %v3173, %v3169
        %v3394 = vpack.c.b16 %v3178, %v3174
        %v3395 = vpack.c.b16 %v3179, %v3175
        %v3396 = vpack.c.b16 %v3180, %v3176
        %v3397 = vpack.c.b16 %v3181, %v3177
        %v3398 = vpack.c.b16 %v3186, %v3182
        %v3399 = vpack.c.b16 %v3187, %v3183
        %v3400 = vpack.c.b16 %v3188, %v3184
        %v3401 = vpack.c.b16 %v3189, %v3185
        %v3402 = vpack.c.b16 %v3194, %v3190
        %v3403 = vpack.c.b16 %v3195, %v3191
        %v3404 = vpack.c.b16 %v3196, %v3192
        %v3405 = vpack.c.b16 %v3197, %v3193
        %v3406 = vpack.c.b16 %v3202, %v3198
        %v3407 = vpack.c.b16 %v3203, %v3199
        %v3408 = vpack.c.b16 %v3204, %v3200
        %v3409 = vpack.c.b16 %v3205, %v3201
        %v3410 = vpack.c.b16 %v3210, %v3206
        %v3411 = vpack.c.b16 %v3211, %v3207
        %v3412 = vpack.c.b16 %v3212, %v3208
        %v3413 = vpack.c.b16 %v3213, %v3209
        %v3414 = vpack.c.b16 %v3218, %v3214
        %v3415 = vpack.c.b16 %v3219, %v3215
        %v3416 = vpack.c.b16 %v3220, %v3216
        %v3417 = vpack.c.b16 %v3221, %v3217
        %v3418 = vpack.c.b16 %v3226, %v3222
        %v3419 = vpack.c.b16 %v3227, %v3223
        %v3420 = vpack.c.b16 %v3228, %v3224
        %v3421 = vpack.c.b16 %v3229, %v3225
        %v3422 = vpack.c.b16 %v3234, %v3230
        %v3423 = vpack.c.b16 %v3235, %v3231
        %v3424 = vpack.c.b16 %v3236, %v3232
        %v3425 = vpack.c.b16 %v3237, %v3233
        %v3426 = vpack.c.b16 %v3242, %v3238
        %v3427 = vpack.c.b16 %v3243, %v3239
        %v3428 = vpack.c.b16 %v3244, %v3240
        %v3429 = vpack.c.b16 %v3245, %v3241
        %v3430 = vpack.c.b16 %v3250, %v3246
        %v3431 = vpack.c.b16 %v3251, %v3247
        %v3432 = vpack.c.b16 %v3252, %v3248
        %v3433 = vpack.c.b16 %v3253, %v3249
        %v3434 = vpack.c.b16 %v3258, %v3254
        %v3435 = vpack.c.b16 %v3259, %v3255
        %v3436 = vpack.c.b16 %v3260, %v3256
        %v3437 = vpack.c.b16 %v3261, %v3257
        %v3438 = vpack.c.b16 %v3266, %v3262
        %v3439 = vpack.c.b16 %v3267, %v3263
        %v3440 = vpack.c.b16 %v3268, %v3264
        %v3441 = vpack.c.b16 %v3269, %v3265
        %v3442 = vpack.c.b16 %v3274, %v3270
        %v3443 = vpack.c.b16 %v3275, %v3271
        %v3444 = vpack.c.b16 %v3276, %v3272
        %v3445 = vpack.c.b16 %v3277, %v3273
        %vm3614 = vcmask 261120
        %v3616 = vsel %vm3614, %v2572, 0
        %3618 = vmatprep.subr.bf16.mxu0 %v3279
        %3619 = vmatpush1.bf16.msra.mxu0 %v3278
        %3620 = vmatprep.subr.bf16.mxu0 %v3283
        %3621 = vmatpush1.bf16.msra.mxu0 %v3282
        %3622 = vmatprep.subr.bf16.mxu0 %v3287
        %3623 = vmatpush1.bf16.msra.mxu0 %v3286
        %3624 = vmatprep.subr.bf16.mxu0 %v3291
        %3625 = vmatpush1.bf16.msra.mxu0 %v3290
        %3626 = vmatprep.subr.bf16.mxu0 %v3295
        %3627 = vmatpush1.bf16.msra.mxu0 %v3294
        %3628 = vmatprep.subr.bf16.mxu0 %v3299
        %3629 = vmatpush1.bf16.msra.mxu0 %v3298
        %3630 = vmatprep.subr.bf16.mxu0 %v3303
        %3631 = vmatpush1.bf16.msra.mxu0 %v3302
        %3632 = vmatprep.subr.bf16.mxu0 %v3307
        %3633 = vmatpush1.bf16.msra.mxu0 %v3306
        %3634 = vmatprep.subr.bf16.mxu0 %v3311
        %3635 = vmatpush1.bf16.msra.mxu0 %v3310
        %3636 = vmatprep.subr.bf16.mxu0 %v3315
        %3637 = vmatpush1.bf16.msra.mxu0 %v3314
        %3638 = vmatprep.subr.bf16.mxu0 %v3319
        %3639 = vmatpush1.bf16.msra.mxu0 %v3318
        %3640 = vmatprep.subr.bf16.mxu0 %v3323
        %3641 = vmatpush1.bf16.msra.mxu0 %v3322
        %3642 = vmatprep.subr.bf16.mxu0 %v3327
        %3643 = vmatpush1.bf16.msra.mxu0 %v3326
        %3644 = vmatprep.subr.bf16.mxu0 %v3331
        %3645 = vmatpush1.bf16.msra.mxu0 %v3330
        %3646 = vmatprep.subr.bf16.mxu0 %v3335
        %3647 = vmatpush1.bf16.msra.mxu0 %v3334
        %3648 = vmatprep.subr.bf16.mxu0 %v3339
        %3649 = vmatpush1.bf16.msra.mxu0 %v3338
        %3650 = vmatprep.mubr.bf16.mxu0 %v2578
        %3651 = vmatmul.mubr.bf16.gmra.mrb[0].mxu0 %v2542
        %v3652 = vpop.f32.mrb[0].mxu0
        %v3653 = vadd.f32 %v2757, %v3652
        %v3654 = vpop.f32.mrb[0].mxu0
        %v3655 = vadd.f32 %v2761, %v3654
        %v3656 = vpop.f32.mrb[0].mxu0
        %v3657 = vadd.f32 %v2757, %v3656
        %v3658 = vpop.f32.mrb[0].mxu0
        %v3659 = vadd.f32 %v2761, %v3658
        %3660 = vdwg.mxu0
        %3661 = vmatprep.subr.bf16.mxu0 %v3343
        %3662 = vmatpush1.bf16.msra.mxu0 %v3342
        %3663 = vmatprep.subr.bf16.mxu0 %v3347
        %3664 = vmatpush1.bf16.msra.mxu0 %v3346
        %3665 = vmatprep.subr.bf16.mxu0 %v3351
        %3666 = vmatpush1.bf16.msra.mxu0 %v3350
        %3667 = vmatprep.subr.bf16.mxu0 %v3355
        %3668 = vmatpush1.bf16.msra.mxu0 %v3354
        %3669 = vmatprep.subr.bf16.mxu0 %v3359
        %3670 = vmatpush1.bf16.msra.mxu0 %v3358
        %3671 = vmatprep.subr.bf16.mxu0 %v3363
        %3672 = vmatpush1.bf16.msra.mxu0 %v3362
        %3673 = vmatprep.subr.bf16.mxu0 %v3367
        %3674 = vmatpush1.bf16.msra.mxu0 %v3366
        %3675 = vmatprep.subr.bf16.mxu0 %v3371
        %3676 = vmatpush1.bf16.msra.mxu0 %v3370
        %3677 = vmatprep.subr.bf16.mxu0 %v3375
        %3678 = vmatpush1.bf16.msra.mxu0 %v3374
        %3679 = vmatprep.subr.bf16.mxu0 %v3379
        %3680 = vmatpush1.bf16.msra.mxu0 %v3378
        %3681 = vmatprep.subr.bf16.mxu0 %v3383
        %3682 = vmatpush1.bf16.msra.mxu0 %v3382
        %3683 = vmatprep.subr.bf16.mxu0 %v3387
        %3684 = vmatpush1.bf16.msra.mxu0 %v3386
        %3685 = vmatprep.subr.bf16.mxu0 %v3391
        %3686 = vmatpush1.bf16.msra.mxu0 %v3390
        %3687 = vmatprep.subr.bf16.mxu0 %v3395
        %3688 = vmatpush1.bf16.msra.mxu0 %v3394
        %3689 = vmatprep.subr.bf16.mxu0 %v3399
        %3690 = vmatpush1.bf16.msra.mxu0 %v3398
        %3691 = vmatprep.subr.bf16.mxu0 %v3403
        %3692 = vmatpush1.bf16.msra.mxu0 %v3402
        %3693 = vmatprep.mubr.bf16.mxu0 %v2582
        %3694 = vmatmul.mubr.bf16.gmra.mrb[0].mxu0 %v2563
        %v3695 = vpop.f32.mrb[0].mxu0
        %v3696 = vadd.f32 %v3653, %v3695
        %v3697 = vpop.f32.mrb[0].mxu0
        %v3698 = vadd.f32 %v3655, %v3697
        %v3699 = vpop.f32.mrb[0].mxu0
        %v3700 = vadd.f32 %v3657, %v3699
        %v3701 = vpop.f32.mrb[0].mxu0
        %v3702 = vadd.f32 %v3659, %v3701
        %3703 = vdwg.mxu0
        %3704 = vmatprep.subr.bf16.mxu0 %v3407
        %3705 = vmatpush1.bf16.msra.mxu0 %v3406
        %3706 = vmatprep.subr.bf16.mxu0 %v3411
        %3707 = vmatpush1.bf16.msra.mxu0 %v3410
        %3708 = vmatprep.subr.bf16.mxu0 %v3415
        %3709 = vmatpush1.bf16.msra.mxu0 %v3414
        %3710 = vmatprep.subr.bf16.mxu0 %v3419
        %3711 = vmatpush1.bf16.msra.mxu0 %v3418
        %3712 = vmatprep.subr.bf16.mxu0 %v3423
        %3713 = vmatpush1.bf16.msra.mxu0 %v3422
        %3714 = vmatprep.subr.bf16.mxu0 %v3427
        %3715 = vmatpush1.bf16.msra.mxu0 %v3426
        %3716 = vmatprep.subr.bf16.mxu0 %v3431
        %3717 = vmatpush1.bf16.msra.mxu0 %v3430
        %3718 = vmatprep.subr.bf16.mxu0 %v3435
        %3719 = vmatpush1.bf16.msra.mxu0 %v3434
        %3720 = vmatprep.subr.bf16.mxu0 %v3439
        %3721 = vmatpush1.bf16.msra.mxu0 %v3438
        %3722 = vmatprep.subr.bf16.mxu0 %v3443
        %3723 = vmatpush1.bf16.msra.mxu0 %v3442
        %3724 = vmatprep.subr.bf16.mxu0 0
        %3725 = vmatpush1.bf16.msra.mxu0 0
        %3726 = vmatprep.subr.bf16.mxu0 0
        %3727 = vmatpush1.bf16.msra.mxu0 0
        %3728 = vmatprep.subr.bf16.mxu0 0
        %3729 = vmatpush1.bf16.msra.mxu0 0
        %3730 = vmatprep.subr.bf16.mxu0 0
        %3731 = vmatpush1.bf16.msra.mxu0 0
        %3732 = vmatprep.subr.bf16.mxu0 0
        %3733 = vmatpush1.bf16.msra.mxu0 0
        %3734 = vmatprep.subr.bf16.mxu0 0
        %3735 = vmatpush1.bf16.msra.mxu0 0
        %3736 = vmatprep.mubr.bf16.mxu0 %v3616
        %3737 = vmatmul.mubr.bf16.gmra.mrb[0].mxu0 %v2574
        %v3738 = vpop.f32.mrb[0].mxu0
        %v3739 = vadd.f32 %v3696, %v3738
        %v3740 = vpop.f32.mrb[0].mxu0
        %v3741 = vadd.f32 %v3698, %v3740
        %v3742 = vpop.f32.mrb[0].mxu0
        %v3743 = vadd.f32 %v3700, %v3742
        %v3744 = vpop.f32.mrb[0].mxu0
        %v3745 = vadd.f32 %v3702, %v3744
        %3746 = vdwg.mxu0
        %3747 = vmatprep.subr.bf16.mxu0 %v3281
        %3748 = vmatpush1.bf16.msra.mxu0 %v3280
        %3749 = vmatprep.subr.bf16.mxu0 %v3285
        %3750 = vmatpush1.bf16.msra.mxu0 %v3284
        %3751 = vmatprep.subr.bf16.mxu0 %v3289
        %3752 = vmatpush1.bf16.msra.mxu0 %v3288
        %3753 = vmatprep.subr.bf16.mxu0 %v3293
        %3754 = vmatpush1.bf16.msra.mxu0 %v3292
        %3755 = vmatprep.subr.bf16.mxu0 %v3297
        %3756 = vmatpush1.bf16.msra.mxu0 %v3296
        %3757 = vmatprep.subr.bf16.mxu0 %v3301
        %3758 = vmatpush1.bf16.msra.mxu0 %v3300
        %3759 = vmatprep.subr.bf16.mxu0 %v3305
        %3760 = vmatpush1.bf16.msra.mxu0 %v3304
        %3761 = vmatprep.subr.bf16.mxu0 %v3309
        %3762 = vmatpush1.bf16.msra.mxu0 %v3308
        %3763 = vmatprep.subr.bf16.mxu0 %v3313
        %3764 = vmatpush1.bf16.msra.mxu0 %v3312
        %3765 = vmatprep.subr.bf16.mxu0 %v3317
        %3766 = vmatpush1.bf16.msra.mxu0 %v3316
        %3767 = vmatprep.subr.bf16.mxu0 %v3321
        %3768 = vmatpush1.bf16.msra.mxu0 %v3320
        %3769 = vmatprep.subr.bf16.mxu0 %v3325
        %3770 = vmatpush1.bf16.msra.mxu0 %v3324
        %3771 = vmatprep.subr.bf16.mxu0 %v3329
        %3772 = vmatpush1.bf16.msra.mxu0 %v3328
        %3773 = vmatprep.subr.bf16.mxu0 %v3333
        %3774 = vmatpush1.bf16.msra.mxu0 %v3332
        %3775 = vmatprep.subr.bf16.mxu0 %v3337
        %3776 = vmatpush1.bf16.msra.mxu0 %v3336
        %3777 = vmatprep.subr.bf16.mxu0 %v3341
        %3778 = vmatpush1.bf16.msra.mxu0 %v3340
        %3779 = vmatprep.mubr.bf16.mxu0 %v2578
        %3780 = vmatmul.mubr.bf16.gmra.mrb[0].mxu0 %v2542
        %v3781 = vpop.f32.mrb[0].mxu0
        %v3782 = vadd.f32 %v2765, %v3781
        %v3783 = vpop.f32.mrb[0].mxu0
        %v3784 = vadd.f32 %v2769, %v3783
        %v3785 = vpop.f32.mrb[0].mxu0
        %v3786 = vadd.f32 %v2765, %v3785
        %v3787 = vpop.f32.mrb[0].mxu0
        %v3788 = vadd.f32 %v2769, %v3787
        %3789 = vdwg.mxu0
        %3790 = vmatprep.subr.bf16.mxu0 %v3345
        %3791 = vmatpush1.bf16.msra.mxu0 %v3344
        %3792 = vmatprep.subr.bf16.mxu0 %v3349
        %3793 = vmatpush1.bf16.msra.mxu0 %v3348
        %3794 = vmatprep.subr.bf16.mxu0 %v3353
        %3795 = vmatpush1.bf16.msra.mxu0 %v3352
        %3796 = vmatprep.subr.bf16.mxu0 %v3357
        %3797 = vmatpush1.bf16.msra.mxu0 %v3356
        %3798 = vmatprep.subr.bf16.mxu0 %v3361
        %3799 = vmatpush1.bf16.msra.mxu0 %v3360
        %3800 = vmatprep.subr.bf16.mxu0 %v3365
        %3801 = vmatpush1.bf16.msra.mxu0 %v3364
        %3802 = vmatprep.subr.bf16.mxu0 %v3369
        %3803 = vmatpush1.bf16.msra.mxu0 %v3368
        %3804 = vmatprep.subr.bf16.mxu0 %v3373
        %3805 = vmatpush1.bf16.msra.mxu0 %v3372
        %3806 = vmatprep.subr.bf16.mxu0 %v3377
        %3807 = vmatpush1.bf16.msra.mxu0 %v3376
        %3808 = vmatprep.subr.bf16.mxu0 %v3381
        %3809 = vmatpush1.bf16.msra.mxu0 %v3380
        %3810 = vmatprep.subr.bf16.mxu0 %v3385
        %3811 = vmatpush1.bf16.msra.mxu0 %v3384
        %3812 = vmatprep.subr.bf16.mxu0 %v3389
        %3813 = vmatpush1.bf16.msra.mxu0 %v3388
        %3814 = vmatprep.subr.bf16.mxu0 %v3393
        %3815 = vmatpush1.bf16.msra.mxu0 %v3392
        %3816 = vmatprep.subr.bf16.mxu0 %v3397
        %3817 = vmatpush1.bf16.msra.mxu0 %v3396
        %3818 = vmatprep.subr.bf16.mxu0 %v3401
        %3819 = vmatpush1.bf16.msra.mxu0 %v3400
        %3820 = vmatprep.subr.bf16.mxu0 %v3405
        %3821 = vmatpush1.bf16.msra.mxu0 %v3404
        %3822 = vmatprep.mubr.bf16.mxu0 %v2582
        %3823 = vmatmul.mubr.bf16.gmra.mrb[0].mxu0 %v2563
        %v3824 = vpop.f32.mrb[0].mxu0
        %v3825 = vadd.f32 %v3782, %v3824
        %v3826 = vpop.f32.mrb[0].mxu0
        %v3827 = vadd.f32 %v3784, %v3826
        %v3828 = vpop.f32.mrb[0].mxu0
        %v3829 = vadd.f32 %v3786, %v3828
        %v3830 = vpop.f32.mrb[0].mxu0
        %v3831 = vadd.f32 %v3788, %v3830
        %3832 = vdwg.mxu0
        %3833 = vmatprep.subr.bf16.mxu0 %v3409
        %3834 = vmatpush1.bf16.msra.mxu0 %v3408
        %3835 = vmatprep.subr.bf16.mxu0 %v3413
        %3836 = vmatpush1.bf16.msra.mxu0 %v3412
        %3837 = vmatprep.subr.bf16.mxu0 %v3417
        %3838 = vmatpush1.bf16.msra.mxu0 %v3416
        %3839 = vmatprep.subr.bf16.mxu0 %v3421
        %3840 = vmatpush1.bf16.msra.mxu0 %v3420
        %3841 = vmatprep.subr.bf16.mxu0 %v3425
        %3842 = vmatpush1.bf16.msra.mxu0 %v3424
        %3843 = vmatprep.subr.bf16.mxu0 %v3429
        %3844 = vmatpush1.bf16.msra.mxu0 %v3428
        %3845 = vmatprep.subr.bf16.mxu0 %v3433
        %3846 = vmatpush1.bf16.msra.mxu0 %v3432
        %3847 = vmatprep.subr.bf16.mxu0 %v3437
        %3848 = vmatpush1.bf16.msra.mxu0 %v3436
        %3849 = vmatprep.subr.bf16.mxu0 %v3441
        %3850 = vmatpush1.bf16.msra.mxu0 %v3440
        %3851 = vmatprep.subr.bf16.mxu0 %v3445
        %3852 = vmatpush1.bf16.msra.mxu0 %v3444
        %3853 = vmatprep.subr.bf16.mxu0 0
        %3854 = vmatpush1.bf16.msra.mxu0 0
        %3855 = vmatprep.subr.bf16.mxu0 0
        %3856 = vmatpush1.bf16.msra.mxu0 0
        %3857 = vmatprep.subr.bf16.mxu0 0
        %3858 = vmatpush1.bf16.msra.mxu0 0
        %3859 = vmatprep.subr.bf16.mxu0 0
        %3860 = vmatpush1.bf16.msra.mxu0 0
        %3861 = vmatprep.subr.bf16.mxu0 0
        %3862 = vmatpush1.bf16.msra.mxu0 0
        %3863 = vmatprep.subr.bf16.mxu0 0
        %3864 = vmatpush1.bf16.msra.mxu0 0
        %3865 = vmatprep.mubr.bf16.mxu0 %v3616
        %3866 = vmatmul.mubr.bf16.gmra.mrb[0].mxu0 %v2574
        %v3867 = vpop.f32.mrb[0].mxu0
        %v3868 = vadd.f32 %v3825, %v3867
        %v3869 = vpop.f32.mrb[0].mxu0
        %v3870 = vadd.f32 %v3827, %v3869
        %v3871 = vpop.f32.mrb[0].mxu0
        %v3872 = vadd.f32 %v3829, %v3871
        %v3873 = vpop.f32.mrb[0].mxu0
        %v3874 = vadd.f32 %v3831, %v3873
        %3875 = vdwg.mxu0
        %v3876 = vmax.f32 %v3739, 0.0
        %v3877 = vmax.f32 %v3741, 0.0
        %v3878 = vmax.f32 %v3868, 0.0
        %v3879 = vmax.f32 %v3870, 0.0
        %v3880 = vmax.f32 %v3743, 0.0
        %v3881 = vmax.f32 %v3745, 0.0
        %v3882 = vmax.f32 %v3872, 0.0
        %v3883 = vmax.f32 %v3874, 0.0
        %v3892 = vcombine.low %v3876, %v3877
        %v3893 = vcombine.high %v3876, %v3877
        %v3894 = vcombine.low %v3878, %v3879
        %v3895 = vcombine.high %v3878, %v3879
        %v3897 = vunpack.c.l.s4 1983009808
        %v3898 = vunpack.c.0.s8 %v3897
        %v3899 = vlaneseq
        %v3900 = vshrl.u32 %v3899, 7
        %v3901 = vsub.s32 %v3898, %v3900
        %v3902 = vrot.slane %v3892, %v3901
        %v3904 = vunpack.c.l.s4 1983009808
        %v3905 = vunpack.c.0.s8 %v3904
        %v3906 = vlaneseq
        %v3907 = vshrl.u32 %v3906, 7
        %v3908 = vsub.s32 %v3905, %v3907
        %v3909 = vrot.slane %v3893, %v3908
        %v3911 = vunpack.c.l.s4 1983009808
        %v3912 = vunpack.c.0.s8 %v3911
        %v3913 = vlaneseq
        %v3914 = vshrl.u32 %v3913, 7
        %v3915 = vsub.s32 %v3912, %v3914
        %v3916 = vrot.slane %v3894, %v3915
        %v3918 = vunpack.c.l.s4 1983009808
        %v3919 = vunpack.c.0.s8 %v3918
        %v3920 = vlaneseq
        %v3921 = vshrl.u32 %v3920, 7
        %v3922 = vsub.s32 %v3919, %v3921
        %v3923 = vrot.slane %v3895, %v3922
        %v3924 = vcombine.low %v3902, %v3916
        %v3925 = vcombine.high %v3902, %v3916
        %v3926 = vcombine.low %v3909, %v3923
        %v3927 = vcombine.high %v3909, %v3923
        %v3928 = vcombine.low %v3880, %v3881
        %v3929 = vcombine.high %v3880, %v3881
        %v3930 = vcombine.low %v3882, %v3883
        %v3931 = vcombine.high %v3882, %v3883
        %v3933 = vunpack.c.l.s4 1983009808
        %v3934 = vunpack.c.0.s8 %v3933
        %v3935 = vlaneseq
        %v3936 = vshrl.u32 %v3935, 7
        %v3937 = vsub.s32 %v3934, %v3936
        %v3938 = vrot.slane %v3928, %v3937
        %v3940 = vunpack.c.l.s4 1983009808
        %v3941 = vunpack.c.0.s8 %v3940
        %v3942 = vlaneseq
        %v3943 = vshrl.u32 %v3942, 7
        %v3944 = vsub.s32 %v3941, %v3943
        %v3945 = vrot.slane %v3929, %v3944
        %v3947 = vunpack.c.l.s4 1983009808
        %v3948 = vunpack.c.0.s8 %v3947
        %v3949 = vlaneseq
        %v3950 = vshrl.u32 %v3949, 7
        %v3951 = vsub.s32 %v3948, %v3950
        %v3952 = vrot.slane %v3930, %v3951
        %v3954 = vunpack.c.l.s4 1983009808
        %v3955 = vunpack.c.0.s8 %v3954
        %v3956 = vlaneseq
        %v3957 = vshrl.u32 %v3956, 7
        %v3958 = vsub.s32 %v3955, %v3957
        %v3959 = vrot.slane %v3931, %v3958
        %v3960 = vcombine.low %v3938, %v3952
        %v3961 = vcombine.high %v3938, %v3952
        %v3962 = vcombine.low %v3945, %v3959
        %v3970 = vrot.slane %v3924, 7
        %v3971 = vrot.slane %v3970, 2
        %v3972 = vrot.slane %v3925, 7
        %v3973 = vrot.slane %v3972, 2
        %v3974 = vrot.slane %v3926, 7
        %v3975 = vrot.slane %v3974, 2
        %v3976 = vrot.slane %v3927, 7
        %v3977 = vrot.slane %v3976, 2
        %v3978 = vrot.slane %v3960, 7
        %v3979 = vrot.slane %v3978, 2
        %v3980 = vrot.slane %v3961, 7
        %v3981 = vrot.slane %v3980, 2
        %v3982 = vrot.slane %v3962, 7
        %v3983 = vrot.slane %v3982, 2
        %v3991 = vmax.f32 %v3924, %v3971
        %v3992 = vmax.f32 %v3925, %v3973
        %v3993 = vmax.f32 %v3926, %v3975
        %v3994 = vmax.f32 %v3927, %v3977
        %v3995 = vmax.f32 %v3960, %v3979
        %v3996 = vmax.f32 %v3961, %v3981
        %v3997 = vmax.f32 %v3962, %v3983
        %v4005 = vlaneseq
        %v4006 = vshrl.u32 %v4005, 7
        %v4007 = vsub.s32 0, %v4006
        %v4008 = vrot.slane %v3991, %v4007
        %v4009 = vlaneseq
        %v4010 = vshrl.u32 %v4009, 7
        %v4011 = vsub.s32 2, %v4010
        %v4012 = vrot.slane %v3991, %v4011
        %v4013 = vlaneseq
        %v4014 = vshrl.u32 %v4013, 7
        %v4015 = vsub.s32 4, %v4014
        %v4016 = vrot.slane %v3991, %v4015
        %v4017 = vlaneseq
        %v4018 = vshrl.u32 %v4017, 7
        %v4019 = vsub.s32 6, %v4018
        %v4020 = vrot.slane %v3991, %v4019
        %v4021 = vlaneseq
        %v4022 = vshrl.u32 %v4021, 7
        %v4023 = vsub.s32 0, %v4022
        %v4024 = vrot.slane %v3992, %v4023
        %v4025 = vlaneseq
        %v4026 = vshrl.u32 %v4025, 7
        %v4027 = vsub.s32 2, %v4026
        %v4028 = vrot.slane %v3992, %v4027
        %v4029 = vlaneseq
        %v4030 = vshrl.u32 %v4029, 7
        %v4031 = vsub.s32 4, %v4030
        %v4032 = vrot.slane %v3992, %v4031
        %v4033 = vlaneseq
        %v4034 = vshrl.u32 %v4033, 7
        %v4035 = vsub.s32 6, %v4034
        %v4036 = vrot.slane %v3992, %v4035
        %v4037 = vlaneseq
        %v4038 = vshrl.u32 %v4037, 7
        %v4039 = vsub.s32 0, %v4038
        %v4040 = vrot.slane %v3993, %v4039
        %v4041 = vlaneseq
        %v4042 = vshrl.u32 %v4041, 7
        %v4043 = vsub.s32 2, %v4042
        %v4044 = vrot.slane %v3993, %v4043
        %v4045 = vlaneseq
        %v4046 = vshrl.u32 %v4045, 7
        %v4047 = vsub.s32 4, %v4046
        %v4048 = vrot.slane %v3993, %v4047
        %v4049 = vlaneseq
        %v4050 = vshrl.u32 %v4049, 7
        %v4051 = vsub.s32 6, %v4050
        %v4052 = vrot.slane %v3993, %v4051
        %v4053 = vlaneseq
        %v4054 = vshrl.u32 %v4053, 7
        %v4055 = vsub.s32 0, %v4054
        %v4056 = vrot.slane %v3994, %v4055
        %v4057 = vlaneseq
        %v4058 = vshrl.u32 %v4057, 7
        %v4059 = vsub.s32 2, %v4058
        %v4060 = vrot.slane %v3994, %v4059
        %v4061 = vlaneseq
        %v4062 = vshrl.u32 %v4061, 7
        %v4063 = vsub.s32 4, %v4062
        %v4064 = vrot.slane %v3994, %v4063
        %v4065 = vlaneseq
        %v4066 = vshrl.u32 %v4065, 7
        %v4067 = vsub.s32 6, %v4066
        %v4068 = vrot.slane %v3994, %v4067
        %v4069 = vlaneseq
        %v4070 = vshrl.u32 %v4069, 7
        %v4071 = vsub.s32 0, %v4070
        %v4072 = vrot.slane %v3995, %v4071
        %v4073 = vlaneseq
        %v4074 = vshrl.u32 %v4073, 7
        %v4075 = vsub.s32 2, %v4074
        %v4076 = vrot.slane %v3995, %v4075
        %v4077 = vlaneseq
        %v4078 = vshrl.u32 %v4077, 7
        %v4079 = vsub.s32 4, %v4078
        %v4080 = vrot.slane %v3995, %v4079
        %v4081 = vlaneseq
        %v4082 = vshrl.u32 %v4081, 7
        %v4083 = vsub.s32 6, %v4082
        %v4084 = vrot.slane %v3995, %v4083
        %v4085 = vlaneseq
        %v4086 = vshrl.u32 %v4085, 7
        %v4087 = vsub.s32 0, %v4086
        %v4088 = vrot.slane %v3996, %v4087
        %v4089 = vlaneseq
        %v4090 = vshrl.u32 %v4089, 7
        %v4091 = vsub.s32 2, %v4090
        %v4092 = vrot.slane %v3996, %v4091
        %v4093 = vlaneseq
        %v4094 = vshrl.u32 %v4093, 7
        %v4095 = vsub.s32 4, %v4094
        %v4096 = vrot.slane %v3996, %v4095
        %v4097 = vlaneseq
        %v4098 = vshrl.u32 %v4097, 7
        %v4099 = vsub.s32 6, %v4098
        %v4100 = vrot.slane %v3996, %v4099
        %v4101 = vlaneseq
        %v4102 = vshrl.u32 %v4101, 7
        %v4103 = vsub.s32 0, %v4102
        %v4104 = vrot.slane %v3997, %v4103
        %v4105 = vlaneseq
        %v4106 = vshrl.u32 %v4105, 7
        %v4107 = vsub.s32 2, %v4106
        %v4108 = vrot.slane %v3997, %v4107
        %v4109 = vlaneseq
        %v4110 = vshrl.u32 %v4109, 7
        %v4111 = vsub.s32 4, %v4110
        %v4112 = vrot.slane %v3997, %v4111
        %v4113 = vlaneseq
        %v4114 = vshrl.u32 %v4113, 7
        %v4115 = vsub.s32 6, %v4114
        %v4116 = vrot.slane %v3997, %v4115
        %v4145 = vpack.c.bf16 %v4008, %v4008
        %v4146 = vpack.c.bf16 %v4012, %v4012
        %v4147 = vpack.c.bf16 %v4016, %v4016
        %v4148 = vpack.c.bf16 %v4020, %v4020
        %v4149 = vpack.c.bf16 %v4024, %v4024
        %v4150 = vpack.c.bf16 %v4028, %v4028
        %v4151 = vpack.c.bf16 %v4032, %v4032
        %v4152 = vpack.c.bf16 %v4036, %v4036
        %v4153 = vpack.c.bf16 %v4040, %v4040
        %v4154 = vpack.c.bf16 %v4044, %v4044
        %v4155 = vpack.c.bf16 %v4048, %v4048
        %v4156 = vpack.c.bf16 %v4052, %v4052
        %v4157 = vpack.c.bf16 %v4056, %v4056
        %v4158 = vpack.c.bf16 %v4060, %v4060
        %v4159 = vpack.c.bf16 %v4064, %v4064
        %v4160 = vpack.c.bf16 %v4068, %v4068
        %v4161 = vpack.c.bf16 %v4072, %v4072
        %v4162 = vpack.c.bf16 %v4076, %v4076
        %v4163 = vpack.c.bf16 %v4080, %v4080
        %v4164 = vpack.c.bf16 %v4084, %v4084
        %v4165 = vpack.c.bf16 %v4088, %v4088
        %v4166 = vpack.c.bf16 %v4092, %v4092
        %v4167 = vpack.c.bf16 %v4096, %v4096
        %v4168 = vpack.c.bf16 %v4100, %v4100
        %v4169 = vpack.c.bf16 %v4104, %v4104
        %v4170 = vpack.c.bf16 %v4108, %v4108
        %v4171 = vpack.c.bf16 %v4112, %v4112
        %v4172 = vpack.c.bf16 %v4116, %v4116
        %v4173 = vld [vmem:[#allocation8] sm:$0xff]
        %v4174 = vld [vmem:[#allocation8 + $0x8] sm:$0xff]
        %v4175 = vld [vmem:[#allocation8 + $0x10] sm:$0xff]
        %v4176 = vld [vmem:[#allocation8 + $0x18] sm:$0xff]
        %v4177 = vld [vmem:[#allocation8 + $0x20] sm:$0xff]
        %v4178 = vld [vmem:[#allocation8 + $0x28] sm:$0xff]
        %v4179 = vld [vmem:[#allocation8 + $0x30] sm:$0xff]
        %v4180 = vld [vmem:[#allocation8 + $0x38] sm:$0xff]
        %v4181 = vld [vmem:[#allocation8 + $0x40] sm:$0xff]
        %v4182 = vld [vmem:[#allocation8 + $0x48] sm:$0xff]
        %v4183 = vld [vmem:[#allocation8 + $0x50] sm:$0xff]
        %v4184 = vld [vmem:[#allocation8 + $0x58] sm:$0xff]
        %v4185 = vld [vmem:[#allocation8 + $0x60] sm:$0xff]
        %v4186 = vld [vmem:[#allocation8 + $0x68] sm:$0xff]
        %v4187 = vld [vmem:[#allocation8 + $0x70] sm:$0xff]
        %v4188 = vld [vmem:[#allocation8 + $0x78] sm:$0xff]
        %v4189 = vld [vmem:[#allocation8 + $0x80] sm:$0xff]
        %v4190 = vld [vmem:[#allocation8 + $0x88] sm:$0xff]
        %v4191 = vld [vmem:[#allocation8 + $0x90] sm:$0xff]
        %v4192 = vld [vmem:[#allocation8 + $0x98] sm:$0xff]
        %v4193 = vld [vmem:[#allocation8 + $0xa0] sm:$0xff]
        %v4194 = vld [vmem:[#allocation8 + $0xa8] sm:$0xff]
        %v4195 = vld [vmem:[#allocation8 + $0xb0] sm:$0xff]
        %v4196 = vld [vmem:[#allocation8 + $0xb8] sm:$0xff]
        %v4197 = vld [vmem:[#allocation8 + $0xc0] sm:$0xff]
        %v4198 = vld [vmem:[#allocation8 + $0xc8] sm:$0xff]
        %v4199 = vld [vmem:[#allocation8 + $0xd0] sm:$0xff]
        %v4200 = vld [vmem:[#allocation8 + $0xd8] sm:$0xff]
        %v4201 = vld [vmem:[#allocation8 + $0xe0] sm:$0xff]
        %v4202 = vld [vmem:[#allocation8 + $0xe8] sm:$0xff]
        %v4203 = vld [vmem:[#allocation8 + $0xf0] sm:$0xff]
        %v4204 = vld [vmem:[#allocation8 + $0xf8] sm:$0xff]
        %v4205 = vld [vmem:[#allocation8 + $0x100] sm:$0xff]
        %v4206 = vld [vmem:[#allocation8 + $0x108] sm:$0xff]
        %v4207 = vld [vmem:[#allocation8 + $0x110] sm:$0xff]
        %v4208 = vld [vmem:[#allocation8 + $0x118] sm:$0xff]
        %v4209 = vld [vmem:[#allocation8 + $0x120] sm:$0xff]
        %v4210 = vld [vmem:[#allocation8 + $0x128] sm:$0xff]
        %v4211 = vld [vmem:[#allocation8 + $0x130] sm:$0xff]
        %v4212 = vld [vmem:[#allocation8 + $0x138] sm:$0xff]
        %v4213 = vld [vmem:[#allocation8 + $0x140] sm:$0xff]
        %v4214 = vld [vmem:[#allocation8 + $0x148] sm:$0xff]
        %v4215 = vld [vmem:[#allocation8 + $0x150] sm:$0xff]
        %v4216 = vld [vmem:[#allocation8 + $0x158] sm:$0xff]
        %v4217 = vld [vmem:[#allocation8 + $0x160] sm:$0xff]
        %v4218 = vld [vmem:[#allocation8 + $0x168] sm:$0xff]
        %v4219 = vld [vmem:[#allocation8 + $0x170] sm:$0xff]
        %v4220 = vld [vmem:[#allocation8 + $0x178] sm:$0xff]
        %v4221 = vld [vmem:[#allocation8 + $0x180] sm:$0xff]
        %v4222 = vld [vmem:[#allocation8 + $0x188] sm:$0xff]
        %v4223 = vld [vmem:[#allocation8 + $0x190] sm:$0xff]
        %v4224 = vld [vmem:[#allocation8 + $0x198] sm:$0xff]
        %v4225 = vld [vmem:[#allocation8 + $0x1a0] sm:$0xff]
        %v4226 = vld [vmem:[#allocation8 + $0x1a8] sm:$0xff]
        %v4227 = vld [vmem:[#allocation8 + $0x1b0] sm:$0xff]
        %v4228 = vld [vmem:[#allocation8 + $0x1b8] sm:$0xff]
        %v4257 = vunpack.c.l.b16 %v4145
        %v4258 = vunpack.c.l.b16 %v4146
        %v4259 = vunpack.c.l.b16 %v4147
        %v4260 = vunpack.c.l.b16 %v4148
        %v4261 = vunpack.c.l.b16 %v4149
        %v4262 = vunpack.c.l.b16 %v4150
        %v4263 = vunpack.c.l.b16 %v4151
        %v4264 = vunpack.c.l.b16 %v4152
        %v4265 = vunpack.c.l.b16 %v4153
        %v4266 = vunpack.c.l.b16 %v4154
        %v4267 = vunpack.c.l.b16 %v4155
        %v4268 = vunpack.c.l.b16 %v4156
        %v4269 = vunpack.c.l.b16 %v4157
        %v4270 = vunpack.c.l.b16 %v4158
        %v4271 = vunpack.c.l.b16 %v4159
        %v4272 = vunpack.c.l.b16 %v4160
        %v4273 = vunpack.c.l.b16 %v4161
        %v4274 = vunpack.c.l.b16 %v4162
        %v4275 = vunpack.c.l.b16 %v4163
        %v4276 = vunpack.c.l.b16 %v4164
        %v4277 = vunpack.c.l.b16 %v4165
        %v4278 = vunpack.c.l.b16 %v4166
        %v4279 = vunpack.c.l.b16 %v4167
        %v4280 = vunpack.c.l.b16 %v4168
        %v4281 = vunpack.c.l.b16 %v4169
        %v4282 = vunpack.c.l.b16 %v4170
        %v4283 = vunpack.c.l.b16 %v4171
        %v4284 = vunpack.c.l.b16 %v4172
        %v4285 = vrot.slane %v4261, 7
        %v4286 = vsel %vm1615, %v4285, %v4257
        %v4287 = vrot.slane %v4265, 6
        %v4288 = vsel %vm1618, %v4287, %v4286
        %v4289 = vrot.slane %v4269, 5
        %v4290 = vsel %vm1621, %v4289, %v4288
        %v4291 = vrot.slane %v4273, 4
        %v4292 = vsel %vm1624, %v4291, %v4290
        %v4293 = vrot.slane %v4277, 3
        %v4294 = vsel %vm1627, %v4293, %v4292
        %v4295 = vrot.slane %v4281, 2
        %v4296 = vsel %vm1630, %v4295, %v4294
        %v4297 = vrot.slane %v4262, 7
        %v4298 = vsel %vm1615, %v4297, %v4258
        %v4299 = vrot.slane %v4266, 6
        %v4300 = vsel %vm1618, %v4299, %v4298
        %v4301 = vrot.slane %v4270, 5
        %v4302 = vsel %vm1621, %v4301, %v4300
        %v4303 = vrot.slane %v4274, 4
        %v4304 = vsel %vm1624, %v4303, %v4302
        %v4305 = vrot.slane %v4278, 3
        %v4306 = vsel %vm1627, %v4305, %v4304
        %v4307 = vrot.slane %v4282, 2
        %v4308 = vsel %vm1630, %v4307, %v4306
        %v4309 = vrot.slane %v4263, 7
        %v4310 = vsel %vm1615, %v4309, %v4259
        %v4311 = vrot.slane %v4267, 6
        %v4312 = vsel %vm1618, %v4311, %v4310
        %v4313 = vrot.slane %v4271, 5
        %v4314 = vsel %vm1621, %v4313, %v4312
        %v4315 = vrot.slane %v4275, 4
        %v4316 = vsel %vm1624, %v4315, %v4314
        %v4317 = vrot.slane %v4279, 3
        %v4318 = vsel %vm1627, %v4317, %v4316
        %v4319 = vrot.slane %v4283, 2
        %v4320 = vsel %vm1630, %v4319, %v4318
        %v4321 = vrot.slane %v4264, 7
        %v4322 = vsel %vm1615, %v4321, %v4260
        %v4323 = vrot.slane %v4268, 6
        %v4324 = vsel %vm1618, %v4323, %v4322
        %v4325 = vrot.slane %v4272, 5
        %v4326 = vsel %vm1621, %v4325, %v4324
        %v4327 = vrot.slane %v4276, 4
        %v4328 = vsel %vm1624, %v4327, %v4326
        %v4329 = vrot.slane %v4280, 3
        %v4330 = vsel %vm1627, %v4329, %v4328
        %v4331 = vrot.slane %v4284, 2
        %v4332 = vsel %vm1630, %v4331, %v4330
        %v4333 = vpack.c.b16 %v4296, %v4296
        %v4334 = vpack.c.b16 %v4308, %v4308
        %v4335 = vpack.c.b16 %v4320, %v4320
        %v4336 = vpack.c.b16 %v4332, %v4332
        %v4396 = vunpack.c.l.b16 %v4173
        %v4397 = vunpack.c.h.b16 %v4173
        %v4398 = vunpack.c.l.b16 %v4174
        %v4399 = vunpack.c.h.b16 %v4174
        %v4400 = vunpack.c.l.b16 %v4175
        %v4401 = vunpack.c.h.b16 %v4175
        %v4402 = vunpack.c.l.b16 %v4176
        %v4403 = vunpack.c.h.b16 %v4176
        %v4404 = vunpack.c.l.b16 %v4177
        %v4405 = vunpack.c.h.b16 %v4177
        %v4406 = vunpack.c.l.b16 %v4178
        %v4407 = vunpack.c.h.b16 %v4178
        %v4408 = vunpack.c.l.b16 %v4179
        %v4409 = vunpack.c.h.b16 %v4179
        %v4410 = vunpack.c.l.b16 %v4180
        %v4411 = vunpack.c.h.b16 %v4180
        %v4412 = vunpack.c.l.b16 %v4181
        %v4413 = vunpack.c.h.b16 %v4181
        %v4414 = vunpack.c.l.b16 %v4182
        %v4415 = vunpack.c.h.b16 %v4182
        %v4416 = vunpack.c.l.b16 %v4183
        %v4417 = vunpack.c.h.b16 %v4183
        %v4418 = vunpack.c.l.b16 %v4184
        %v4419 = vunpack.c.h.b16 %v4184
        %v4420 = vunpack.c.l.b16 %v4185
        %v4421 = vunpack.c.h.b16 %v4185
        %v4422 = vunpack.c.l.b16 %v4186
        %v4423 = vunpack.c.h.b16 %v4186
        %v4424 = vunpack.c.l.b16 %v4187
        %v4425 = vunpack.c.h.b16 %v4187
        %v4426 = vunpack.c.l.b16 %v4188
        %v4427 = vunpack.c.h.b16 %v4188
        %v4428 = vunpack.c.l.b16 %v4189
        %v4429 = vunpack.c.h.b16 %v4189
        %v4430 = vunpack.c.l.b16 %v4190
        %v4431 = vunpack.c.h.b16 %v4190
        %v4432 = vunpack.c.l.b16 %v4191
        %v4433 = vunpack.c.h.b16 %v4191
        %v4434 = vunpack.c.l.b16 %v4192
        %v4435 = vunpack.c.h.b16 %v4192
        %v4436 = vunpack.c.l.b16 %v4193
        %v4437 = vunpack.c.h.b16 %v4193
        %v4438 = vunpack.c.l.b16 %v4194
        %v4439 = vunpack.c.h.b16 %v4194
        %v4440 = vunpack.c.l.b16 %v4195
        %v4441 = vunpack.c.h.b16 %v4195
        %v4442 = vunpack.c.l.b16 %v4196
        %v4443 = vunpack.c.h.b16 %v4196
        %v4444 = vunpack.c.l.b16 %v4197
        %v4445 = vunpack.c.h.b16 %v4197
        %v4446 = vunpack.c.l.b16 %v4198
        %v4447 = vunpack.c.h.b16 %v4198
        %v4448 = vunpack.c.l.b16 %v4199
        %v4449 = vunpack.c.h.b16 %v4199
        %v4450 = vunpack.c.l.b16 %v4200
        %v4451 = vunpack.c.h.b16 %v4200
        %v4452 = vunpack.c.l.b16 %v4201
        %v4453 = vunpack.c.h.b16 %v4201
        %v4454 = vunpack.c.l.b16 %v4202
        %v4455 = vunpack.c.h.b16 %v4202
        %v4456 = vunpack.c.l.b16 %v4203
        %v4457 = vunpack.c.h.b16 %v4203
        %v4458 = vunpack.c.l.b16 %v4204
        %v4459 = vunpack.c.h.b16 %v4204
        %v4460 = vunpack.c.l.b16 %v4205
        %v4461 = vunpack.c.h.b16 %v4205
        %v4462 = vunpack.c.l.b16 %v4206
        %v4463 = vunpack.c.h.b16 %v4206
        %v4464 = vunpack.c.l.b16 %v4207
        %v4465 = vunpack.c.h.b16 %v4207
        %v4466 = vunpack.c.l.b16 %v4208
        %v4467 = vunpack.c.h.b16 %v4208
        %v4468 = vunpack.c.l.b16 %v4209
        %v4469 = vunpack.c.h.b16 %v4209
        %v4470 = vunpack.c.l.b16 %v4210
        %v4471 = vunpack.c.h.b16 %v4210
        %v4472 = vunpack.c.l.b16 %v4211
        %v4473 = vunpack.c.h.b16 %v4211
        %v4474 = vunpack.c.l.b16 %v4212
        %v4475 = vunpack.c.h.b16 %v4212
        %v4476 = vunpack.c.l.b16 %v4213
        %v4477 = vunpack.c.h.b16 %v4213
        %v4478 = vunpack.c.l.b16 %v4214
        %v4479 = vunpack.c.h.b16 %v4214
        %v4480 = vunpack.c.l.b16 %v4215
        %v4481 = vunpack.c.h.b16 %v4215
        %v4482 = vunpack.c.l.b16 %v4216
        %v4483 = vunpack.c.h.b16 %v4216
        %v4484 = vunpack.c.l.b16 %v4217
        %v4485 = vunpack.c.h.b16 %v4217
        %v4486 = vunpack.c.l.b16 %v4218
        %v4487 = vunpack.c.h.b16 %v4218
        %v4488 = vunpack.c.l.b16 %v4219
        %v4489 = vunpack.c.h.b16 %v4219
        %v4490 = vunpack.c.l.b16 %v4220
        %v4491 = vunpack.c.h.b16 %v4220
        %v4492 = vunpack.c.l.b16 %v4221
        %v4493 = vunpack.c.h.b16 %v4221
        %v4494 = vunpack.c.l.b16 %v4222
        %v4495 = vunpack.c.h.b16 %v4222
        %v4496 = vunpack.c.l.b16 %v4223
        %v4497 = vunpack.c.h.b16 %v4223
        %v4498 = vunpack.c.l.b16 %v4224
        %v4499 = vunpack.c.h.b16 %v4224
        %v4500 = vunpack.c.l.b16 %v4225
        %v4501 = vunpack.c.h.b16 %v4225
        %v4502 = vunpack.c.l.b16 %v4226
        %v4503 = vunpack.c.h.b16 %v4226
        %v4504 = vunpack.c.l.b16 %v4227
        %v4505 = vunpack.c.h.b16 %v4227
        %v4506 = vunpack.c.l.b16 %v4228
        %v4507 = vunpack.c.h.b16 %v4228
        %v4508 = vpack.c.b16 %v4398, %v4396
        %v4509 = vpack.c.b16 %v4399, %v4397
        %v4510 = vpack.c.b16 %v4402, %v4400
        %v4511 = vpack.c.b16 %v4403, %v4401
        %v4512 = vpack.c.b16 %v4406, %v4404
        %v4513 = vpack.c.b16 %v4407, %v4405
        %v4514 = vpack.c.b16 %v4410, %v4408
        %v4515 = vpack.c.b16 %v4411, %v4409
        %v4516 = vpack.c.b16 %v4414, %v4412
        %v4517 = vpack.c.b16 %v4415, %v4413
        %v4518 = vpack.c.b16 %v4418, %v4416
        %v4519 = vpack.c.b16 %v4419, %v4417
        %v4520 = vpack.c.b16 %v4422, %v4420
        %v4521 = vpack.c.b16 %v4423, %v4421
        %v4522 = vpack.c.b16 %v4426, %v4424
        %v4523 = vpack.c.b16 %v4427, %v4425
        %v4524 = vpack.c.b16 %v4430, %v4428
        %v4525 = vpack.c.b16 %v4431, %v4429
        %v4526 = vpack.c.b16 %v4434, %v4432
        %v4527 = vpack.c.b16 %v4435, %v4433
        %v4528 = vpack.c.b16 %v4438, %v4436
        %v4529 = vpack.c.b16 %v4439, %v4437
        %v4530 = vpack.c.b16 %v4442, %v4440
        %v4531 = vpack.c.b16 %v4443, %v4441
        %v4532 = vpack.c.b16 %v4446, %v4444
        %v4533 = vpack.c.b16 %v4447, %v4445
        %v4534 = vpack.c.b16 %v4450, %v4448
        %v4535 = vpack.c.b16 %v4451, %v4449
        %v4536 = vpack.c.b16 %v4454, %v4452
        %v4537 = vpack.c.b16 %v4455, %v4453
        %v4538 = vpack.c.b16 %v4458, %v4456
        %v4539 = vpack.c.b16 %v4459, %v4457
        %v4540 = vpack.c.b16 %v4462, %v4460
        %v4541 = vpack.c.b16 %v4463, %v4461
        %v4542 = vpack.c.b16 %v4466, %v4464
        %v4543 = vpack.c.b16 %v4467, %v4465
        %v4544 = vpack.c.b16 %v4470, %v4468
        %v4545 = vpack.c.b16 %v4471, %v4469
        %v4546 = vpack.c.b16 %v4474, %v4472
        %v4547 = vpack.c.b16 %v4475, %v4473
        %v4548 = vpack.c.b16 %v4478, %v4476
        %v4549 = vpack.c.b16 %v4479, %v4477
        %v4550 = vpack.c.b16 %v4482, %v4480
        %v4551 = vpack.c.b16 %v4483, %v4481
        %v4552 = vpack.c.b16 %v4486, %v4484
        %v4553 = vpack.c.b16 %v4487, %v4485
        %v4554 = vpack.c.b16 %v4490, %v4488
        %v4555 = vpack.c.b16 %v4491, %v4489
        %v4556 = vpack.c.b16 %v4494, %v4492
        %v4557 = vpack.c.b16 %v4495, %v4493
        %v4558 = vpack.c.b16 %v4498, %v4496
        %v4559 = vpack.c.b16 %v4499, %v4497
        %v4560 = vpack.c.b16 %v4502, %v4500
        %v4561 = vpack.c.b16 %v4503, %v4501
        %v4562 = vpack.c.b16 %v4506, %v4504
        %v4563 = vpack.c.b16 %v4507, %v4505
        %v4621 = vsel %vm2004, %v4336, 0
        %4623 = vmatprep.subr.bf16.mxu0 %v4509
        %4624 = vmatpush1.bf16.msra.mxu0 %v4508
        %4625 = vmatprep.subr.bf16.mxu0 %v4511
        %4626 = vmatpush1.bf16.msra.mxu0 %v4510
        %4627 = vmatprep.subr.bf16.mxu0 %v4513
        %4628 = vmatpush1.bf16.msra.mxu0 %v4512
        %4629 = vmatprep.subr.bf16.mxu0 %v4515
        %4630 = vmatpush1.bf16.msra.mxu0 %v4514
        %4631 = vmatprep.subr.bf16.mxu0 %v4517
        %4632 = vmatpush1.bf16.msra.mxu0 %v4516
        %4633 = vmatprep.subr.bf16.mxu0 %v4519
        %4634 = vmatpush1.bf16.msra.mxu0 %v4518
        %4635 = vmatprep.subr.bf16.mxu0 %v4521
        %4636 = vmatpush1.bf16.msra.mxu0 %v4520
        %4637 = vmatprep.subr.bf16.mxu0 %v4523
        %4638 = vmatpush1.bf16.msra.mxu0 %v4522
        %4639 = vmatprep.subr.bf16.mxu0 %v4525
        %4640 = vmatpush1.bf16.msra.mxu0 %v4524
        %4641 = vmatprep.subr.bf16.mxu0 %v4527
        %4642 = vmatpush1.bf16.msra.mxu0 %v4526
        %4643 = vmatprep.subr.bf16.mxu0 %v4529
        %4644 = vmatpush1.bf16.msra.mxu0 %v4528
        %4645 = vmatprep.subr.bf16.mxu0 %v4531
        %4646 = vmatpush1.bf16.msra.mxu0 %v4530
        %4647 = vmatprep.subr.bf16.mxu0 %v4533
        %4648 = vmatpush1.bf16.msra.mxu0 %v4532
        %4649 = vmatprep.subr.bf16.mxu0 %v4535
        %4650 = vmatpush1.bf16.msra.mxu0 %v4534
        %4651 = vmatprep.subr.bf16.mxu0 %v4537
        %4652 = vmatpush1.bf16.msra.mxu0 %v4536
        %4653 = vmatprep.subr.bf16.mxu0 %v4539
        %4654 = vmatpush1.bf16.msra.mxu0 %v4538
        %4655 = vmatprep.mubr.bf16.mxu0 %v4334
        %4656 = vmatmul.mubr.bf16.gmra.mrb[0].mxu0 %v4333
        %v4657 = vpop.f32.mrb[0].mxu0
        %v4658 = vadd.f32 0.0, %v4657
        %v4659 = vpop.f32.mrb[0].mxu0
        %v4660 = vadd.f32 0.0, %v4659
        %v4661 = vpop.f32.mrb[0].mxu0
        %v4662 = vpop.f32.mrb[0].mxu0
        %4663 = vdwg.mxu0
        %4664 = vmatprep.subr.bf16.mxu0 %v4541
        %4665 = vmatpush1.bf16.msra.mxu0 %v4540
        %4666 = vmatprep.subr.bf16.mxu0 %v4543
        %4667 = vmatpush1.bf16.msra.mxu0 %v4542
        %4668 = vmatprep.subr.bf16.mxu0 %v4545
        %4669 = vmatpush1.bf16.msra.mxu0 %v4544
        %4670 = vmatprep.subr.bf16.mxu0 %v4547
        %4671 = vmatpush1.bf16.msra.mxu0 %v4546
        %4672 = vmatprep.subr.bf16.mxu0 %v4549
        %4673 = vmatpush1.bf16.msra.mxu0 %v4548
        %4674 = vmatprep.subr.bf16.mxu0 %v4551
        %4675 = vmatpush1.bf16.msra.mxu0 %v4550
        %4676 = vmatprep.subr.bf16.mxu0 %v4553
        %4677 = vmatpush1.bf16.msra.mxu0 %v4552
        %4678 = vmatprep.subr.bf16.mxu0 %v4555
        %4679 = vmatpush1.bf16.msra.mxu0 %v4554
        %4680 = vmatprep.subr.bf16.mxu0 %v4557
        %4681 = vmatpush1.bf16.msra.mxu0 %v4556
        %4682 = vmatprep.subr.bf16.mxu0 %v4559
        %4683 = vmatpush1.bf16.msra.mxu0 %v4558
        %4684 = vmatprep.subr.bf16.mxu0 %v4561
        %4685 = vmatpush1.bf16.msra.mxu0 %v4560
        %4686 = vmatprep.subr.bf16.mxu0 %v4563
        %4687 = vmatpush1.bf16.msra.mxu0 %v4562
        %4688 = vmatprep.subr.bf16.mxu0 0
        %4689 = vmatpush1.bf16.msra.mxu0 0
        %4690 = vmatprep.subr.bf16.mxu0 0
        %4691 = vmatpush1.bf16.msra.mxu0 0
        %4692 = vmatprep.subr.bf16.mxu0 0
        %4693 = vmatpush1.bf16.msra.mxu0 0
        %4694 = vmatprep.subr.bf16.mxu0 0
        %4695 = vmatpush1.bf16.msra.mxu0 0
        %4696 = vmatprep.mubr.bf16.mxu0 %v4621
        %4697 = vmatmul.mubr.bf16.gmra.mrb[0].mxu0 %v4335
        %v4698 = vpop.f32.mrb[0].mxu0
        %v4699 = vadd.f32 %v4658, %v4698
        %v4700 = vpop.f32.mrb[0].mxu0
        %v4701 = vadd.f32 %v4660, %v4700
        %v4702 = vpop.f32.mrb[0].mxu0
        %v4703 = vpop.f32.mrb[0].mxu0
        %4704 = vdwg.mxu0
        %v4705 = vld [vmem:[#allocation10] sm:$0xff]
        %v4706 = vld [vmem:[#allocation10 + $0x8] sm:$0xff]
        %v4707 = vld [vmem:[#allocation10 + $0x10] sm:$0xff]
        %v4708 = vld [vmem:[#allocation10 + $0x18] sm:$0xff]
        %v4709 = vld [vmem:[#allocation10 + $0x20] sm:$0xff]
        %v4710 = vld [vmem:[#allocation10 + $0x28] sm:$0xff]
        %v4711 = vld [vmem:[#allocation10 + $0x30] sm:$0xff]
        %v4712 = vld [vmem:[#allocation10 + $0x38] sm:$0xff]
        %v4713 = vld [vmem:[#allocation10 + $0x40] sm:$0xff]
        %v4714 = vld [vmem:[#allocation10 + $0x48] sm:$0xff]
        %v4715 = vld [vmem:[#allocation10 + $0x50] sm:$0xff]
        %v4716 = vld [vmem:[#allocation10 + $0x58] sm:$0xff]
        %v4717 = vld [vmem:[#allocation10 + $0x60] sm:$0xff]
        %v4718 = vld [vmem:[#allocation10 + $0x68] sm:$0xff]
        %v4719 = vld [vmem:[#allocation10 + $0x70] sm:$0xff]
        %v4720 = vld [vmem:[#allocation10 + $0x78] sm:$0xff]
        %v4721 = vld [vmem:[#allocation10 + $0x80] sm:$0xff]
        %v4722 = vld [vmem:[#allocation10 + $0x88] sm:$0xff]
        %v4723 = vld [vmem:[#allocation10 + $0x90] sm:$0xff]
        %v4724 = vld [vmem:[#allocation10 + $0x98] sm:$0xff]
        %v4725 = vld [vmem:[#allocation10 + $0xa0] sm:$0xff]
        %v4726 = vld [vmem:[#allocation10 + $0xa8] sm:$0xff]
        %v4727 = vld [vmem:[#allocation10 + $0xb0] sm:$0xff]
        %v4728 = vld [vmem:[#allocation10 + $0xb8] sm:$0xff]
        %v4729 = vld [vmem:[#allocation10 + $0xc0] sm:$0xff]
        %v4730 = vld [vmem:[#allocation10 + $0xc8] sm:$0xff]
        %v4731 = vld [vmem:[#allocation10 + $0xd0] sm:$0xff]
        %v4732 = vld [vmem:[#allocation10 + $0xd8] sm:$0xff]
        %v4733 = vld [vmem:[#allocation10 + $0xe0] sm:$0xff]
        %v4734 = vld [vmem:[#allocation10 + $0xe8] sm:$0xff]
        %v4735 = vld [vmem:[#allocation10 + $0xf0] sm:$0xff]
        %v4736 = vld [vmem:[#allocation10 + $0xf8] sm:$0xff]
        %v4737 = vld [vmem:[#allocation10 + $0x100] sm:$0xff]
        %v4738 = vld [vmem:[#allocation10 + $0x108] sm:$0xff]
        %v4739 = vld [vmem:[#allocation10 + $0x110] sm:$0xff]
        %v4740 = vld [vmem:[#allocation10 + $0x118] sm:$0xff]
        %v4741 = vld [vmem:[#allocation10 + $0x120] sm:$0xff]
        %v4742 = vld [vmem:[#allocation10 + $0x128] sm:$0xff]
        %v4743 = vld [vmem:[#allocation10 + $0x130] sm:$0xff]
        %v4744 = vld [vmem:[#allocation10 + $0x138] sm:$0xff]
        %v4745 = vld [vmem:[#allocation10 + $0x140] sm:$0xff]
        %v4746 = vld [vmem:[#allocation10 + $0x148] sm:$0xff]
        %v4747 = vld [vmem:[#allocation10 + $0x150] sm:$0xff]
        %v4748 = vld [vmem:[#allocation10 + $0x158] sm:$0xff]
        %v4749 = vld [vmem:[#allocation10 + $0x160] sm:$0xff]
        %v4750 = vld [vmem:[#allocation10 + $0x168] sm:$0xff]
        %v4751 = vld [vmem:[#allocation10 + $0x170] sm:$0xff]
        %v4752 = vld [vmem:[#allocation10 + $0x178] sm:$0xff]
        %v4753 = vld [vmem:[#allocation10 + $0x180] sm:$0xff]
        %v4754 = vld [vmem:[#allocation10 + $0x188] sm:$0xff]
        %v4755 = vld [vmem:[#allocation10 + $0x190] sm:$0xff]
        %v4756 = vld [vmem:[#allocation10 + $0x198] sm:$0xff]
        %v4757 = vld [vmem:[#allocation10 + $0x1a0] sm:$0xff]
        %v4758 = vld [vmem:[#allocation10 + $0x1a8] sm:$0xff]
        %v4759 = vld [vmem:[#allocation10 + $0x1b0] sm:$0xff]
        %v4760 = vld [vmem:[#allocation10 + $0x1b8] sm:$0xff]
        %v4817 = vunpack.c.l.b16 %v4705
        %v4818 = vunpack.c.h.b16 %v4705
        %v4819 = vunpack.c.l.b16 %v4706
        %v4820 = vunpack.c.h.b16 %v4706
        %v4821 = vunpack.c.l.b16 %v4707
        %v4822 = vunpack.c.h.b16 %v4707
        %v4823 = vunpack.c.l.b16 %v4708
        %v4824 = vunpack.c.h.b16 %v4708
        %v4825 = vunpack.c.l.b16 %v4709
        %v4826 = vunpack.c.h.b16 %v4709
        %v4827 = vunpack.c.l.b16 %v4710
        %v4828 = vunpack.c.h.b16 %v4710
        %v4829 = vunpack.c.l.b16 %v4711
        %v4830 = vunpack.c.h.b16 %v4711
        %v4831 = vunpack.c.l.b16 %v4712
        %v4832 = vunpack.c.h.b16 %v4712
        %v4833 = vunpack.c.l.b16 %v4713
        %v4834 = vunpack.c.h.b16 %v4713
        %v4835 = vunpack.c.l.b16 %v4714
        %v4836 = vunpack.c.h.b16 %v4714
        %v4837 = vunpack.c.l.b16 %v4715
        %v4838 = vunpack.c.h.b16 %v4715
        %v4839 = vunpack.c.l.b16 %v4716
        %v4840 = vunpack.c.h.b16 %v4716
        %v4841 = vunpack.c.l.b16 %v4717
        %v4842 = vunpack.c.h.b16 %v4717
        %v4843 = vunpack.c.l.b16 %v4718
        %v4844 = vunpack.c.h.b16 %v4718
        %v4845 = vunpack.c.l.b16 %v4719
        %v4846 = vunpack.c.h.b16 %v4719
        %v4847 = vunpack.c.l.b16 %v4720
        %v4848 = vunpack.c.h.b16 %v4720
        %v4849 = vunpack.c.l.b16 %v4721
        %v4850 = vunpack.c.h.b16 %v4721
        %v4851 = vunpack.c.l.b16 %v4722
        %v4852 = vunpack.c.h.b16 %v4722
        %v4853 = vunpack.c.l.b16 %v4723
        %v4854 = vunpack.c.h.b16 %v4723
        %v4855 = vunpack.c.l.b16 %v4724
        %v4856 = vunpack.c.h.b16 %v4724
        %v4857 = vunpack.c.l.b16 %v4725
        %v4858 = vunpack.c.h.b16 %v4725
        %v4859 = vunpack.c.l.b16 %v4726
        %v4860 = vunpack.c.h.b16 %v4726
        %v4861 = vunpack.c.l.b16 %v4727
        %v4862 = vunpack.c.h.b16 %v4727
        %v4863 = vunpack.c.l.b16 %v4728
        %v4864 = vunpack.c.h.b16 %v4728
        %v4865 = vunpack.c.l.b16 %v4729
        %v4866 = vunpack.c.h.b16 %v4729
        %v4867 = vunpack.c.l.b16 %v4730
        %v4868 = vunpack.c.h.b16 %v4730
        %v4869 = vunpack.c.l.b16 %v4731
        %v4870 = vunpack.c.h.b16 %v4731
        %v4871 = vunpack.c.l.b16 %v4732
        %v4872 = vunpack.c.h.b16 %v4732
        %v4873 = vunpack.c.l.b16 %v4733
        %v4874 = vunpack.c.h.b16 %v4733
        %v4875 = vunpack.c.l.b16 %v4734
        %v4876 = vunpack.c.h.b16 %v4734
        %v4877 = vunpack.c.l.b16 %v4735
        %v4878 = vunpack.c.h.b16 %v4735
        %v4879 = vunpack.c.l.b16 %v4736
        %v4880 = vunpack.c.h.b16 %v4736
        %v4881 = vunpack.c.l.b16 %v4737
        %v4882 = vunpack.c.h.b16 %v4737
        %v4883 = vunpack.c.l.b16 %v4738
        %v4884 = vunpack.c.h.b16 %v4738
        %v4885 = vunpack.c.l.b16 %v4739
        %v4886 = vunpack.c.h.b16 %v4739
        %v4887 = vunpack.c.l.b16 %v4740
        %v4888 = vunpack.c.h.b16 %v4740
        %v4889 = vunpack.c.l.b16 %v4741
        %v4890 = vunpack.c.h.b16 %v4741
        %v4891 = vunpack.c.l.b16 %v4742
        %v4892 = vunpack.c.h.b16 %v4742
        %v4893 = vunpack.c.l.b16 %v4743
        %v4894 = vunpack.c.h.b16 %v4743
        %v4895 = vunpack.c.l.b16 %v4744
        %v4896 = vunpack.c.h.b16 %v4744
        %v4897 = vunpack.c.l.b16 %v4745
        %v4898 = vunpack.c.h.b16 %v4745
        %v4899 = vunpack.c.l.b16 %v4746
        %v4900 = vunpack.c.h.b16 %v4746
        %v4901 = vunpack.c.l.b16 %v4747
        %v4902 = vunpack.c.h.b16 %v4747
        %v4903 = vunpack.c.l.b16 %v4748
        %v4904 = vunpack.c.h.b16 %v4748
        %v4905 = vunpack.c.l.b16 %v4749
        %v4906 = vunpack.c.h.b16 %v4749
        %v4907 = vunpack.c.l.b16 %v4750
        %v4908 = vunpack.c.h.b16 %v4750
        %v4909 = vunpack.c.l.b16 %v4751
        %v4910 = vunpack.c.h.b16 %v4751
        %v4911 = vunpack.c.l.b16 %v4752
        %v4912 = vunpack.c.h.b16 %v4752
        %v4913 = vunpack.c.l.b16 %v4753
        %v4914 = vunpack.c.h.b16 %v4753
        %v4915 = vunpack.c.l.b16 %v4754
        %v4916 = vunpack.c.h.b16 %v4754
        %v4917 = vunpack.c.l.b16 %v4755
        %v4918 = vunpack.c.h.b16 %v4755
        %v4919 = vunpack.c.l.b16 %v4756
        %v4920 = vunpack.c.h.b16 %v4756
        %v4921 = vunpack.c.l.b16 %v4757
        %v4922 = vunpack.c.h.b16 %v4757
        %v4923 = vunpack.c.l.b16 %v4758
        %v4924 = vunpack.c.h.b16 %v4758
        %v4925 = vunpack.c.l.b16 %v4759
        %v4926 = vunpack.c.h.b16 %v4759
        %v4927 = vunpack.c.l.b16 %v4760
        %v4928 = vunpack.c.h.b16 %v4760
        %v4929 = vpack.c.b16 %v4819, %v4817
        %v4930 = vpack.c.b16 %v4820, %v4818
        %v4931 = vpack.c.b16 %v4823, %v4821
        %v4932 = vpack.c.b16 %v4824, %v4822
        %v4933 = vpack.c.b16 %v4827, %v4825
        %v4934 = vpack.c.b16 %v4828, %v4826
        %v4935 = vpack.c.b16 %v4831, %v4829
        %v4936 = vpack.c.b16 %v4832, %v4830
        %v4937 = vpack.c.b16 %v4835, %v4833
        %v4938 = vpack.c.b16 %v4836, %v4834
        %v4939 = vpack.c.b16 %v4839, %v4837
        %v4940 = vpack.c.b16 %v4840, %v4838
        %v4941 = vpack.c.b16 %v4843, %v4841
        %v4942 = vpack.c.b16 %v4844, %v4842
        %v4943 = vpack.c.b16 %v4847, %v4845
        %v4944 = vpack.c.b16 %v4848, %v4846
        %v4945 = vpack.c.b16 %v4851, %v4849
        %v4946 = vpack.c.b16 %v4852, %v4850
        %v4947 = vpack.c.b16 %v4855, %v4853
        %v4948 = vpack.c.b16 %v4856, %v4854
        %v4949 = vpack.c.b16 %v4859, %v4857
        %v4950 = vpack.c.b16 %v4860, %v4858
        %v4951 = vpack.c.b16 %v4863, %v4861
        %v4952 = vpack.c.b16 %v4864, %v4862
        %v4953 = vpack.c.b16 %v4867, %v4865
        %v4954 = vpack.c.b16 %v4868, %v4866
        %v4955 = vpack.c.b16 %v4871, %v4869
        %v4956 = vpack.c.b16 %v4872, %v4870
        %v4957 = vpack.c.b16 %v4875, %v4873
        %v4958 = vpack.c.b16 %v4876, %v4874
        %v4959 = vpack.c.b16 %v4879, %v4877
        %v4960 = vpack.c.b16 %v4880, %v4878
        %v4961 = vpack.c.b16 %v4883, %v4881
        %v4962 = vpack.c.b16 %v4884, %v4882
        %v4963 = vpack.c.b16 %v4887, %v4885
        %v4964 = vpack.c.b16 %v4888, %v4886
        %v4965 = vpack.c.b16 %v4891, %v4889
        %v4966 = vpack.c.b16 %v4892, %v4890
        %v4967 = vpack.c.b16 %v4895, %v4893
        %v4968 = vpack.c.b16 %v4896, %v4894
        %v4969 = vpack.c.b16 %v4899, %v4897
        %v4970 = vpack.c.b16 %v4900, %v4898
        %v4971 = vpack.c.b16 %v4903, %v4901
        %v4972 = vpack.c.b16 %v4904, %v4902
        %v4973 = vpack.c.b16 %v4907, %v4905
        %v4974 = vpack.c.b16 %v4908, %v4906
        %v4975 = vpack.c.b16 %v4911, %v4909
        %v4976 = vpack.c.b16 %v4912, %v4910
        %v4977 = vpack.c.b16 %v4915, %v4913
        %v4978 = vpack.c.b16 %v4916, %v4914
        %v4979 = vpack.c.b16 %v4919, %v4917
        %v4980 = vpack.c.b16 %v4920, %v4918
        %v4981 = vpack.c.b16 %v4923, %v4921
        %v4982 = vpack.c.b16 %v4924, %v4922
        %v4983 = vpack.c.b16 %v4927, %v4925
        %v4984 = vpack.c.b16 %v4928, %v4926
        %5041 = vmatprep.subr.bf16.mxu0 %v4930
        %5042 = vmatpush1.bf16.msra.mxu0 %v4929
        %5043 = vmatprep.subr.bf16.mxu0 %v4932
        %5044 = vmatpush1.bf16.msra.mxu0 %v4931
        %5045 = vmatprep.subr.bf16.mxu0 %v4934
        %5046 = vmatpush1.bf16.msra.mxu0 %v4933
        %5047 = vmatprep.subr.bf16.mxu0 %v4936
        %5048 = vmatpush1.bf16.msra.mxu0 %v4935
        %5049 = vmatprep.subr.bf16.mxu0 %v4938
        %5050 = vmatpush1.bf16.msra.mxu0 %v4937
        %5051 = vmatprep.subr.bf16.mxu0 %v4940
        %5052 = vmatpush1.bf16.msra.mxu0 %v4939
        %5053 = vmatprep.subr.bf16.mxu0 %v4942
        %5054 = vmatpush1.bf16.msra.mxu0 %v4941
        %5055 = vmatprep.subr.bf16.mxu0 %v4944
        %5056 = vmatpush1.bf16.msra.mxu0 %v4943
        %5057 = vmatprep.subr.bf16.mxu0 %v4946
        %5058 = vmatpush1.bf16.msra.mxu0 %v4945
        %5059 = vmatprep.subr.bf16.mxu0 %v4948
        %5060 = vmatpush1.bf16.msra.mxu0 %v4947
        %5061 = vmatprep.subr.bf16.mxu0 %v4950
        %5062 = vmatpush1.bf16.msra.mxu0 %v4949
        %5063 = vmatprep.subr.bf16.mxu0 %v4952
        %5064 = vmatpush1.bf16.msra.mxu0 %v4951
        %5065 = vmatprep.subr.bf16.mxu0 %v4954
        %5066 = vmatpush1.bf16.msra.mxu0 %v4953
        %5067 = vmatprep.subr.bf16.mxu0 %v4956
        %5068 = vmatpush1.bf16.msra.mxu0 %v4955
        %5069 = vmatprep.subr.bf16.mxu0 %v4958
        %5070 = vmatpush1.bf16.msra.mxu0 %v4957
        %5071 = vmatprep.subr.bf16.mxu0 %v4960
        %5072 = vmatpush1.bf16.msra.mxu0 %v4959
        %5073 = vmatprep.mubr.bf16.mxu0 %v4334
        %5074 = vmatmul.mubr.bf16.gmra.mrb[0].mxu0 %v4333
        %v5075 = vpop.f32.mrb[0].mxu0
        %v5076 = vadd.f32 0.0, %v5075
        %v5077 = vpop.f32.mrb[0].mxu0
        %v5078 = vadd.f32 0.0, %v5077
        %v5079 = vpop.f32.mrb[0].mxu0
        %v5080 = vpop.f32.mrb[0].mxu0
        %5081 = vdwg.mxu0
        %5082 = vmatprep.subr.bf16.mxu0 %v4962
        %5083 = vmatpush1.bf16.msra.mxu0 %v4961
        %5084 = vmatprep.subr.bf16.mxu0 %v4964
        %5085 = vmatpush1.bf16.msra.mxu0 %v4963
        %5086 = vmatprep.subr.bf16.mxu0 %v4966
        %5087 = vmatpush1.bf16.msra.mxu0 %v4965
        %5088 = vmatprep.subr.bf16.mxu0 %v4968
        %5089 = vmatpush1.bf16.msra.mxu0 %v4967
        %5090 = vmatprep.subr.bf16.mxu0 %v4970
        %5091 = vmatpush1.bf16.msra.mxu0 %v4969
        %5092 = vmatprep.subr.bf16.mxu0 %v4972
        %5093 = vmatpush1.bf16.msra.mxu0 %v4971
        %5094 = vmatprep.subr.bf16.mxu0 %v4974
        %5095 = vmatpush1.bf16.msra.mxu0 %v4973
        %5096 = vmatprep.subr.bf16.mxu0 %v4976
        %5097 = vmatpush1.bf16.msra.mxu0 %v4975
        %5098 = vmatprep.subr.bf16.mxu0 %v4978
        %5099 = vmatpush1.bf16.msra.mxu0 %v4977
        %5100 = vmatprep.subr.bf16.mxu0 %v4980
        %5101 = vmatpush1.bf16.msra.mxu0 %v4979
        %5102 = vmatprep.subr.bf16.mxu0 %v4982
        %5103 = vmatpush1.bf16.msra.mxu0 %v4981
        %5104 = vmatprep.subr.bf16.mxu0 %v4984
        %5105 = vmatpush1.bf16.msra.mxu0 %v4983
        %5106 = vmatprep.subr.bf16.mxu0 0
        %5107 = vmatpush1.bf16.msra.mxu0 0
        %5108 = vmatprep.subr.bf16.mxu0 0
        %5109 = vmatpush1.bf16.msra.mxu0 0
        %5110 = vmatprep.subr.bf16.mxu0 0
        %5111 = vmatpush1.bf16.msra.mxu0 0
        %5112 = vmatprep.subr.bf16.mxu0 0
        %5113 = vmatpush1.bf16.msra.mxu0 0
        %5114 = vmatprep.mubr.bf16.mxu0 %v4621
        %5115 = vmatmul.mubr.bf16.gmra.mrb[0].mxu0 %v4335
        %v5116 = vpop.f32.mrb[0].mxu0
        %v5117 = vadd.f32 %v5076, %v5116
        %v5118 = vpop.f32.mrb[0].mxu0
        %v5119 = vadd.f32 %v5078, %v5118
        %v5120 = vpop.f32.mrb[0].mxu0
        %v5121 = vpop.f32.mrb[0].mxu0
        %5122 = vdwg.mxu0
        %v5123 = vmax.f32 %v4699, %v5117
        %v5124 = vmax.f32 %v4701, %v5119
        %v5125 = vpack.c.bf16 %v5123, %v5123
        %v5126 = vpack.c.bf16 %v5124, %v5124
        %v5128 = vshrl.u32 %v5125, 16
        %v5131 = vshrl.u32 %v5126, 16
        %5133 = vrot.lane.b32.xlu0 %v5128, 96
        %v5134 = vpop.permute.xlu0 %5133
        %5135 = vrot.lane.b32.xlu0 %v5131, 96
        %v5136 = vpop.permute.xlu0 %5135
        %v5137 = vsel %vm2562, %v5134, %v5136
        %v5141 = vrot.slane %v5125, 1
        %v5142 = vrot.slane %v5126, 1
        %5143 = vrot.lane.b32.xlu0 %v5141, 64
        %v5144 = vpop.permute.xlu0 %5143
        %5145 = vrot.lane.b32.xlu0 %v5142, 64
        %v5146 = vpop.permute.xlu0 %5145
        %v5147 = vsel %vm2573, %v5144, %v5146
        %v5149 = vrot.slane %v5128, 1
        %v5150 = vrot.slane %v5131, 1
        %5151 = vrot.lane.b32.xlu0 %v5149, 32
        %v5152 = vpop.permute.xlu0 %5151
        %5153 = vrot.lane.b32.xlu0 %v5150, 32
        %v5154 = vpop.permute.xlu0 %5153
        %vm5155 = vcmask 261120
        %v5156 = vsel %vm5155, %v5152, %v5154
        %v5158 = vrot.slane %v5125, 2
        %v5159 = vrot.slane %v5126, 2
        %v5161 = vrot.slane %v5128, 2
        %v5162 = vrot.slane %v5131, 2
        %5163 = vrot.lane.b32.xlu0 %v5161, 96
        %v5164 = vpop.permute.xlu0 %5163
        %5165 = vrot.lane.b32.xlu0 %v5162, 96
        %v5166 = vpop.permute.xlu0 %5165
        %v5167 = vsel %vm2562, %v5164, %v5166
        %v5169 = vrot.slane %v5125, 3
        %v5170 = vrot.slane %v5126, 3
        %5171 = vrot.lane.b32.xlu0 %v5169, 64
        %v5172 = vpop.permute.xlu0 %5171
        %5173 = vrot.lane.b32.xlu0 %v5170, 64
        %v5174 = vpop.permute.xlu0 %5173
        %v5175 = vsel %vm2573, %v5172, %v5174
        %v5178 = vsel %vm2576, %v5126, %v5134
        %v5182 = vsel %vm2004, %v5136, %v5144
        %v5186 = vsel %vm3614, %v5146, %v5152
        %v5190 = vsel %vm2576, %v5159, %v5164
        %v5194 = vsel %vm2004, %v5166, %v5172
        %v5196 = vld [vmem:[%s9] sm:$0xf]
        %v5197 = vld [vmem:[%s9 + $0x4] sm:$0xf]
        %v5198 = vld [vmem:[%s9 + $0x8] sm:$0xf]
        %v5199 = vld [vmem:[%s9 + $0xc] sm:$0xf]
        %v5200 = vld [vmem:[%s9 + $0x10] sm:$0xf]
        %v5201 = vld [vmem:[%s9 + $0x14] sm:$0xf]
        %v5202 = vld [vmem:[%s9 + $0x18] sm:$0xf]
        %v5203 = vld [vmem:[%s9 + $0x1c] sm:$0xf]
        %v5204 = vld [vmem:[%s9 + $0x20] sm:$0xf]
        %v5205 = vld [vmem:[%s9 + $0x24] sm:$0xf]
        %v5206 = vld [vmem:[%s9 + $0x28] sm:$0xf]
        %v5207 = vld [vmem:[%s9 + $0x2c] sm:$0xf]
        %v5208 = vld [vmem:[%s9 + $0x30] sm:$0xf]
        %v5209 = vld [vmem:[%s9 + $0x34] sm:$0xf]
        %v5210 = vld [vmem:[%s9 + $0x38] sm:$0xf]
        %v5211 = vld [vmem:[%s9 + $0x3c] sm:$0xf]
        %v5212 = vld [vmem:[%s9 + $0x40] sm:$0xf]
        %v5213 = vld [vmem:[%s9 + $0x44] sm:$0xf]
        %v5214 = vld [vmem:[%s9 + $0x48] sm:$0xf]
        %v5215 = vld [vmem:[%s9 + $0x4c] sm:$0xf]
        %v5216 = vld [vmem:[%s9 + $0x50] sm:$0xf]
        %v5217 = vld [vmem:[%s9 + $0x54] sm:$0xf]
        %v5218 = vld [vmem:[%s9 + $0x58] sm:$0xf]
        %v5219 = vld [vmem:[%s9 + $0x5c] sm:$0xf]
        %v5220 = vld [vmem:[%s9 + $0x60] sm:$0xf]
        %v5221 = vld [vmem:[%s9 + $0x64] sm:$0xf]
        %v5222 = vld [vmem:[%s9 + $0x68] sm:$0xf]
        %v5223 = vld [vmem:[%s9 + $0x6c] sm:$0xf]
        %v5224 = vld [vmem:[%s9 + $0x70] sm:$0xf]
        %v5225 = vld [vmem:[%s9 + $0x74] sm:$0xf]
        %v5226 = vld [vmem:[%s9 + $0x78] sm:$0xf]
        %v5227 = vld [vmem:[%s9 + $0x7c] sm:$0xf]
        %v5228 = vld [vmem:[%s9 + $0x80] sm:$0xf]
        %v5229 = vld [vmem:[%s9 + $0x84] sm:$0xf]
        %v5230 = vld [vmem:[%s9 + $0x88] sm:$0xf]
        %v5231 = vld [vmem:[%s9 + $0x8c] sm:$0xf]
        %v5232 = vld [vmem:[%s9 + $0x90] sm:$0xf]
        %v5233 = vld [vmem:[%s9 + $0x94] sm:$0xf]
        %v5234 = vld [vmem:[%s9 + $0x98] sm:$0xf]
        %v5235 = vld [vmem:[%s9 + $0x9c] sm:$0xf]
        %v5236 = vld [vmem:[%s9 + $0xa0] sm:$0xf]
        %v5237 = vld [vmem:[%s9 + $0xa4] sm:$0xf]
        %v5238 = vld [vmem:[%s9 + $0xa8] sm:$0xf]
        %v5239 = vld [vmem:[%s9 + $0xac] sm:$0xf]
        %v5240 = vld [vmem:[%s9 + $0xb0] sm:$0xf]
        %v5241 = vld [vmem:[%s9 + $0xb4] sm:$0xf]
        %v5242 = vld [vmem:[%s9 + $0xb8] sm:$0xf]
        %v5243 = vld [vmem:[%s9 + $0xbc] sm:$0xf]
        %v5244 = vld [vmem:[%s9 + $0xc0] sm:$0xf]
        %v5245 = vld [vmem:[%s9 + $0xc4] sm:$0xf]
        %v5246 = vld [vmem:[%s9 + $0xc8] sm:$0xf]
        %v5247 = vld [vmem:[%s9 + $0xcc] sm:$0xf]
        %v5248 = vld [vmem:[%s9 + $0xd0] sm:$0xf]
        %v5249 = vld [vmem:[%s9 + $0xd4] sm:$0xf]
        %v5250 = vld [vmem:[%s9 + $0xd8] sm:$0xf]
        %v5251 = vld [vmem:[%s9 + $0xdc] sm:$0xf]
        %v5252 = vld [vmem:[%s9 + $0xe0] sm:$0xf]
        %v5253 = vld [vmem:[%s9 + $0xe4] sm:$0xf]
        %v5254 = vld [vmem:[%s9 + $0xe8] sm:$0xf]
        %v5255 = vld [vmem:[%s9 + $0xec] sm:$0xf]
        %v5256 = vld [vmem:[%s9 + $0xf0] sm:$0xf]
        %v5257 = vld [vmem:[%s9 + $0xf4] sm:$0xf]
        %v5258 = vld [vmem:[%s9 + $0xf8] sm:$0xf]
        %v5259 = vld [vmem:[%s9 + $0xfc] sm:$0xf]
        %v5260 = vld [vmem:[%s9 + $0x100] sm:$0xf]
        %v5261 = vld [vmem:[%s9 + $0x104] sm:$0xf]
        %v5262 = vld [vmem:[%s9 + $0x108] sm:$0xf]
        %v5263 = vld [vmem:[%s9 + $0x10c] sm:$0xf]
        %v5264 = vld [vmem:[%s9 + $0x110] sm:$0xf]
        %v5265 = vld [vmem:[%s9 + $0x114] sm:$0xf]
        %v5266 = vld [vmem:[%s9 + $0x118] sm:$0xf]
        %v5267 = vld [vmem:[%s9 + $0x11c] sm:$0xf]
        %v5268 = vld [vmem:[%s9 + $0x120] sm:$0xf]
        %v5269 = vld [vmem:[%s9 + $0x124] sm:$0xf]
        %v5270 = vld [vmem:[%s9 + $0x128] sm:$0xf]
        %v5271 = vld [vmem:[%s9 + $0x12c] sm:$0xf]
        %v5272 = vld [vmem:[%s9 + $0x130] sm:$0xf]
        %v5273 = vld [vmem:[%s9 + $0x134] sm:$0xf]
        %v5274 = vld [vmem:[%s9 + $0x138] sm:$0xf]
        %v5275 = vld [vmem:[%s9 + $0x13c] sm:$0xf]
        %v5276 = vld [vmem:[%s9 + $0x140] sm:$0xf]
        %v5277 = vld [vmem:[%s9 + $0x144] sm:$0xf]
        %v5278 = vld [vmem:[%s9 + $0x148] sm:$0xf]
        %v5279 = vld [vmem:[%s9 + $0x14c] sm:$0xf]
        %v5280 = vld [vmem:[%s9 + $0x150] sm:$0xf]
        %v5281 = vld [vmem:[%s9 + $0x154] sm:$0xf]
        %v5282 = vld [vmem:[%s9 + $0x158] sm:$0xf]
        %v5283 = vld [vmem:[%s9 + $0x15c] sm:$0xf]
        %v5284 = vld [vmem:[%s9 + $0x160] sm:$0xf]
        %v5285 = vld [vmem:[%s9 + $0x164] sm:$0xf]
        %v5286 = vld [vmem:[%s9 + $0x168] sm:$0xf]
        %v5287 = vld [vmem:[%s9 + $0x16c] sm:$0xf]
        %v5288 = vld [vmem:[%s9 + $0x170] sm:$0xf]
        %v5289 = vld [vmem:[%s9 + $0x174] sm:$0xf]
        %v5290 = vld [vmem:[%s9 + $0x178] sm:$0xf]
        %v5291 = vld [vmem:[%s9 + $0x17c] sm:$0xf]
        %v5292 = vld [vmem:[%s9 + $0x180] sm:$0xf]
        %v5293 = vld [vmem:[%s9 + $0x184] sm:$0xf]
        %v5294 = vld [vmem:[%s9 + $0x188] sm:$0xf]
        %v5295 = vld [vmem:[%s9 + $0x18c] sm:$0xf]
        %v5296 = vld [vmem:[%s9 + $0x190] sm:$0xf]
        %v5297 = vld [vmem:[%s9 + $0x194] sm:$0xf]
        %v5298 = vld [vmem:[%s9 + $0x198] sm:$0xf]
        %v5299 = vld [vmem:[%s9 + $0x19c] sm:$0xf]
        %v5300 = vld [vmem:[%s9 + $0x1a0] sm:$0xf]
        %v5301 = vld [vmem:[%s9 + $0x1a4] sm:$0xf]
        %v5302 = vld [vmem:[%s9 + $0x1a8] sm:$0xf]
        %v5303 = vld [vmem:[%s9 + $0x1ac] sm:$0xf]
        %v5304 = vld [vmem:[%s9 + $0x1b0] sm:$0xf]
        %v5305 = vld [vmem:[%s9 + $0x1b4] sm:$0xf]
        %v5306 = vld [vmem:[%s9 + $0x1b8] sm:$0xf]
        %v5307 = vld [vmem:[%s9 + $0x1bc] sm:$0xf]
        %v5308 = vld [vmem:[%s9 + $0x1c0] sm:$0xf]
        %v5309 = vld [vmem:[%s9 + $0x1c4] sm:$0xf]
        %v5310 = vld [vmem:[%s9 + $0x1c8] sm:$0xf]
        %v5311 = vld [vmem:[%s9 + $0x1cc] sm:$0xf]
        %v5312 = vld [vmem:[%s9 + $0x1d0] sm:$0xf]
        %v5313 = vld [vmem:[%s9 + $0x1d4] sm:$0xf]
        %v5314 = vld [vmem:[%s9 + $0x1d8] sm:$0xf]
        %v5315 = vld [vmem:[%s9 + $0x1dc] sm:$0xf]
        %v5316 = vld [vmem:[%s9 + $0x1e0] sm:$0xf]
        %v5317 = vld [vmem:[%s9 + $0x1e4] sm:$0xf]
        %v5318 = vld [vmem:[%s9 + $0x1e8] sm:$0xf]
        %v5319 = vld [vmem:[%s9 + $0x1ec] sm:$0xf]
        %v5320 = vld [vmem:[%s9 + $0x1f0] sm:$0xf]
        %v5321 = vld [vmem:[%s9 + $0x1f4] sm:$0xf]
        %v5322 = vld [vmem:[%s9 + $0x1f8] sm:$0xf]
        %v5323 = vld [vmem:[%s9 + $0x1fc] sm:$0xf]
        %v5324 = vld [vmem:[%s9 + $0x200] sm:$0xf]
        %v5325 = vld [vmem:[%s9 + $0x204] sm:$0xf]
        %v5326 = vld [vmem:[%s9 + $0x208] sm:$0xf]
        %v5327 = vld [vmem:[%s9 + $0x20c] sm:$0xf]
        %v5328 = vld [vmem:[%s9 + $0x210] sm:$0xf]
        %v5329 = vld [vmem:[%s9 + $0x214] sm:$0xf]
        %v5330 = vld [vmem:[%s9 + $0x218] sm:$0xf]
        %v5331 = vld [vmem:[%s9 + $0x21c] sm:$0xf]
        %v5332 = vld [vmem:[%s9 + $0x220] sm:$0xf]
        %v5333 = vld [vmem:[%s9 + $0x224] sm:$0xf]
        %v5334 = vld [vmem:[%s9 + $0x228] sm:$0xf]
        %v5335 = vld [vmem:[%s9 + $0x22c] sm:$0xf]
        %v5336 = vld [vmem:[%s9 + $0x230] sm:$0xf]
        %v5337 = vld [vmem:[%s9 + $0x234] sm:$0xf]
        %v5338 = vld [vmem:[%s9 + $0x238] sm:$0xf]
        %v5339 = vld [vmem:[%s9 + $0x23c] sm:$0xf]
        %v5340 = vld [vmem:[%s9 + $0x240] sm:$0xf]
        %v5341 = vld [vmem:[%s9 + $0x244] sm:$0xf]
        %v5342 = vld [vmem:[%s9 + $0x248] sm:$0xf]
        %v5343 = vld [vmem:[%s9 + $0x24c] sm:$0xf]
        %v5344 = vld [vmem:[%s9 + $0x250] sm:$0xf]
        %v5345 = vld [vmem:[%s9 + $0x254] sm:$0xf]
        %v5346 = vld [vmem:[%s9 + $0x258] sm:$0xf]
        %v5347 = vld [vmem:[%s9 + $0x25c] sm:$0xf]
        %v5348 = vld [vmem:[%s9 + $0x260] sm:$0xf]
        %v5349 = vld [vmem:[%s9 + $0x264] sm:$0xf]
        %v5350 = vld [vmem:[%s9 + $0x268] sm:$0xf]
        %v5351 = vld [vmem:[%s9 + $0x26c] sm:$0xf]
        %v5352 = vld [vmem:[%s9 + $0x270] sm:$0xf]
        %v5353 = vld [vmem:[%s9 + $0x274] sm:$0xf]
        %v5354 = vld [vmem:[%s9 + $0x278] sm:$0xf]
        %v5355 = vld [vmem:[%s9 + $0x27c] sm:$0xf]
        %v5356 = vld [vmem:[%s9 + $0x280] sm:$0xf]
        %v5357 = vld [vmem:[%s9 + $0x284] sm:$0xf]
        %v5358 = vld [vmem:[%s9 + $0x288] sm:$0xf]
        %v5359 = vld [vmem:[%s9 + $0x28c] sm:$0xf]
        %v5360 = vld [vmem:[%s9 + $0x290] sm:$0xf]
        %v5361 = vld [vmem:[%s9 + $0x294] sm:$0xf]
        %v5362 = vld [vmem:[%s9 + $0x298] sm:$0xf]
        %v5363 = vld [vmem:[%s9 + $0x29c] sm:$0xf]
        %v5364 = vld [vmem:[%s9 + $0x2a0] sm:$0xf]
        %v5365 = vld [vmem:[%s9 + $0x2a4] sm:$0xf]
        %v5366 = vld [vmem:[%s9 + $0x2a8] sm:$0xf]
        %v5367 = vld [vmem:[%s9 + $0x2ac] sm:$0xf]
        %v5368 = vld [vmem:[%s9 + $0x2b0] sm:$0xf]
        %v5369 = vld [vmem:[%s9 + $0x2b4] sm:$0xf]
        %v5370 = vld [vmem:[%s9 + $0x2b8] sm:$0xf]
        %v5371 = vld [vmem:[%s9 + $0x2bc] sm:$0xf]
        %v5372 = vld [vmem:[%s9 + $0x2c0] sm:$0xf]
        %v5373 = vld [vmem:[%s9 + $0x2c4] sm:$0xf]
        %v5374 = vld [vmem:[%s9 + $0x2c8] sm:$0xf]
        %v5375 = vld [vmem:[%s9 + $0x2cc] sm:$0xf]
        %v5376 = vld [vmem:[%s9 + $0x2d0] sm:$0xf]
        %v5377 = vld [vmem:[%s9 + $0x2d4] sm:$0xf]
        %v5378 = vld [vmem:[%s9 + $0x2d8] sm:$0xf]
        %v5379 = vld [vmem:[%s9 + $0x2dc] sm:$0xf]
        %v5380 = vld [vmem:[%s9 + $0x2e0] sm:$0xf]
        %v5381 = vld [vmem:[%s9 + $0x2e4] sm:$0xf]
        %v5382 = vld [vmem:[%s9 + $0x2e8] sm:$0xf]
        %v5383 = vld [vmem:[%s9 + $0x2ec] sm:$0xf]
        %v5384 = vld [vmem:[%s9 + $0x2f0] sm:$0xf]
        %v5385 = vld [vmem:[%s9 + $0x2f4] sm:$0xf]
        %v5386 = vld [vmem:[%s9 + $0x2f8] sm:$0xf]
        %v5387 = vld [vmem:[%s9 + $0x2fc] sm:$0xf]
        %v5388 = vld [vmem:[%s9 + $0x300] sm:$0xf]
        %v5389 = vld [vmem:[%s9 + $0x304] sm:$0xf]
        %v5390 = vld [vmem:[%s9 + $0x308] sm:$0xf]
        %v5391 = vld [vmem:[%s9 + $0x30c] sm:$0xf]
        %v5392 = vld [vmem:[%s10] sm:$0x1]
        %v5589 = vunpack.c.l.b16 %v5196
        %v5590 = vunpack.c.l.b16 %v5197
        %v5591 = vunpack.c.l.b16 %v5198
        %v5592 = vunpack.c.l.b16 %v5199
        %v5593 = vunpack.c.l.b16 %v5200
        %v5594 = vunpack.c.l.b16 %v5201
        %v5595 = vunpack.c.l.b16 %v5202
        %v5596 = vunpack.c.l.b16 %v5203
        %v5597 = vunpack.c.l.b16 %v5204
        %v5598 = vunpack.c.l.b16 %v5205
        %v5599 = vunpack.c.l.b16 %v5206
        %v5600 = vunpack.c.l.b16 %v5207
        %v5601 = vunpack.c.l.b16 %v5208
        %v5602 = vunpack.c.l.b16 %v5209
        %v5603 = vunpack.c.l.b16 %v5210
        %v5604 = vunpack.c.l.b16 %v5211
        %v5605 = vunpack.c.l.b16 %v5212
        %v5606 = vunpack.c.l.b16 %v5213
        %v5607 = vunpack.c.l.b16 %v5214
        %v5608 = vunpack.c.l.b16 %v5215
        %v5609 = vunpack.c.l.b16 %v5216
        %v5610 = vunpack.c.l.b16 %v5217
        %v5611 = vunpack.c.l.b16 %v5218
        %v5612 = vunpack.c.l.b16 %v5219
        %v5613 = vunpack.c.l.b16 %v5220
        %v5614 = vunpack.c.l.b16 %v5221
        %v5615 = vunpack.c.l.b16 %v5222
        %v5616 = vunpack.c.l.b16 %v5223
        %v5617 = vunpack.c.l.b16 %v5224
        %v5618 = vunpack.c.l.b16 %v5225
        %v5619 = vunpack.c.l.b16 %v5226
        %v5620 = vunpack.c.l.b16 %v5227
        %v5621 = vunpack.c.l.b16 %v5228
        %v5622 = vunpack.c.l.b16 %v5229
        %v5623 = vunpack.c.l.b16 %v5230
        %v5624 = vunpack.c.l.b16 %v5231
        %v5625 = vunpack.c.l.b16 %v5232
        %v5626 = vunpack.c.l.b16 %v5233
        %v5627 = vunpack.c.l.b16 %v5234
        %v5628 = vunpack.c.l.b16 %v5235
        %v5629 = vunpack.c.l.b16 %v5236
        %v5630 = vunpack.c.l.b16 %v5237
        %v5631 = vunpack.c.l.b16 %v5238
        %v5632 = vunpack.c.l.b16 %v5239
        %v5633 = vunpack.c.l.b16 %v5240
        %v5634 = vunpack.c.l.b16 %v5241
        %v5635 = vunpack.c.l.b16 %v5242
        %v5636 = vunpack.c.l.b16 %v5243
        %v5637 = vunpack.c.l.b16 %v5244
        %v5638 = vunpack.c.l.b16 %v5245
        %v5639 = vunpack.c.l.b16 %v5246
        %v5640 = vunpack.c.l.b16 %v5247
        %v5641 = vunpack.c.l.b16 %v5248
        %v5642 = vunpack.c.l.b16 %v5249
        %v5643 = vunpack.c.l.b16 %v5250
        %v5644 = vunpack.c.l.b16 %v5251
        %v5645 = vunpack.c.l.b16 %v5252
        %v5646 = vunpack.c.l.b16 %v5253
        %v5647 = vunpack.c.l.b16 %v5254
        %v5648 = vunpack.c.l.b16 %v5255
        %v5649 = vunpack.c.l.b16 %v5256
        %v5650 = vunpack.c.l.b16 %v5257
        %v5651 = vunpack.c.l.b16 %v5258
        %v5652 = vunpack.c.l.b16 %v5259
        %v5653 = vunpack.c.l.b16 %v5260
        %v5654 = vunpack.c.l.b16 %v5261
        %v5655 = vunpack.c.l.b16 %v5262
        %v5656 = vunpack.c.l.b16 %v5263
        %v5657 = vunpack.c.l.b16 %v5264
        %v5658 = vunpack.c.l.b16 %v5265
        %v5659 = vunpack.c.l.b16 %v5266
        %v5660 = vunpack.c.l.b16 %v5267
        %v5661 = vunpack.c.l.b16 %v5268
        %v5662 = vunpack.c.l.b16 %v5269
        %v5663 = vunpack.c.l.b16 %v5270
        %v5664 = vunpack.c.l.b16 %v5271
        %v5665 = vunpack.c.l.b16 %v5272
        %v5666 = vunpack.c.l.b16 %v5273
        %v5667 = vunpack.c.l.b16 %v5274
        %v5668 = vunpack.c.l.b16 %v5275
        %v5669 = vunpack.c.l.b16 %v5276
        %v5670 = vunpack.c.l.b16 %v5277
        %v5671 = vunpack.c.l.b16 %v5278
        %v5672 = vunpack.c.l.b16 %v5279
        %v5673 = vunpack.c.l.b16 %v5280
        %v5674 = vunpack.c.l.b16 %v5281
        %v5675 = vunpack.c.l.b16 %v5282
        %v5676 = vunpack.c.l.b16 %v5283
        %v5677 = vunpack.c.l.b16 %v5284
        %v5678 = vunpack.c.l.b16 %v5285
        %v5679 = vunpack.c.l.b16 %v5286
        %v5680 = vunpack.c.l.b16 %v5287
        %v5681 = vunpack.c.l.b16 %v5288
        %v5682 = vunpack.c.l.b16 %v5289
        %v5683 = vunpack.c.l.b16 %v5290
        %v5684 = vunpack.c.l.b16 %v5291
        %v5685 = vunpack.c.l.b16 %v5292
        %v5686 = vunpack.c.l.b16 %v5293
        %v5687 = vunpack.c.l.b16 %v5294
        %v5688 = vunpack.c.l.b16 %v5295
        %v5689 = vunpack.c.l.b16 %v5296
        %v5690 = vunpack.c.l.b16 %v5297
        %v5691 = vunpack.c.l.b16 %v5298
        %v5692 = vunpack.c.l.b16 %v5299
        %v5693 = vunpack.c.l.b16 %v5300
        %v5694 = vunpack.c.l.b16 %v5301
        %v5695 = vunpack.c.l.b16 %v5302
        %v5696 = vunpack.c.l.b16 %v5303
        %v5697 = vunpack.c.l.b16 %v5304
        %v5698 = vunpack.c.l.b16 %v5305
        %v5699 = vunpack.c.l.b16 %v5306
        %v5700 = vunpack.c.l.b16 %v5307
        %v5701 = vunpack.c.l.b16 %v5308
        %v5702 = vunpack.c.l.b16 %v5309
        %v5703 = vunpack.c.l.b16 %v5310
        %v5704 = vunpack.c.l.b16 %v5311
        %v5705 = vunpack.c.l.b16 %v5312
        %v5706 = vunpack.c.l.b16 %v5313
        %v5707 = vunpack.c.l.b16 %v5314
        %v5708 = vunpack.c.l.b16 %v5315
        %v5709 = vunpack.c.l.b16 %v5316
        %v5710 = vunpack.c.l.b16 %v5317
        %v5711 = vunpack.c.l.b16 %v5318
        %v5712 = vunpack.c.l.b16 %v5319
        %v5713 = vunpack.c.l.b16 %v5320
        %v5714 = vunpack.c.l.b16 %v5321
        %v5715 = vunpack.c.l.b16 %v5322
        %v5716 = vunpack.c.l.b16 %v5323
        %v5717 = vunpack.c.l.b16 %v5324
        %v5718 = vunpack.c.l.b16 %v5325
        %v5719 = vunpack.c.l.b16 %v5326
        %v5720 = vunpack.c.l.b16 %v5327
        %v5721 = vunpack.c.l.b16 %v5328
        %v5722 = vunpack.c.l.b16 %v5329
        %v5723 = vunpack.c.l.b16 %v5330
        %v5724 = vunpack.c.l.b16 %v5331
        %v5725 = vunpack.c.l.b16 %v5332
        %v5726 = vunpack.c.l.b16 %v5333
        %v5727 = vunpack.c.l.b16 %v5334
        %v5728 = vunpack.c.l.b16 %v5335
        %v5729 = vunpack.c.l.b16 %v5336
        %v5730 = vunpack.c.l.b16 %v5337
        %v5731 = vunpack.c.l.b16 %v5338
        %v5732 = vunpack.c.l.b16 %v5339
        %v5733 = vunpack.c.l.b16 %v5340
        %v5734 = vunpack.c.l.b16 %v5341
        %v5735 = vunpack.c.l.b16 %v5342
        %v5736 = vunpack.c.l.b16 %v5343
        %v5737 = vunpack.c.l.b16 %v5344
        %v5738 = vunpack.c.l.b16 %v5345
        %v5739 = vunpack.c.l.b16 %v5346
        %v5740 = vunpack.c.l.b16 %v5347
        %v5741 = vunpack.c.l.b16 %v5348
        %v5742 = vunpack.c.l.b16 %v5349
        %v5743 = vunpack.c.l.b16 %v5350
        %v5744 = vunpack.c.l.b16 %v5351
        %v5745 = vunpack.c.l.b16 %v5352
        %v5746 = vunpack.c.l.b16 %v5353
        %v5747 = vunpack.c.l.b16 %v5354
        %v5748 = vunpack.c.l.b16 %v5355
        %v5749 = vunpack.c.l.b16 %v5356
        %v5750 = vunpack.c.l.b16 %v5357
        %v5751 = vunpack.c.l.b16 %v5358
        %v5752 = vunpack.c.l.b16 %v5359
        %v5753 = vunpack.c.l.b16 %v5360
        %v5754 = vunpack.c.l.b16 %v5361
        %v5755 = vunpack.c.l.b16 %v5362
        %v5756 = vunpack.c.l.b16 %v5363
        %v5757 = vunpack.c.l.b16 %v5364
        %v5758 = vunpack.c.l.b16 %v5365
        %v5759 = vunpack.c.l.b16 %v5366
        %v5760 = vunpack.c.l.b16 %v5367
        %v5761 = vunpack.c.l.b16 %v5368
        %v5762 = vunpack.c.l.b16 %v5369
        %v5763 = vunpack.c.l.b16 %v5370
        %v5764 = vunpack.c.l.b16 %v5371
        %v5765 = vunpack.c.l.b16 %v5372
        %v5766 = vunpack.c.l.b16 %v5373
        %v5767 = vunpack.c.l.b16 %v5374
        %v5768 = vunpack.c.l.b16 %v5375
        %v5769 = vunpack.c.l.b16 %v5376
        %v5770 = vunpack.c.l.b16 %v5377
        %v5771 = vunpack.c.l.b16 %v5378
        %v5772 = vunpack.c.l.b16 %v5379
        %v5773 = vunpack.c.l.b16 %v5380
        %v5774 = vunpack.c.l.b16 %v5381
        %v5775 = vunpack.c.l.b16 %v5382
        %v5776 = vunpack.c.l.b16 %v5383
        %v5777 = vunpack.c.l.b16 %v5384
        %v5778 = vunpack.c.l.b16 %v5385
        %v5779 = vunpack.c.l.b16 %v5386
        %v5780 = vunpack.c.l.b16 %v5387
        %v5781 = vunpack.c.l.b16 %v5388
        %v5782 = vunpack.c.l.b16 %v5389
        %v5783 = vunpack.c.l.b16 %v5390
        %v5784 = vunpack.c.l.b16 %v5391
        %v5785 = vpack.c.b16 %v5590, %v5589
        %v5786 = vpack.c.b16 %v5592, %v5591
        %v5787 = vpack.c.b16 %v5594, %v5593
        %v5788 = vpack.c.b16 %v5596, %v5595
        %v5789 = vpack.c.b16 %v5598, %v5597
        %v5790 = vpack.c.b16 %v5600, %v5599
        %v5791 = vpack.c.b16 %v5602, %v5601
        %v5792 = vpack.c.b16 %v5604, %v5603
        %v5793 = vpack.c.b16 %v5606, %v5605
        %v5794 = vpack.c.b16 %v5608, %v5607
        %v5795 = vpack.c.b16 %v5610, %v5609
        %v5796 = vpack.c.b16 %v5612, %v5611
        %v5797 = vpack.c.b16 %v5614, %v5613
        %v5798 = vpack.c.b16 %v5616, %v5615
        %v5799 = vpack.c.b16 %v5618, %v5617
        %v5800 = vpack.c.b16 %v5620, %v5619
        %v5801 = vpack.c.b16 %v5622, %v5621
        %v5802 = vpack.c.b16 %v5624, %v5623
        %v5803 = vpack.c.b16 %v5626, %v5625
        %v5804 = vpack.c.b16 %v5628, %v5627
        %v5805 = vpack.c.b16 %v5630, %v5629
        %v5806 = vpack.c.b16 %v5632, %v5631
        %v5807 = vpack.c.b16 %v5634, %v5633
        %v5808 = vpack.c.b16 %v5636, %v5635
        %v5809 = vpack.c.b16 %v5638, %v5637
        %v5810 = vpack.c.b16 %v5640, %v5639
        %v5811 = vpack.c.b16 %v5642, %v5641
        %v5812 = vpack.c.b16 %v5644, %v5643
        %v5813 = vpack.c.b16 %v5646, %v5645
        %v5814 = vpack.c.b16 %v5648, %v5647
        %v5815 = vpack.c.b16 %v5650, %v5649
        %v5816 = vpack.c.b16 %v5652, %v5651
        %v5817 = vpack.c.b16 %v5654, %v5653
        %v5818 = vpack.c.b16 %v5656, %v5655
        %v5819 = vpack.c.b16 %v5658, %v5657
        %v5820 = vpack.c.b16 %v5660, %v5659
        %v5821 = vpack.c.b16 %v5662, %v5661
        %v5822 = vpack.c.b16 %v5664, %v5663
        %v5823 = vpack.c.b16 %v5666, %v5665
        %v5824 = vpack.c.b16 %v5668, %v5667
        %v5825 = vpack.c.b16 %v5670, %v5669
        %v5826 = vpack.c.b16 %v5672, %v5671
        %v5827 = vpack.c.b16 %v5674, %v5673
        %v5828 = vpack.c.b16 %v5676, %v5675
        %v5829 = vpack.c.b16 %v5678, %v5677
        %v5830 = vpack.c.b16 %v5680, %v5679
        %v5831 = vpack.c.b16 %v5682, %v5681
        %v5832 = vpack.c.b16 %v5684, %v5683
        %v5833 = vpack.c.b16 %v5686, %v5685
        %v5834 = vpack.c.b16 %v5688, %v5687
        %v5835 = vpack.c.b16 %v5690, %v5689
        %v5836 = vpack.c.b16 %v5692, %v5691
        %v5837 = vpack.c.b16 %v5694, %v5693
        %v5838 = vpack.c.b16 %v5696, %v5695
        %v5839 = vpack.c.b16 %v5698, %v5697
        %v5840 = vpack.c.b16 %v5700, %v5699
        %v5841 = vpack.c.b16 %v5702, %v5701
        %v5842 = vpack.c.b16 %v5704, %v5703
        %v5843 = vpack.c.b16 %v5706, %v5705
        %v5844 = vpack.c.b16 %v5708, %v5707
        %v5845 = vpack.c.b16 %v5710, %v5709
        %v5846 = vpack.c.b16 %v5712, %v5711
        %v5847 = vpack.c.b16 %v5714, %v5713
        %v5848 = vpack.c.b16 %v5716, %v5715
        %v5849 = vpack.c.b16 %v5718, %v5717
        %v5850 = vpack.c.b16 %v5720, %v5719
        %v5851 = vpack.c.b16 %v5722, %v5721
        %v5852 = vpack.c.b16 %v5724, %v5723
        %v5853 = vpack.c.b16 %v5726, %v5725
        %v5854 = vpack.c.b16 %v5728, %v5727
        %v5855 = vpack.c.b16 %v5730, %v5729
        %v5856 = vpack.c.b16 %v5732, %v5731
        %v5857 = vpack.c.b16 %v5734, %v5733
        %v5858 = vpack.c.b16 %v5736, %v5735
        %v5859 = vpack.c.b16 %v5738, %v5737
        %v5860 = vpack.c.b16 %v5740, %v5739
        %v5861 = vpack.c.b16 %v5742, %v5741
        %v5862 = vpack.c.b16 %v5744, %v5743
        %v5863 = vpack.c.b16 %v5746, %v5745
        %v5864 = vpack.c.b16 %v5748, %v5747
        %v5865 = vpack.c.b16 %v5750, %v5749
        %v5866 = vpack.c.b16 %v5752, %v5751
        %v5867 = vpack.c.b16 %v5754, %v5753
        %v5868 = vpack.c.b16 %v5756, %v5755
        %v5869 = vpack.c.b16 %v5758, %v5757
        %v5870 = vpack.c.b16 %v5760, %v5759
        %v5871 = vpack.c.b16 %v5762, %v5761
        %v5872 = vpack.c.b16 %v5764, %v5763
        %v5873 = vpack.c.b16 %v5766, %v5765
        %v5874 = vpack.c.b16 %v5768, %v5767
        %v5875 = vpack.c.b16 %v5770, %v5769
        %v5876 = vpack.c.b16 %v5772, %v5771
        %v5877 = vpack.c.b16 %v5774, %v5773
        %v5878 = vpack.c.b16 %v5776, %v5775
        %v5879 = vpack.c.b16 %v5778, %v5777
        %v5880 = vpack.c.b16 %v5780, %v5779
        %v5881 = vpack.c.b16 %v5782, %v5781
        %v5882 = vpack.c.b16 %v5784, %v5783
        %v5982 = vsel %vm3614, %v5174, 0
        %5984 = vmatprep.subr.bf16.mxu0 0
        %5985 = vmatpush1.bf16.msra.mxu0 %v5785
        %5986 = vmatprep.subr.bf16.mxu0 0
        %5987 = vmatpush1.bf16.msra.mxu0 %v5786
        %5988 = vmatprep.subr.bf16.mxu0 0
        %5989 = vmatpush1.bf16.msra.mxu0 %v5787
        %5990 = vmatprep.subr.bf16.mxu0 0
        %5991 = vmatpush1.bf16.msra.mxu0 %v5788
        %5992 = vmatprep.subr.bf16.mxu0 0
        %5993 = vmatpush1.bf16.msra.mxu0 %v5789
        %5994 = vmatprep.subr.bf16.mxu0 0
        %5995 = vmatpush1.bf16.msra.mxu0 %v5790
        %5996 = vmatprep.subr.bf16.mxu0 0
        %5997 = vmatpush1.bf16.msra.mxu0 %v5791
        %5998 = vmatprep.subr.bf16.mxu0 0
        %5999 = vmatpush1.bf16.msra.mxu0 %v5792
        %6000 = vmatprep.subr.bf16.mxu0 0
        %6001 = vmatpush1.bf16.msra.mxu0 %v5793
        %6002 = vmatprep.subr.bf16.mxu0 0
        %6003 = vmatpush1.bf16.msra.mxu0 %v5794
        %6004 = vmatprep.subr.bf16.mxu0 0
        %6005 = vmatpush1.bf16.msra.mxu0 %v5795
        %6006 = vmatprep.subr.bf16.mxu0 0
        %6007 = vmatpush1.bf16.msra.mxu0 %v5796
        %6008 = vmatprep.subr.bf16.mxu0 0
        %6009 = vmatpush1.bf16.msra.mxu0 %v5797
        %6010 = vmatprep.subr.bf16.mxu0 0
        %6011 = vmatpush1.bf16.msra.mxu0 %v5798
        %6012 = vmatprep.subr.bf16.mxu0 0
        %6013 = vmatpush1.bf16.msra.mxu0 %v5799
        %6014 = vmatprep.subr.bf16.mxu0 0
        %6015 = vmatpush1.bf16.msra.mxu0 %v5800
        %6016 = vmatprep.mubr.bf16.mxu0 %v5178
        %6017 = vmatmul.mubr.bf16.gmra.mrb[0].mxu0 %v5125
        %v6018 = vpop.f32.mrb[0].mxu0
        %v6019 = vadd.f32 %v5392, %v6018
        %v6020 = vpop.f32.mrb[0].mxu0
        %v6021 = vpop.f32.mrb[0].mxu0
        %v6022 = vpop.f32.mrb[0].mxu0
        %6023 = vdwg.mxu0
        %6024 = vmatprep.subr.bf16.mxu0 0
        %6025 = vmatpush1.bf16.msra.mxu0 %v5801
        %6026 = vmatprep.subr.bf16.mxu0 0
        %6027 = vmatpush1.bf16.msra.mxu0 %v5802
        %6028 = vmatprep.subr.bf16.mxu0 0
        %6029 = vmatpush1.bf16.msra.mxu0 %v5803
        %6030 = vmatprep.subr.bf16.mxu0 0
        %6031 = vmatpush1.bf16.msra.mxu0 %v5804
        %6032 = vmatprep.subr.bf16.mxu0 0
        %6033 = vmatpush1.bf16.msra.mxu0 %v5805
        %6034 = vmatprep.subr.bf16.mxu0 0
        %6035 = vmatpush1.bf16.msra.mxu0 %v5806
        %6036 = vmatprep.subr.bf16.mxu0 0
        %6037 = vmatpush1.bf16.msra.mxu0 %v5807
        %6038 = vmatprep.subr.bf16.mxu0 0
        %6039 = vmatpush1.bf16.msra.mxu0 %v5808
        %6040 = vmatprep.subr.bf16.mxu0 0
        %6041 = vmatpush1.bf16.msra.mxu0 %v5809
        %6042 = vmatprep.subr.bf16.mxu0 0
        %6043 = vmatpush1.bf16.msra.mxu0 %v5810
        %6044 = vmatprep.subr.bf16.mxu0 0
        %6045 = vmatpush1.bf16.msra.mxu0 %v5811
        %6046 = vmatprep.subr.bf16.mxu0 0
        %6047 = vmatpush1.bf16.msra.mxu0 %v5812
        %6048 = vmatprep.subr.bf16.mxu0 0
        %6049 = vmatpush1.bf16.msra.mxu0 %v5813
        %6050 = vmatprep.subr.bf16.mxu0 0
        %6051 = vmatpush1.bf16.msra.mxu0 %v5814
        %6052 = vmatprep.subr.bf16.mxu0 0
        %6053 = vmatpush1.bf16.msra.mxu0 %v5815
        %6054 = vmatprep.subr.bf16.mxu0 0
        %6055 = vmatpush1.bf16.msra.mxu0 %v5816
        %6056 = vmatprep.mubr.bf16.mxu0 %v5182
        %6057 = vmatmul.mubr.bf16.gmra.mrb[0].mxu0 %v5137
        %v6058 = vpop.f32.mrb[0].mxu0
        %v6059 = vadd.f32 %v6019, %v6058
        %v6060 = vpop.f32.mrb[0].mxu0
        %v6061 = vpop.f32.mrb[0].mxu0
        %v6062 = vpop.f32.mrb[0].mxu0
        %6063 = vdwg.mxu0
        %6064 = vmatprep.subr.bf16.mxu0 0
        %6065 = vmatpush1.bf16.msra.mxu0 %v5817
        %6066 = vmatprep.subr.bf16.mxu0 0
        %6067 = vmatpush1.bf16.msra.mxu0 %v5818
        %6068 = vmatprep.subr.bf16.mxu0 0
        %6069 = vmatpush1.bf16.msra.mxu0 %v5819
        %6070 = vmatprep.subr.bf16.mxu0 0
        %6071 = vmatpush1.bf16.msra.mxu0 %v5820
        %6072 = vmatprep.subr.bf16.mxu0 0
        %6073 = vmatpush1.bf16.msra.mxu0 %v5821
        %6074 = vmatprep.subr.bf16.mxu0 0
        %6075 = vmatpush1.bf16.msra.mxu0 %v5822
        %6076 = vmatprep.subr.bf16.mxu0 0
        %6077 = vmatpush1.bf16.msra.mxu0 %v5823
        %6078 = vmatprep.subr.bf16.mxu0 0
        %6079 = vmatpush1.bf16.msra.mxu0 %v5824
        %6080 = vmatprep.subr.bf16.mxu0 0
        %6081 = vmatpush1.bf16.msra.mxu0 %v5825
        %6082 = vmatprep.subr.bf16.mxu0 0
        %6083 = vmatpush1.bf16.msra.mxu0 %v5826
        %6084 = vmatprep.subr.bf16.mxu0 0
        %6085 = vmatpush1.bf16.msra.mxu0 %v5827
        %6086 = vmatprep.subr.bf16.mxu0 0
        %6087 = vmatpush1.bf16.msra.mxu0 %v5828
        %6088 = vmatprep.subr.bf16.mxu0 0
        %6089 = vmatpush1.bf16.msra.mxu0 %v5829
        %6090 = vmatprep.subr.bf16.mxu0 0
        %6091 = vmatpush1.bf16.msra.mxu0 %v5830
        %6092 = vmatprep.subr.bf16.mxu0 0
        %6093 = vmatpush1.bf16.msra.mxu0 %v5831
        %6094 = vmatprep.subr.bf16.mxu0 0
        %6095 = vmatpush1.bf16.msra.mxu0 %v5832
        %6096 = vmatprep.mubr.bf16.mxu0 %v5186
        %6097 = vmatmul.mubr.bf16.gmra.mrb[0].mxu0 %v5147
        %v6098 = vpop.f32.mrb[0].mxu0
        %v6099 = vadd.f32 %v6059, %v6098
        %v6100 = vpop.f32.mrb[0].mxu0
        %v6101 = vpop.f32.mrb[0].mxu0
        %v6102 = vpop.f32.mrb[0].mxu0
        %6103 = vdwg.mxu0
        %6104 = vmatprep.subr.bf16.mxu0 0
        %6105 = vmatpush1.bf16.msra.mxu0 %v5833
        %6106 = vmatprep.subr.bf16.mxu0 0
        %6107 = vmatpush1.bf16.msra.mxu0 %v5834
        %6108 = vmatprep.subr.bf16.mxu0 0
        %6109 = vmatpush1.bf16.msra.mxu0 %v5835
        %6110 = vmatprep.subr.bf16.mxu0 0
        %6111 = vmatpush1.bf16.msra.mxu0 %v5836
        %6112 = vmatprep.subr.bf16.mxu0 0
        %6113 = vmatpush1.bf16.msra.mxu0 %v5837
        %6114 = vmatprep.subr.bf16.mxu0 0
        %6115 = vmatpush1.bf16.msra.mxu0 %v5838
        %6116 = vmatprep.subr.bf16.mxu0 0
        %6117 = vmatpush1.bf16.msra.mxu0 %v5839
        %6118 = vmatprep.subr.bf16.mxu0 0
        %6119 = vmatpush1.bf16.msra.mxu0 %v5840
        %6120 = vmatprep.subr.bf16.mxu0 0
        %6121 = vmatpush1.bf16.msra.mxu0 %v5841
        %6122 = vmatprep.subr.bf16.mxu0 0
        %6123 = vmatpush1.bf16.msra.mxu0 %v5842
        %6124 = vmatprep.subr.bf16.mxu0 0
        %6125 = vmatpush1.bf16.msra.mxu0 %v5843
        %6126 = vmatprep.subr.bf16.mxu0 0
        %6127 = vmatpush1.bf16.msra.mxu0 %v5844
        %6128 = vmatprep.subr.bf16.mxu0 0
        %6129 = vmatpush1.bf16.msra.mxu0 %v5845
        %6130 = vmatprep.subr.bf16.mxu0 0
        %6131 = vmatpush1.bf16.msra.mxu0 %v5846
        %6132 = vmatprep.subr.bf16.mxu0 0
        %6133 = vmatpush1.bf16.msra.mxu0 %v5847
        %6134 = vmatprep.subr.bf16.mxu0 0
        %6135 = vmatpush1.bf16.msra.mxu0 %v5848
        %6136 = vmatprep.mubr.bf16.mxu0 %v5158
        %6137 = vmatmul.mubr.bf16.gmra.mrb[0].mxu0 %v5156
        %v6138 = vpop.f32.mrb[0].mxu0
        %v6139 = vadd.f32 %v6099, %v6138
        %v6140 = vpop.f32.mrb[0].mxu0
        %v6141 = vpop.f32.mrb[0].mxu0
        %v6142 = vpop.f32.mrb[0].mxu0
        %6143 = vdwg.mxu0
        %6144 = vmatprep.subr.bf16.mxu0 0
        %6145 = vmatpush1.bf16.msra.mxu0 %v5849
        %6146 = vmatprep.subr.bf16.mxu0 0
        %6147 = vmatpush1.bf16.msra.mxu0 %v5850
        %6148 = vmatprep.subr.bf16.mxu0 0
        %6149 = vmatpush1.bf16.msra.mxu0 %v5851
        %6150 = vmatprep.subr.bf16.mxu0 0
        %6151 = vmatpush1.bf16.msra.mxu0 %v5852
        %6152 = vmatprep.subr.bf16.mxu0 0
        %6153 = vmatpush1.bf16.msra.mxu0 %v5853
        %6154 = vmatprep.subr.bf16.mxu0 0
        %6155 = vmatpush1.bf16.msra.mxu0 %v5854
        %6156 = vmatprep.subr.bf16.mxu0 0
        %6157 = vmatpush1.bf16.msra.mxu0 %v5855
        %6158 = vmatprep.subr.bf16.mxu0 0
        %6159 = vmatpush1.bf16.msra.mxu0 %v5856
        %6160 = vmatprep.subr.bf16.mxu0 0
        %6161 = vmatpush1.bf16.msra.mxu0 %v5857
        %6162 = vmatprep.subr.bf16.mxu0 0
        %6163 = vmatpush1.bf16.msra.mxu0 %v5858
        %6164 = vmatprep.subr.bf16.mxu0 0
        %6165 = vmatpush1.bf16.msra.mxu0 %v5859
        %6166 = vmatprep.subr.bf16.mxu0 0
        %6167 = vmatpush1.bf16.msra.mxu0 %v5860
        %6168 = vmatprep.subr.bf16.mxu0 0
        %6169 = vmatpush1.bf16.msra.mxu0 %v5861
        %6170 = vmatprep.subr.bf16.mxu0 0
        %6171 = vmatpush1.bf16.msra.mxu0 %v5862
        %6172 = vmatprep.subr.bf16.mxu0 0
        %6173 = vmatpush1.bf16.msra.mxu0 %v5863
        %6174 = vmatprep.subr.bf16.mxu0 0
        %6175 = vmatpush1.bf16.msra.mxu0 %v5864
        %6176 = vmatprep.mubr.bf16.mxu0 %v5167
        %6177 = vmatmul.mubr.bf16.gmra.mrb[0].mxu0 %v5190
        %v6178 = vpop.f32.mrb[0].mxu0
        %v6179 = vadd.f32 %v6139, %v6178
        %v6180 = vpop.f32.mrb[0].mxu0
        %v6181 = vpop.f32.mrb[0].mxu0
        %v6182 = vpop.f32.mrb[0].mxu0
        %6183 = vdwg.mxu0
        %6184 = vmatprep.subr.bf16.mxu0 0
        %6185 = vmatpush1.bf16.msra.mxu0 %v5865
        %6186 = vmatprep.subr.bf16.mxu0 0
        %6187 = vmatpush1.bf16.msra.mxu0 %v5866
        %6188 = vmatprep.subr.bf16.mxu0 0
        %6189 = vmatpush1.bf16.msra.mxu0 %v5867
        %6190 = vmatprep.subr.bf16.mxu0 0
        %6191 = vmatpush1.bf16.msra.mxu0 %v5868
        %6192 = vmatprep.subr.bf16.mxu0 0
        %6193 = vmatpush1.bf16.msra.mxu0 %v5869
        %6194 = vmatprep.subr.bf16.mxu0 0
        %6195 = vmatpush1.bf16.msra.mxu0 %v5870
        %6196 = vmatprep.subr.bf16.mxu0 0
        %6197 = vmatpush1.bf16.msra.mxu0 %v5871
        %6198 = vmatprep.subr.bf16.mxu0 0
        %6199 = vmatpush1.bf16.msra.mxu0 %v5872
        %6200 = vmatprep.subr.bf16.mxu0 0
        %6201 = vmatpush1.bf16.msra.mxu0 %v5873
        %6202 = vmatprep.subr.bf16.mxu0 0
        %6203 = vmatpush1.bf16.msra.mxu0 %v5874
        %6204 = vmatprep.subr.bf16.mxu0 0
        %6205 = vmatpush1.bf16.msra.mxu0 %v5875
        %6206 = vmatprep.subr.bf16.mxu0 0
        %6207 = vmatpush1.bf16.msra.mxu0 %v5876
        %6208 = vmatprep.subr.bf16.mxu0 0
        %6209 = vmatpush1.bf16.msra.mxu0 %v5877
        %6210 = vmatprep.subr.bf16.mxu0 0
        %6211 = vmatpush1.bf16.msra.mxu0 %v5878
        %6212 = vmatprep.subr.bf16.mxu0 0
        %6213 = vmatpush1.bf16.msra.mxu0 %v5879
        %6214 = vmatprep.subr.bf16.mxu0 0
        %6215 = vmatpush1.bf16.msra.mxu0 %v5880
        %6216 = vmatprep.mubr.bf16.mxu0 %v5175
        %6217 = vmatmul.mubr.bf16.gmra.mrb[0].mxu0 %v5194
        %v6218 = vpop.f32.mrb[0].mxu0
        %v6219 = vadd.f32 %v6179, %v6218
        %v6220 = vpop.f32.mrb[0].mxu0
        %v6221 = vpop.f32.mrb[0].mxu0
        %v6222 = vpop.f32.mrb[0].mxu0
        %6223 = vdwg.mxu0
        %6224 = vmatprep.subr.bf16.mxu0 0
        %6225 = vmatpush1.bf16.msra.mxu0 %v5881
        %6226 = vmatprep.subr.bf16.mxu0 0
        %6227 = vmatpush1.bf16.msra.mxu0 %v5882
        %6228 = vmatprep.subr.bf16.mxu0 0
        %6229 = vmatpush1.bf16.msra.mxu0 0
        %6230 = vmatprep.subr.bf16.mxu0 0
        %6231 = vmatpush1.bf16.msra.mxu0 0
        %6232 = vmatprep.subr.bf16.mxu0 0
        %6233 = vmatpush1.bf16.msra.mxu0 0
        %6234 = vmatprep.subr.bf16.mxu0 0
        %6235 = vmatpush1.bf16.msra.mxu0 0
        %6236 = vmatprep.subr.bf16.mxu0 0
        %6237 = vmatpush1.bf16.msra.mxu0 0
        %6238 = vmatprep.subr.bf16.mxu0 0
        %6239 = vmatpush1.bf16.msra.mxu0 0
        %6240 = vmatprep.subr.bf16.mxu0 0
        %6241 = vmatpush1.bf16.msra.mxu0 0
        %6242 = vmatprep.subr.bf16.mxu0 0
        %6243 = vmatpush1.bf16.msra.mxu0 0
        %6244 = vmatprep.subr.bf16.mxu0 0
        %6245 = vmatpush1.bf16.msra.mxu0 0
        %6246 = vmatprep.subr.bf16.mxu0 0
        %6247 = vmatpush1.bf16.msra.mxu0 0
        %6248 = vmatprep.subr.bf16.mxu0 0
        %6249 = vmatpush1.bf16.msra.mxu0 0
        %6250 = vmatprep.subr.bf16.mxu0 0
        %6251 = vmatpush1.bf16.msra.mxu0 0
        %6252 = vmatprep.subr.bf16.mxu0 0
        %6253 = vmatpush1.bf16.msra.mxu0 0
        %6254 = vmatprep.subr.bf16.mxu0 0
        %6255 = vmatpush1.bf16.msra.mxu0 0
        %6256 = vmatprep.mubr.bf16.mxu0 0
        %6257 = vmatmul.mubr.bf16.gmra.mrb[0].mxu0 %v5982
        %v6258 = vpop.f32.mrb[0].mxu0
        %v6259 = vadd.f32 %v6219, %v6258
        %v6260 = vpop.f32.mrb[0].mxu0
        %v6261 = vpop.f32.mrb[0].mxu0
        %v6262 = vpop.f32.mrb[0].mxu0
        %6263 = vdwg.mxu0
        %v6264 = vmax.f32 %v6259, 0.0
        %v6265 = vpack.c.bf16 %v6264, %v6264
        %v6266 = vld [vmem:[%s11] sm:$0xf]
        %v6267 = vld [vmem:[%s11 + $0x4] sm:$0xf]
        %v6268 = vld [vmem:[%s11 + $0x8] sm:$0xf]
        %v6269 = vld [vmem:[%s11 + $0xc] sm:$0xf]
        %v6270 = vld [vmem:[%s11 + $0x10] sm:$0xf]
        %v6271 = vld [vmem:[%s11 + $0x14] sm:$0xf]
        %v6272 = vld [vmem:[%s11 + $0x18] sm:$0xf]
        %v6273 = vld [vmem:[%s11 + $0x1c] sm:$0xf]
        %v6274 = vld [vmem:[%s12] sm:$0x1]
        %v6283 = vunpack.c.l.b16 %v6266
        %v6284 = vunpack.c.l.b16 %v6267
        %v6285 = vunpack.c.l.b16 %v6268
        %v6286 = vunpack.c.l.b16 %v6269
        %v6287 = vunpack.c.l.b16 %v6270
        %v6288 = vunpack.c.l.b16 %v6271
        %v6289 = vunpack.c.l.b16 %v6272
        %v6290 = vunpack.c.l.b16 %v6273
        %v6291 = vpack.c.b16 %v6284, %v6283
        %v6292 = vpack.c.b16 %v6286, %v6285
        %v6293 = vpack.c.b16 %v6288, %v6287
        %v6294 = vpack.c.b16 %v6290, %v6289
        %v6300 = vsel %vm2004, %v6265, 0
        %6302 = vmatprep.subr.bf16.mxu0 0
        %6303 = vmatpush1.bf16.msra.mxu0 %v6291
        %6304 = vmatprep.subr.bf16.mxu0 0
        %6305 = vmatpush1.bf16.msra.mxu0 %v6292
        %6306 = vmatprep.subr.bf16.mxu0 0
        %6307 = vmatpush1.bf16.msra.mxu0 %v6293
        %6308 = vmatprep.subr.bf16.mxu0 0
        %6309 = vmatpush1.bf16.msra.mxu0 %v6294
        %6310 = vmatprep.subr.bf16.mxu0 0
        %6311 = vmatpush1.bf16.msra.mxu0 0
        %6312 = vmatprep.subr.bf16.mxu0 0
        %6313 = vmatpush1.bf16.msra.mxu0 0
        %6314 = vmatprep.subr.bf16.mxu0 0
        %6315 = vmatpush1.bf16.msra.mxu0 0
        %6316 = vmatprep.subr.bf16.mxu0 0
        %6317 = vmatpush1.bf16.msra.mxu0 0
        %6318 = vmatprep.subr.bf16.mxu0 0
        %6319 = vmatpush1.bf16.msra.mxu0 0
        %6320 = vmatprep.subr.bf16.mxu0 0
        %6321 = vmatpush1.bf16.msra.mxu0 0
        %6322 = vmatprep.subr.bf16.mxu0 0
        %6323 = vmatpush1.bf16.msra.mxu0 0
        %6324 = vmatprep.subr.bf16.mxu0 0
        %6325 = vmatpush1.bf16.msra.mxu0 0
        %6326 = vmatprep.subr.bf16.mxu0 0
        %6327 = vmatpush1.bf16.msra.mxu0 0
        %6328 = vmatprep.subr.bf16.mxu0 0
        %6329 = vmatpush1.bf16.msra.mxu0 0
        %6330 = vmatprep.subr.bf16.mxu0 0
        %6331 = vmatpush1.bf16.msra.mxu0 0
        %6332 = vmatprep.subr.bf16.mxu0 0
        %6333 = vmatpush1.bf16.msra.mxu0 0
        %6334 = vmatprep.mubr.bf16.mxu0 0
        %6335 = vmatmul.mubr.bf16.gmra.mrb[0].mxu0 %v6300
        %v6336 = vpop.f32.mrb[0].mxu0
        %v6337 = vadd.f32 %v6274, %v6336
        %v6338 = vpop.f32.mrb[0].mxu0
        %v6339 = vpop.f32.mrb[0].mxu0
        %v6340 = vpop.f32.mrb[0].mxu0
        %6341 = vdwg.mxu0
        %vm6342 = vcmask 73728
        %6343 = vst.msk [vmem:[%s505] sm:$0x1] %vm6342, %v6337
        %s6344 = sand.u32 %s316, 1
        %s6345 = scalar_lea.sflag [#allocation4], %s6344
        %s6346 = sand.u32 %s316, 1
        %s6347 = scalar_lea.vmem [#allocation11], %s6346
        // Predicated region
        $region93: #{digit_cnn_forward.1} parent=71 // pred_check
          %p6348 = pneg %p326
        $region94: #{digit_cnn_forward.1} parent=71 // pred_check_branch
          %6350 = sbr.rel (%p6348) target = $region96
        $region95: #{digit_cnn_forward.1} parent=71 // pred_region
          %s6352 = ssub.s32 16, 16
          %6353 = vsyncadd %s6345, %s6352
          %s6354 = smul.addr %s30, 16
          %s6355 = scalar_lea.hbm %s13, %s6354
          %s6357 = sshll.u32 %s6347, 4
          %s6358 = int_to_ptr.vmem [resolvable:$true] %s6357
          %6360 = dma.vmem_to_hbm [thread:$0]  %s6358, 16, %s6355, %s6345
        $region96: #{digit_cnn_forward.1} parent=71 // pred_fallthru
          _
      $region72: #{digit_cnn_forward.1} parent=5 // pred_fallthru
        _
      %p6361 = scmp.le.s32.totalorder 2, %s25
      // Predicated region
      $region97: #{digit_cnn_forward.1} parent=5 // pred_check
        %p6362 = pneg %p6361
      $region98: #{digit_cnn_forward.1} parent=5 // pred_check_branch
        %6364 = sbr.rel (%p6362) target = $region100
      $region99: #{digit_cnn_forward.1} parent=5 // pred_region
        %s6365 = ssub.s32 %s25, 2
        // Predicated region
        $region101: #{digit_cnn_forward.1} parent=99 // pred_check
          %p6366 = pneg %p332
        $region102: #{digit_cnn_forward.1} parent=99 // pred_check_branch
          %6368 = sbr.rel (%p6366) target = $region104
        $region103: #{digit_cnn_forward.1} parent=99 // pred_region
          %s6369 = sand.u32 %s317, 1
          %s6370 = scalar_lea.sflag [#allocation4], %s6369
          %s6371 = sand.u32 %s317, 1
          %s6372 = scalar_lea.vmem [#allocation11], %s6371
          %6373 = dma.done %s6370, 16
        $region104: #{digit_cnn_forward.1} parent=99 // pred_fallthru
          _
      $region100: #{digit_cnn_forward.1} parent=5 // pred_fallthru
        _
    $region6: #{digit_cnn_forward.1} parent=1 // loop_footer
      %s29 = sadd.s32 1, %s25
    $region7: #{digit_cnn_forward.1} parent=1 // loop_footer_branch
      %24 = sbr.rel target = $region3
    $region8: #{digit_cnn_forward.1} parent=1 // loop_exit
      _
    %6374 = vsyncpa [#allocation3], 1
    %s6375 = scalar_lea.sflag [#allocation3], 1
    %6376 = vsyncpa %s6375, 1
    %6377 = vsyncpa [#allocation6], 1
    %6378 = vsyncpa [#allocation9], 1
    %6379 = vsyncpa [#allocation4], 1
    %s6380 = scalar_lea.sflag [#allocation4], 1
    %6381 = vsyncpa %s6380, 1

</llo_original>
